<compile_context>
chip_gen: v7x
topology: tpu7x:2x2x1
jax: 0.10.0
libtpu: 0.0.40
codegen_flags: <defaults>
</compile_context>

<pallas_src>
import functools

import jax
import jax.numpy as jnp
from jax.experimental import pallas as pl
from jax.experimental.pallas import tpu as pltpu


OUT_PAD = 128   # pad the 1-wide head output to a full 128-lane (unmasked) store
NHP = 128       # pad the attention-head indicator matrix to 128 lane-dense columns


# ----------------------------------------------------------------------------
# Fused forward kernel.  One grid step == one block of TB batch rows.
# ----------------------------------------------------------------------------
def _dstnet_kernel(
    x_ref,                                    # (S, TB, Cin)  time-major input block
    cw_ref, cb_ref,                           # conv: (3, Cin, 32), (1, 32)
    wih1_ref, whh1_ref, bl1_ref,              # LSTM layer 1: (32,4H),(H,4H),(1,4H)
    wih2_ref, whh2_ref, bl2_ref,              # LSTM layer 2: (H,4H),(H,4H),(1,4H)
    wq_ref, bq_ref, wk_ref, bk_ref,
    wv_ref, bv_ref, wo_ref, bo_ref,           # attention projections
    hmask_ref, hmask_t_ref,                   # (E, 128), (128, E) head indicator (0-padded)
    w1_ref, b1_ref, w2_ref, b2_ref, w3_ref, b3_ref,   # MLP head (w3/b3 padded to 128 lanes)
    o_ref,                                    # (TB, 128) lane/sublane-dense output
    h1_scr, h2_scr,                           # (S*TB, H) VMEM scratch per LSTM layer
    *, hidden, num_heads, matmul_dtype):
    f32 = jnp.float32
    S, TB, Cin = x_ref.shape
    H = hidden
    hd = H // num_heads
    E = H

    def mm(a, b):
        # MXU matmul; optionally bf16 operands (v6e/v7x), always f32 accumulate.
        return jnp.dot(a.astype(matmul_dtype), b.astype(matmul_dtype),
                       preferred_element_type=f32)

    # ---- Conv1d(k=3, pad=1) + ReLU, in-kernel, time-major -------------------
    # conv[t] = x[t-1] @ W0 + x[t] @ W1 + x[t+1] @ W2 + b  (zero-padded ends)
    xf = x_ref[...].astype(f32).reshape(S * TB, Cin)
    y0 = mm(xf, cw_ref[0]).reshape(S, TB, 32)
    y1 = mm(xf, cw_ref[1]).reshape(S, TB, 32)
    y2 = mm(xf, cw_ref[2]).reshape(S, TB, 32)
    zc = jnp.zeros((1, TB, 32), f32)
    conv = (jnp.concatenate([zc, y0[:-1]], axis=0) + y1
            + jnp.concatenate([y2[1:], zc], axis=0) + cb_ref[...])
    conv = jnp.maximum(conv, 0.0).reshape(S * TB, 32)

    # ---- 2-layer LSTM (PyTorch gate order i,f,g,o; input proj hoisted) ------
    def run_lstm(x_seq, wih_ref, whh_ref, b_ref, out_scr):
        gates_x = mm(x_seq, wih_ref[...]) + b_ref[...]          # (S*TB, 4H)
        whh = whh_ref[...]
        h = jnp.zeros((TB, H), f32)
        c = jnp.zeros((TB, H), f32)
        # S is small (8): static unroll keeps the recurrence fully visible to
        # the scheduler.  Switch to lax.fori_loop + pl.ds when scaling seq_len.
        for t in range(S):
            g = gates_x[t * TB:(t + 1) * TB, :] + mm(h, whh)    # (TB, 4H)
            i_g = jax.nn.sigmoid(g[:, 0 * H:1 * H])
            f_g = jax.nn.sigmoid(g[:, 1 * H:2 * H])
            g_g = jnp.tanh(g[:, 2 * H:3 * H])
            o_g = jax.nn.sigmoid(g[:, 3 * H:4 * H])
            c = f_g * c + i_g * g_g
            h = o_g * jnp.tanh(c)
            out_scr[t * TB:(t + 1) * TB, :] = h
        return h                                                # (TB, H), last step

    run_lstm(conv, wih1_ref, whh1_ref, bl1_ref, h1_scr)
    h_last = run_lstm(h1_scr[...], wih2_ref, whh2_ref, bl2_ref, h2_scr)
    x_attn = h2_scr[...]                                        # (S*TB, H) time-major

    # ---- Multi-head self-attention, last query row only ---------------------
    nhp = hmask_ref.shape[1]                                    # heads padded to 128
    q = mm(h_last, wq_ref[...]) + bq_ref[...]                   # (TB, E)
    k = mm(x_attn, wk_ref[...]) + bk_ref[...]                   # (S*TB, E)
    v = mm(x_attn, wv_ref[...]) + bv_ref[...]                   # (S*TB, E)
    scale = 1.0 / float(hd) ** 0.5
    # scores[t, b, h] = scale * sum_{d in head h} q[b, d] * k[t, b, d]
    kq = (k.reshape(S, TB, E) * q[None, :, :]).reshape(S * TB, E)
    scores = (mm(kq, hmask_ref[...]) * scale).reshape(S, TB, nhp)
    m = jnp.max(scores, axis=0, keepdims=True)
    e = jnp.exp(scores - m)
    p = e * pl.reciprocal(jnp.sum(e, axis=0, keepdims=True), approx=True)
    # ctx[b, d] = sum_t p[t, b, head(d)] * v[t, b, d]; padded softmax columns
    # (uniform 1/S) hit zero rows of hmask_t, so padding is a mathematical no-op.
    p_full = mm(p.reshape(S * TB, nhp), hmask_t_ref[...])       # (S*TB, E)
    ctx = jnp.sum((p_full * v).reshape(S, TB, E), axis=0)       # (TB, E)
    attn = mm(ctx, wo_ref[...]) + bo_ref[...]                   # (TB, E)

    # ---- MLP head (dropouts identity in eval) --------------------------------
    h1 = jnp.maximum(mm(attn, w1_ref[...]) + b1_ref[...], 0.0)  # (TB, 400)
    h2 = jnp.maximum(mm(h1, w2_ref[...]) + b2_ref[...], 0.0)    # (TB, 100)
    out = mm(h2, w3_ref[...]) + b3_ref[...]                     # (TB, 128) lane-dense
    o_ref[...] = out.astype(o_ref.dtype)


# ----------------------------------------------------------------------------
# Wrapper: layout plumbing + single pallas_call.
# ----------------------------------------------------------------------------
def _round_up(n, m):
    return -(-n // m) * m


def _pick_block_b(batch):
    # Fill MXU rows (128 on v5e; fine on v6e/v7x too) while keeping >= 2 grid
    # steps when the batch allows so both v7x TensorCores get work.
    if batch < 16:
        return _round_up(batch, 8)
    return min(128, _round_up(_round_up(batch, 2) // 2, 8))


def dstnet_forward(params, x, *, block_b=None, matmul_dtype=jnp.float32):
    """x: (B, S, input_size) -> (B, output_size). Fully fused forward pass."""
    B, S, Cin = x.shape
    H = params["hidden_size"]
    nh = params["num_heads"]
    out_size = params["b3"].shape[0]

    if block_b is None:
        block_b = _pick_block_b(B)
    assert block_b % 8 == 0
    B_pad = _round_up(B, block_b)

    # Time-major (S, B, Cin) input (natural layout for the recurrence); the
    # conv taps are built in VMEM inside the kernel (no wrapper im2col blowup).
    x_tm = jnp.transpose(x, (1, 0, 2)).astype(jnp.float32)
    if B_pad != B:
        x_tm = jnp.pad(x_tm, ((0, 0), (0, B_pad - B), (0, 0)))

    cw = params["conv_w"]                                   # (3, Cin, 32)
    cb = params["conv_b"].reshape(1, -1)
    (wih1, whh1, bl1), (wih2, whh2, bl2) = params["lstm"]
    bl1 = bl1.reshape(1, -1)
    bl2 = bl2.reshape(1, -1)
    bq = params["bq"].reshape(1, -1)
    bk = params["bk"].reshape(1, -1)
    bv = params["bv"].reshape(1, -1)
    bo = params["bo"].reshape(1, -1)
    b1 = params["b1"].reshape(1, -1)
    b2 = params["b2"].reshape(1, -1)
    # Pad the 1-wide final layer to 128 lanes -> unmasked lane-dense store.
    w3p = jnp.zeros((params["w3"].shape[0], OUT_PAD), jnp.float32
                    ).at[:, :out_size].set(params["w3"])
    b3p = jnp.zeros((1, OUT_PAD), jnp.float32).at[0, :out_size].set(params["b3"])
    # Head-indicator matrix, zero-padded to 128 columns (lane-dense scores/probs).
    hd = H // nh
    head_id = jnp.arange(H) // hd
    hmask = (head_id[:, None] == jnp.arange(NHP)[None, :]).astype(jnp.float32)   # (H,128)
    hmask_t = hmask.T                                                            # (128,H)

    weights = (cw, cb, wih1, whh1, bl1, wih2, whh2, bl2,
               params["wq"], bq, params["wk"], bk, params["wv"], bv,
               params["wo"], bo, hmask, hmask_t,
               params["w1"], b1, params["w2"], b2, w3p, b3p)

    # Full-array blocks with a constant index_map across the batch grid.
    # (When scaling H on v7x's 64 MiB VMEM: mark these pipeline_mode=pl.Buffered(1)
    #  and/or pack the tiny bias rows into one operand to cut double-buffering.)
    def rep(a):
        return pl.BlockSpec(a.shape, lambda i, _n=a.ndim: (0,) * _n)

    kernel = functools.partial(_dstnet_kernel, hidden=H, num_heads=nh,
                               matmul_dtype=matmul_dtype)
    out = pl.pallas_call(
        kernel,
        out_shape=jax.ShapeDtypeStruct((B_pad, OUT_PAD), jnp.float32),
        grid=(B_pad // block_b,),
        in_specs=[pl.BlockSpec((S, block_b, Cin), lambda i: (0, i, 0))]
                + [rep(a) for a in weights],
        out_specs=pl.BlockSpec((block_b, OUT_PAD), lambda i: (i, 0)),
        scratch_shapes=[pltpu.VMEM((S * block_b, H), jnp.float32),
                        pltpu.VMEM((S * block_b, H), jnp.float32)],
        compiler_params=pltpu.CompilerParams(
            dimension_semantics=("parallel",),
            vmem_limit_bytes=32 * 1024 * 1024),
    )(x_tm, *weights)
    return out[:B, :out_size]


# ----------------------------------------------------------------------------
# Pure-JAX reference (mirrors the PyTorch forward op-by-op) for validation.
# ----------------------------------------------------------------------------
def dstnet_reference(params, x):
    B, S, Cin = x.shape
    H = params["hidden_size"]
    nh = params["num_heads"]
    hd = H // nh
    xp = jnp.pad(x, ((0, 0), (1, 1), (0, 0)))
    acc = jnp.zeros((B, S, params["conv_w"].shape[-1]), jnp.float32) + params["conv_b"]
    for k in range(3):
        acc = acc + jnp.einsum("bsc,co->bso", xp[:, k:k + S, :], params["conv_w"][k])
    h = jnp.maximum(acc, 0.0)
    for (wih, whh, b) in params["lstm"]:
        ht = jnp.zeros((B, H), jnp.float32)
        ct = jnp.zeros((B, H), jnp.float32)
        hs = []
        for t in range(S):
            g = h[:, t, :] @ wih + ht @ whh + b
            i_g = jax.nn.sigmoid(g[:, :H])
            f_g = jax.nn.sigmoid(g[:, H:2 * H])
            g_g = jnp.tanh(g[:, 2 * H:3 * H])
            o_g = jax.nn.sigmoid(g[:, 3 * H:])
            ct = f_g * ct + i_g * g_g
            ht = o_g * jnp.tanh(ct)
            hs.append(ht[:, None, :])
        h = jnp.concatenate(hs, axis=1)
    q = h @ params["wq"] + params["bq"]
    k_ = h @ params["wk"] + params["bk"]
    v = h @ params["wv"] + params["bv"]
    heads = []
    for hh in range(nh):
        qh = q[:, :, hh * hd:(hh + 1) * hd]
        kh = k_[:, :, hh * hd:(hh + 1) * hd]
        vh = v[:, :, hh * hd:(hh + 1) * hd]
        s = jnp.einsum("bqd,bkd->bqk", qh, kh) / (hd ** 0.5)
        p = jax.nn.softmax(s, axis=-1)
        heads.append(jnp.einsum("bqk,bkd->bqd", p, vh))
    ctx = jnp.concatenate(heads, axis=-1)
    attn = ctx @ params["wo"] + params["bo"]
    last = attn[:, -1, :]
    h1 = jnp.maximum(last @ params["w1"] + params["b1"], 0.0)
    h2 = jnp.maximum(h1 @ params["w2"] + params["b2"], 0.0)
    return h2 @ params["w3"] + params["b3"]


# ----------------------------------------------------------------------------
# Deterministic synthetic parameters (already in kernel-friendly layout).
# ----------------------------------------------------------------------------
def init_params(key, input_size, hidden_size, num_layers=2, output_size=1,
                conv_ch=32, num_heads=4):
    ks = iter(jax.random.split(key, 32))

    def u(shape, scale=0.1):
        return jax.random.uniform(next(ks), shape, jnp.float32, -scale, scale)

    p = {
        "conv_w": u((3, input_size, conv_ch)),              # (K, Cin, Cout)
        "conv_b": u((conv_ch,)),
    }
    lstm = []
    in_dims = [conv_ch] + [hidden_size] * (num_layers - 1)
    for d in in_dims:
        lstm.append((u((d, 4 * hidden_size)),               # W_ih (right-multiply)
                     u((hidden_size, 4 * hidden_size)),     # W_hh
                     u((4 * hidden_size,))))                # bias_ih + bias_hh
    p["lstm"] = lstm
    for name in ("wq", "wk", "wv", "wo"):
        p[name] = u((hidden_size, hidden_size))
    for name in ("bq", "bk", "bv", "bo"):
        p[name] = u((hidden_size,))
    p["w1"], p["b1"] = u((hidden_size, 400)), u((400,))
    p["w2"], p["b2"] = u((400, 100)), u((100,))
    p["w3"], p["b3"] = u((100, output_size)), u((output_size,))
    p["num_heads"] = num_heads
    p["hidden_size"] = hidden_size
    return p


if __name__ == "__main__":
    B, S, INPUT_SIZE, HIDDEN = 4, 8, 4, 64   # module defaults: hidden 64, 4 heads
    key = jax.random.PRNGKey(0)
    kx, kp = jax.random.split(key)
    x = jax.random.normal(kx, (B, S, INPUT_SIZE), jnp.float32)
    params = init_params(kp, INPUT_SIZE, HIDDEN)

    # f32 path.
    out = jax.block_until_ready(dstnet_forward(params, x))
    assert out.shape == (B, 1)
    assert bool(jnp.all(jnp.isfinite(out)))

    with jax.default_matmul_precision("float32"):
        ref = jax.block_until_ready(dstnet_reference(params, x))
    assert bool(jnp.allclose(out, ref, atol=5e-3, rtol=5e-3)), (out, ref)

    # bf16 matmul-operand path (v6e/v7x MXU fast path) — looser tolerance.
    out_bf16 = jax.block_until_ready(
        dstnet_forward(params, x, matmul_dtype=jnp.bfloat16))
    assert out_bf16.shape == (B, 1)
    assert bool(jnp.all(jnp.isfinite(out_bf16)))
    assert bool(jnp.allclose(out_bf16, ref, atol=5e-2, rtol=5e-2)), (out_bf16, ref)

    print("KERNEL_OK")
</pallas_src>

<mosaic_0001>
module attributes {stable_mosaic.version = 11 : i64} {
  func.func @_dstnet_kernel(%arg0: i32, %arg1: memref<8x8x4xf32, #tpu.memory_space<vmem>>, %arg2: memref<3x4x32xf32, #tpu.memory_space<vmem>>, %arg3: memref<1x32xf32, #tpu.memory_space<vmem>>, %arg4: memref<32x256xf32, #tpu.memory_space<vmem>>, %arg5: memref<64x256xf32, #tpu.memory_space<vmem>>, %arg6: memref<1x256xf32, #tpu.memory_space<vmem>>, %arg7: memref<64x256xf32, #tpu.memory_space<vmem>>, %arg8: memref<64x256xf32, #tpu.memory_space<vmem>>, %arg9: memref<1x256xf32, #tpu.memory_space<vmem>>, %arg10: memref<64x64xf32, #tpu.memory_space<vmem>>, %arg11: memref<1x64xf32, #tpu.memory_space<vmem>>, %arg12: memref<64x64xf32, #tpu.memory_space<vmem>>, %arg13: memref<1x64xf32, #tpu.memory_space<vmem>>, %arg14: memref<64x64xf32, #tpu.memory_space<vmem>>, %arg15: memref<1x64xf32, #tpu.memory_space<vmem>>, %arg16: memref<64x64xf32, #tpu.memory_space<vmem>>, %arg17: memref<1x64xf32, #tpu.memory_space<vmem>>, %arg18: memref<64x128xf32, #tpu.memory_space<vmem>>, %arg19: memref<128x64xf32, #tpu.memory_space<vmem>>, %arg20: memref<64x400xf32, #tpu.memory_space<vmem>>, %arg21: memref<1x400xf32, #tpu.memory_space<vmem>>, %arg22: memref<400x100xf32, #tpu.memory_space<vmem>>, %arg23: memref<1x100xf32, #tpu.memory_space<vmem>>, %arg24: memref<100x128xf32, #tpu.memory_space<vmem>>, %arg25: memref<1x128xf32, #tpu.memory_space<vmem>>, %arg26: memref<8x128xf32, #tpu.memory_space<vmem>>, %arg27: memref<64x64xf32, #tpu.memory_space<vmem>>, %arg28: memref<64x64xf32, #tpu.memory_space<vmem>>) attributes {dimension_semantics = [#tpu.dimension_semantics<parallel>], iteration_bounds = array<i64: 1>, scalar_prefetch = 0 : i64, scratch_operands = 2 : i64, tpu.core_type = #tpu.core_type<tc>, window_params = [{transform_indices = @transform_0, window_bounds = array<i64: 8, 8, 4>}, {pipeline_mode = #tpu.pipeline_mode<synchronous>, transform_indices = @transform_1, window_bounds = array<i64: 3, 4, 32>}, {pipeline_mode = #tpu.pipeline_mode<synchronous>, transform_indices = @transform_2, window_bounds = array<i64: 1, 32>}, {pipeline_mode = #tpu.pipeline_mode<synchronous>, transform_indices = @transform_3, window_bounds = array<i64: 32, 256>}, {pipeline_mode = #tpu.pipeline_mode<synchronous>, transform_indices = @transform_4, window_bounds = array<i64: 64, 256>}, {pipeline_mode = #tpu.pipeline_mode<synchronous>, transform_indices = @transform_5, window_bounds = array<i64: 1, 256>}, {pipeline_mode = #tpu.pipeline_mode<synchronous>, transform_indices = @transform_6, window_bounds = array<i64: 64, 256>}, {pipeline_mode = #tpu.pipeline_mode<synchronous>, transform_indices = @transform_7, window_bounds = array<i64: 64, 256>}, {pipeline_mode = #tpu.pipeline_mode<synchronous>, transform_indices = @transform_8, window_bounds = array<i64: 1, 256>}, {pipeline_mode = #tpu.pipeline_mode<synchronous>, transform_indices = @transform_9, window_bounds = array<i64: 64, 64>}, {pipeline_mode = #tpu.pipeline_mode<synchronous>, transform_indices = @transform_10, window_bounds = array<i64: 1, 64>}, {pipeline_mode = #tpu.pipeline_mode<synchronous>, transform_indices = @transform_11, window_bounds = array<i64: 64, 64>}, {pipeline_mode = #tpu.pipeline_mode<synchronous>, transform_indices = @transform_12, window_bounds = array<i64: 1, 64>}, {pipeline_mode = #tpu.pipeline_mode<synchronous>, transform_indices = @transform_13, window_bounds = array<i64: 64, 64>}, {pipeline_mode = #tpu.pipeline_mode<synchronous>, transform_indices = @transform_14, window_bounds = array<i64: 1, 64>}, {pipeline_mode = #tpu.pipeline_mode<synchronous>, transform_indices = @transform_15, window_bounds = array<i64: 64, 64>}, {pipeline_mode = #tpu.pipeline_mode<synchronous>, transform_indices = @transform_16, window_bounds = array<i64: 1, 64>}, {pipeline_mode = #tpu.pipeline_mode<synchronous>, transform_indices = @transform_17, window_bounds = array<i64: 64, 128>}, {pipeline_mode = #tpu.pipeline_mode<synchronous>, transform_indices = @transform_18, window_bounds = array<i64: 128, 64>}, {pipeline_mode = #tpu.pipeline_mode<synchronous>, transform_indices = @transform_19, window_bounds = array<i64: 64, 400>}, {pipeline_mode = #tpu.pipeline_mode<synchronous>, transform_indices = @transform_20, window_bounds = array<i64: 1, 400>}, {pipeline_mode = #tpu.pipeline_mode<synchronous>, transform_indices = @transform_21, window_bounds = array<i64: 400, 100>}, {pipeline_mode = #tpu.pipeline_mode<synchronous>, transform_indices = @transform_22, window_bounds = array<i64: 1, 100>}, {pipeline_mode = #tpu.pipeline_mode<synchronous>, transform_indices = @transform_23, window_bounds = array<i64: 100, 128>}, {pipeline_mode = #tpu.pipeline_mode<synchronous>, transform_indices = @transform_24, window_bounds = array<i64: 1, 128>}, {transform_indices = @transform_25, window_bounds = array<i64: 8, 128>}]} {
    %c0 = arith.constant 0 : index
    %c0_0 = arith.constant 0 : index
    %c0_1 = arith.constant 0 : index
    %0 = vector.load %arg1[%c0, %c0_0, %c0_1] : memref<8x8x4xf32, #tpu.memory_space<vmem>>, vector<8x8x4xf32>
    %1 = vector.shape_cast %0 : vector<8x8x4xf32> to vector<64x4xf32>
    %c0_2 = arith.constant 0 : index
    %c0_3 = arith.constant 0 : index
    %c0_4 = arith.constant 0 : index
    %2 = vector.load %arg2[%c0_2, %c0_3, %c0_4] : memref<3x4x32xf32, #tpu.memory_space<vmem>>, vector<1x4x32xf32>
    %3 = vector.shape_cast %2 : vector<1x4x32xf32> to vector<4x32xf32>
    %cst = arith.constant dense<0.000000e+00> : vector<64x32xf32>
    %4 = tpu.matmul %1, %3, %cst {dimension_numbers = #tpu.dot_dimension_numbers<[1], [0], [0], [1], [0, 0, 1, 1], [], []>} : vector<64x4xf32>, vector<4x32xf32>, vector<64x32xf32> -> vector<64x32xf32>
    %5 = vector.shape_cast %4 : vector<64x32xf32> to vector<8x8x32xf32>
    %c1 = arith.constant 1 : index
    %c0_5 = arith.constant 0 : index
    %c0_6 = arith.constant 0 : index
    %6 = vector.load %arg2[%c1, %c0_5, %c0_6] : memref<3x4x32xf32, #tpu.memory_space<vmem>>, vector<1x4x32xf32>
    %7 = vector.shape_cast %6 : vector<1x4x32xf32> to vector<4x32xf32>
    %cst_7 = arith.constant dense<0.000000e+00> : vector<64x32xf32>
    %8 = tpu.matmul %1, %7, %cst_7 {dimension_numbers = #tpu.dot_dimension_numbers<[1], [0], [0], [1], [0, 0, 1, 1], [], []>} : vector<64x4xf32>, vector<4x32xf32>, vector<64x32xf32> -> vector<64x32xf32>
    %9 = vector.shape_cast %8 : vector<64x32xf32> to vector<8x8x32xf32>
    %c2 = arith.constant 2 : index
    %c0_8 = arith.constant 0 : index
    %c0_9 = arith.constant 0 : index
    %10 = vector.load %arg2[%c2, %c0_8, %c0_9] : memref<3x4x32xf32, #tpu.memory_space<vmem>>, vector<1x4x32xf32>
    %11 = vector.shape_cast %10 : vector<1x4x32xf32> to vector<4x32xf32>
    %cst_10 = arith.constant dense<0.000000e+00> : vector<64x32xf32>
    %12 = tpu.matmul %1, %11, %cst_10 {dimension_numbers = #tpu.dot_dimension_numbers<[1], [0], [0], [1], [0, 0, 1, 1], [], []>} : vector<64x4xf32>, vector<4x32xf32>, vector<64x32xf32> -> vector<64x32xf32>
    %13 = vector.shape_cast %12 : vector<64x32xf32> to vector<8x8x32xf32>
    %cst_11 = arith.constant 0.000000e+00 : f32
    %14 = vector.broadcast %cst_11 : f32 to vector<1x8x32xf32>
    %15 = vector.extract_strided_slice %5 {offsets = [0, 0, 0], sizes = [7, 8, 32], strides = [1, 1, 1]} : vector<8x8x32xf32> to vector<7x8x32xf32>
    %16 = tpu.concatenate %14, %15 in 0 : vector<1x8x32xf32>, vector<7x8x32xf32> -> vector<8x8x32xf32>
    %17 = arith.addf %16, %9 : vector<8x8x32xf32>
    %18 = vector.extract_strided_slice %13 {offsets = [1, 0, 0], sizes = [7, 8, 32], strides = [1, 1, 1]} : vector<8x8x32xf32> to vector<7x8x32xf32>
    %19 = tpu.concatenate %18, %14 in 0 : vector<7x8x32xf32>, vector<1x8x32xf32> -> vector<8x8x32xf32>
    %20 = arith.addf %17, %19 : vector<8x8x32xf32>
    %c0_12 = arith.constant 0 : index
    %c0_13 = arith.constant 0 : index
    %21 = vector.load %arg3[%c0_12, %c0_13] : memref<1x32xf32, #tpu.memory_space<vmem>>, vector<1x32xf32>
    %22 = vector.shape_cast %21 : vector<1x32xf32> to vector<1x1x32xf32>
    %23 = vector.broadcast %22 : vector<1x1x32xf32> to vector<8x8x32xf32>
    %24 = arith.addf %20, %23 : vector<8x8x32xf32>
    %cst_14 = arith.constant 0.000000e+00 : f32
    %25 = vector.broadcast %cst_14 : f32 to vector<8x8x32xf32>
    %26 = arith.maximumf %24, %25 : vector<8x8x32xf32>
    %27 = vector.shape_cast %26 : vector<8x8x32xf32> to vector<64x32xf32>
    %c0_15 = arith.constant 0 : index
    %c0_16 = arith.constant 0 : index
    %28 = vector.load %arg4[%c0_15, %c0_16] : memref<32x256xf32, #tpu.memory_space<vmem>>, vector<32x256xf32>
    %cst_17 = arith.constant dense<0.000000e+00> : vector<64x256xf32>
    %29 = tpu.matmul %27, %28, %cst_17 {dimension_numbers = #tpu.dot_dimension_numbers<[1], [0], [0], [1], [0, 0, 1, 1], [], []>} : vector<64x32xf32>, vector<32x256xf32>, vector<64x256xf32> -> vector<64x256xf32>
    %c0_18 = arith.constant 0 : index
    %c0_19 = arith.constant 0 : index
    %30 = vector.load %arg6[%c0_18, %c0_19] : memref<1x256xf32, #tpu.memory_space<vmem>>, vector<1x256xf32>
    %31 = vector.broadcast %30 : vector<1x256xf32> to vector<64x256xf32>
    %32 = arith.addf %29, %31 : vector<64x256xf32>
    %c0_20 = arith.constant 0 : index
    %c0_21 = arith.constant 0 : index
    %33 = vector.load %arg5[%c0_20, %c0_21] : memref<64x256xf32, #tpu.memory_space<vmem>>, vector<64x256xf32>
    %cst_22 = arith.constant 0.000000e+00 : f32
    %34 = vector.broadcast %cst_22 : f32 to vector<8x64xf32>
    %cst_23 = arith.constant 0.000000e+00 : f32
    %35 = vector.broadcast %cst_23 : f32 to vector<8x64xf32>
    %36 = vector.extract_strided_slice %32 {offsets = [0, 0], sizes = [8, 256], strides = [1, 1]} : vector<64x256xf32> to vector<8x256xf32>
    %cst_24 = arith.constant dense<0.000000e+00> : vector<8x256xf32>
    %37 = tpu.matmul %34, %33, %cst_24 {dimension_numbers = #tpu.dot_dimension_numbers<[1], [0], [0], [1], [0, 0, 1, 1], [], []>} : vector<8x64xf32>, vector<64x256xf32>, vector<8x256xf32> -> vector<8x256xf32>
    %38 = arith.addf %36, %37 : vector<8x256xf32>
    %39 = vector.extract_strided_slice %38 {offsets = [0, 0], sizes = [8, 64], strides = [1, 1]} : vector<8x256xf32> to vector<8x64xf32>
    %40 = arith.negf %39 : vector<8x64xf32>
    %41 = math.exp %40 : vector<8x64xf32>
    %cst_25 = arith.constant 1.000000e+00 : f32
    %42 = vector.broadcast %cst_25 : f32 to vector<8x64xf32>
    %43 = arith.addf %42, %41 : vector<8x64xf32>
    %44 = arith.divf %42, %43 : vector<8x64xf32>
    %45 = vector.extract_strided_slice %38 {offsets = [0, 64], sizes = [8, 64], strides = [1, 1]} : vector<8x256xf32> to vector<8x64xf32>
    %46 = arith.negf %45 : vector<8x64xf32>
    %47 = math.exp %46 : vector<8x64xf32>
    %cst_26 = arith.constant 1.000000e+00 : f32
    %48 = vector.broadcast %cst_26 : f32 to vector<8x64xf32>
    %49 = arith.addf %48, %47 : vector<8x64xf32>
    %50 = arith.divf %48, %49 : vector<8x64xf32>
    %51 = vector.extract_strided_slice %38 {offsets = [0, 128], sizes = [8, 64], strides = [1, 1]} : vector<8x256xf32> to vector<8x64xf32>
    %52 = math.tanh %51 : vector<8x64xf32>
    %53 = vector.extract_strided_slice %38 {offsets = [0, 192], sizes = [8, 64], strides = [1, 1]} : vector<8x256xf32> to vector<8x64xf32>
    %54 = arith.negf %53 : vector<8x64xf32>
    %55 = math.exp %54 : vector<8x64xf32>
    %cst_27 = arith.constant 1.000000e+00 : f32
    %56 = vector.broadcast %cst_27 : f32 to vector<8x64xf32>
    %57 = arith.addf %56, %55 : vector<8x64xf32>
    %58 = arith.divf %56, %57 : vector<8x64xf32>
    %59 = arith.mulf %50, %35 : vector<8x64xf32>
    %60 = arith.mulf %44, %52 : vector<8x64xf32>
    %61 = arith.addf %59, %60 : vector<8x64xf32>
    %62 = math.tanh %61 : vector<8x64xf32>
    %63 = arith.mulf %58, %62 : vector<8x64xf32>
    %c0_28 = arith.constant 0 : index
    %c0_29 = arith.constant 0 : index
    %64 = vector.load %arg27[%c0_28, %c0_29] : memref<64x64xf32, #tpu.memory_space<vmem>>, vector<8x64xf32>
    tpu.vector_store %arg27[%c0_28, %c0_29], %63 {strides = array<i32>} : memref<64x64xf32, #tpu.memory_space<vmem>>, vector<8x64xf32>,
    %65 = vector.extract_strided_slice %32 {offsets = [8, 0], sizes = [8, 256], strides = [1, 1]} : vector<64x256xf32> to vector<8x256xf32>
    %cst_30 = arith.constant dense<0.000000e+00> : vector<8x256xf32>
    %66 = tpu.matmul %63, %33, %cst_30 {dimension_numbers = #tpu.dot_dimension_numbers<[1], [0], [0], [1], [0, 0, 1, 1], [], []>} : vector<8x64xf32>, vector<64x256xf32>, vector<8x256xf32> -> vector<8x256xf32>
    %67 = arith.addf %65, %66 : vector<8x256xf32>
    %68 = vector.extract_strided_slice %67 {offsets = [0, 0], sizes = [8, 64], strides = [1, 1]} : vector<8x256xf32> to vector<8x64xf32>
    %69 = arith.negf %68 : vector<8x64xf32>
    %70 = math.exp %69 : vector<8x64xf32>
    %cst_31 = arith.constant 1.000000e+00 : f32
    %71 = vector.broadcast %cst_31 : f32 to vector<8x64xf32>
    %72 = arith.addf %71, %70 : vector<8x64xf32>
    %73 = arith.divf %71, %72 : vector<8x64xf32>
    %74 = vector.extract_strided_slice %67 {offsets = [0, 64], sizes = [8, 64], strides = [1, 1]} : vector<8x256xf32> to vector<8x64xf32>
    %75 = arith.negf %74 : vector<8x64xf32>
    %76 = math.exp %75 : vector<8x64xf32>
    %cst_32 = arith.constant 1.000000e+00 : f32
    %77 = vector.broadcast %cst_32 : f32 to vector<8x64xf32>
    %78 = arith.addf %77, %76 : vector<8x64xf32>
    %79 = arith.divf %77, %78 : vector<8x64xf32>
    %80 = vector.extract_strided_slice %67 {offsets = [0, 128], sizes = [8, 64], strides = [1, 1]} : vector<8x256xf32> to vector<8x64xf32>
    %81 = math.tanh %80 : vector<8x64xf32>
    %82 = vector.extract_strided_slice %67 {offsets = [0, 192], sizes = [8, 64], strides = [1, 1]} : vector<8x256xf32> to vector<8x64xf32>
    %83 = arith.negf %82 : vector<8x64xf32>
    %84 = math.exp %83 : vector<8x64xf32>
    %cst_33 = arith.constant 1.000000e+00 : f32
    %85 = vector.broadcast %cst_33 : f32 to vector<8x64xf32>
    %86 = arith.addf %85, %84 : vector<8x64xf32>
    %87 = arith.divf %85, %86 : vector<8x64xf32>
    %88 = arith.mulf %79, %61 : vector<8x64xf32>
    %89 = arith.mulf %73, %81 : vector<8x64xf32>
    %90 = arith.addf %88, %89 : vector<8x64xf32>
    %91 = math.tanh %90 : vector<8x64xf32>
    %92 = arith.mulf %87, %91 : vector<8x64xf32>
    %c8 = arith.constant 8 : index
    %c0_34 = arith.constant 0 : index
    %93 = vector.load %arg27[%c8, %c0_34] : memref<64x64xf32, #tpu.memory_space<vmem>>, vector<8x64xf32>
    tpu.vector_store %arg27[%c8, %c0_34], %92 {strides = array<i32>} : memref<64x64xf32, #tpu.memory_space<vmem>>, vector<8x64xf32>,
    %94 = vector.extract_strided_slice %32 {offsets = [16, 0], sizes = [8, 256], strides = [1, 1]} : vector<64x256xf32> to vector<8x256xf32>
    %cst_35 = arith.constant dense<0.000000e+00> : vector<8x256xf32>
    %95 = tpu.matmul %92, %33, %cst_35 {dimension_numbers = #tpu.dot_dimension_numbers<[1], [0], [0], [1], [0, 0, 1, 1], [], []>} : vector<8x64xf32>, vector<64x256xf32>, vector<8x256xf32> -> vector<8x256xf32>
    %96 = arith.addf %94, %95 : vector<8x256xf32>
    %97 = vector.extract_strided_slice %96 {offsets = [0, 0], sizes = [8, 64], strides = [1, 1]} : vector<8x256xf32> to vector<8x64xf32>
    %98 = arith.negf %97 : vector<8x64xf32>
    %99 = math.exp %98 : vector<8x64xf32>
    %cst_36 = arith.constant 1.000000e+00 : f32
    %100 = vector.broadcast %cst_36 : f32 to vector<8x64xf32>
    %101 = arith.addf %100, %99 : vector<8x64xf32>
    %102 = arith.divf %100, %101 : vector<8x64xf32>
    %103 = vector.extract_strided_slice %96 {offsets = [0, 64], sizes = [8, 64], strides = [1, 1]} : vector<8x256xf32> to vector<8x64xf32>
    %104 = arith.negf %103 : vector<8x64xf32>
    %105 = math.exp %104 : vector<8x64xf32>
    %cst_37 = arith.constant 1.000000e+00 : f32
    %106 = vector.broadcast %cst_37 : f32 to vector<8x64xf32>
    %107 = arith.addf %106, %105 : vector<8x64xf32>
    %108 = arith.divf %106, %107 : vector<8x64xf32>
    %109 = vector.extract_strided_slice %96 {offsets = [0, 128], sizes = [8, 64], strides = [1, 1]} : vector<8x256xf32> to vector<8x64xf32>
    %110 = math.tanh %109 : vector<8x64xf32>
    %111 = vector.extract_strided_slice %96 {offsets = [0, 192], sizes = [8, 64], strides = [1, 1]} : vector<8x256xf32> to vector<8x64xf32>
    %112 = arith.negf %111 : vector<8x64xf32>
    %113 = math.exp %112 : vector<8x64xf32>
    %cst_38 = arith.constant 1.000000e+00 : f32
    %114 = vector.broadcast %cst_38 : f32 to vector<8x64xf32>
    %115 = arith.addf %114, %113 : vector<8x64xf32>
    %116 = arith.divf %114, %115 : vector<8x64xf32>
    %117 = arith.mulf %108, %90 : vector<8x64xf32>
    %118 = arith.mulf %102, %110 : vector<8x64xf32>
    %119 = arith.addf %117, %118 : vector<8x64xf32>
    %120 = math.tanh %119 : vector<8x64xf32>
    %121 = arith.mulf %116, %120 : vector<8x64xf32>
    %c16 = arith.constant 16 : index
    %c0_39 = arith.constant 0 : index
    %122 = vector.load %arg27[%c16, %c0_39] : memref<64x64xf32, #tpu.memory_space<vmem>>, vector<8x64xf32>
    tpu.vector_store %arg27[%c16, %c0_39], %121 {strides = array<i32>} : memref<64x64xf32, #tpu.memory_space<vmem>>, vector<8x64xf32>,
    %123 = vector.extract_strided_slice %32 {offsets = [24, 0], sizes = [8, 256], strides = [1, 1]} : vector<64x256xf32> to vector<8x256xf32>
    %cst_40 = arith.constant dense<0.000000e+00> : vector<8x256xf32>
    %124 = tpu.matmul %121, %33, %cst_40 {dimension_numbers = #tpu.dot_dimension_numbers<[1], [0], [0], [1], [0, 0, 1, 1], [], []>} : vector<8x64xf32>, vector<64x256xf32>, vector<8x256xf32> -> vector<8x256xf32>
    %125 = arith.addf %123, %124 : vector<8x256xf32>
    %126 = vector.extract_strided_slice %125 {offsets = [0, 0], sizes = [8, 64], strides = [1, 1]} : vector<8x256xf32> to vector<8x64xf32>
    %127 = arith.negf %126 : vector<8x64xf32>
    %128 = math.exp %127 : vector<8x64xf32>
    %cst_41 = arith.constant 1.000000e+00 : f32
    %129 = vector.broadcast %cst_41 : f32 to vector<8x64xf32>
    %130 = arith.addf %129, %128 : vector<8x64xf32>
    %131 = arith.divf %129, %130 : vector<8x64xf32>
    %132 = vector.extract_strided_slice %125 {offsets = [0, 64], sizes = [8, 64], strides = [1, 1]} : vector<8x256xf32> to vector<8x64xf32>
    %133 = arith.negf %132 : vector<8x64xf32>
    %134 = math.exp %133 : vector<8x64xf32>
    %cst_42 = arith.constant 1.000000e+00 : f32
    %135 = vector.broadcast %cst_42 : f32 to vector<8x64xf32>
    %136 = arith.addf %135, %134 : vector<8x64xf32>
    %137 = arith.divf %135, %136 : vector<8x64xf32>
    %138 = vector.extract_strided_slice %125 {offsets = [0, 128], sizes = [8, 64], strides = [1, 1]} : vector<8x256xf32> to vector<8x64xf32>
    %139 = math.tanh %138 : vector<8x64xf32>
    %140 = vector.extract_strided_slice %125 {offsets = [0, 192], sizes = [8, 64], strides = [1, 1]} : vector<8x256xf32> to vector<8x64xf32>
    %141 = arith.negf %140 : vector<8x64xf32>
    %142 = math.exp %141 : vector<8x64xf32>
    %cst_43 = arith.constant 1.000000e+00 : f32
    %143 = vector.broadcast %cst_43 : f32 to vector<8x64xf32>
    %144 = arith.addf %143, %142 : vector<8x64xf32>
    %145 = arith.divf %143, %144 : vector<8x64xf32>
    %146 = arith.mulf %137, %119 : vector<8x64xf32>
    %147 = arith.mulf %131, %139 : vector<8x64xf32>
    %148 = arith.addf %146, %147 : vector<8x64xf32>
    %149 = math.tanh %148 : vector<8x64xf32>
    %150 = arith.mulf %145, %149 : vector<8x64xf32>
    %c24 = arith.constant 24 : index
    %c0_44 = arith.constant 0 : index
    %151 = vector.load %arg27[%c24, %c0_44] : memref<64x64xf32, #tpu.memory_space<vmem>>, vector<8x64xf32>
    tpu.vector_store %arg27[%c24, %c0_44], %150 {strides = array<i32>} : memref<64x64xf32, #tpu.memory_space<vmem>>, vector<8x64xf32>,
    %152 = vector.extract_strided_slice %32 {offsets = [32, 0], sizes = [8, 256], strides = [1, 1]} : vector<64x256xf32> to vector<8x256xf32>
    %cst_45 = arith.constant dense<0.000000e+00> : vector<8x256xf32>
    %153 = tpu.matmul %150, %33, %cst_45 {dimension_numbers = #tpu.dot_dimension_numbers<[1], [0], [0], [1], [0, 0, 1, 1], [], []>} : vector<8x64xf32>, vector<64x256xf32>, vector<8x256xf32> -> vector<8x256xf32>
    %154 = arith.addf %152, %153 : vector<8x256xf32>
    %155 = vector.extract_strided_slice %154 {offsets = [0, 0], sizes = [8, 64], strides = [1, 1]} : vector<8x256xf32> to vector<8x64xf32>
    %156 = arith.negf %155 : vector<8x64xf32>
    %157 = math.exp %156 : vector<8x64xf32>
    %cst_46 = arith.constant 1.000000e+00 : f32
    %158 = vector.broadcast %cst_46 : f32 to vector<8x64xf32>
    %159 = arith.addf %158, %157 : vector<8x64xf32>
    %160 = arith.divf %158, %159 : vector<8x64xf32>
    %161 = vector.extract_strided_slice %154 {offsets = [0, 64], sizes = [8, 64], strides = [1, 1]} : vector<8x256xf32> to vector<8x64xf32>
    %162 = arith.negf %161 : vector<8x64xf32>
    %163 = math.exp %162 : vector<8x64xf32>
    %cst_47 = arith.constant 1.000000e+00 : f32
    %164 = vector.broadcast %cst_47 : f32 to vector<8x64xf32>
    %165 = arith.addf %164, %163 : vector<8x64xf32>
    %166 = arith.divf %164, %165 : vector<8x64xf32>
    %167 = vector.extract_strided_slice %154 {offsets = [0, 128], sizes = [8, 64], strides = [1, 1]} : vector<8x256xf32> to vector<8x64xf32>
    %168 = math.tanh %167 : vector<8x64xf32>
    %169 = vector.extract_strided_slice %154 {offsets = [0, 192], sizes = [8, 64], strides = [1, 1]} : vector<8x256xf32> to vector<8x64xf32>
    %170 = arith.negf %169 : vector<8x64xf32>
    %171 = math.exp %170 : vector<8x64xf32>
    %cst_48 = arith.constant 1.000000e+00 : f32
    %172 = vector.broadcast %cst_48 : f32 to vector<8x64xf32>
    %173 = arith.addf %172, %171 : vector<8x64xf32>
    %174 = arith.divf %172, %173 : vector<8x64xf32>
    %175 = arith.mulf %166, %148 : vector<8x64xf32>
    %176 = arith.mulf %160, %168 : vector<8x64xf32>
    %177 = arith.addf %175, %176 : vector<8x64xf32>
    %178 = math.tanh %177 : vector<8x64xf32>
    %179 = arith.mulf %174, %178 : vector<8x64xf32>
    %c32 = arith.constant 32 : index
    %c0_49 = arith.constant 0 : index
    %180 = vector.load %arg27[%c32, %c0_49] : memref<64x64xf32, #tpu.memory_space<vmem>>, vector<8x64xf32>
    tpu.vector_store %arg27[%c32, %c0_49], %179 {strides = array<i32>} : memref<64x64xf32, #tpu.memory_space<vmem>>, vector<8x64xf32>,
    %181 = vector.extract_strided_slice %32 {offsets = [40, 0], sizes = [8, 256], strides = [1, 1]} : vector<64x256xf32> to vector<8x256xf32>
    %cst_50 = arith.constant dense<0.000000e+00> : vector<8x256xf32>
    %182 = tpu.matmul %179, %33, %cst_50 {dimension_numbers = #tpu.dot_dimension_numbers<[1], [0], [0], [1], [0, 0, 1, 1], [], []>} : vector<8x64xf32>, vector<64x256xf32>, vector<8x256xf32> -> vector<8x256xf32>
    %183 = arith.addf %181, %182 : vector<8x256xf32>
    %184 = vector.extract_strided_slice %183 {offsets = [0, 0], sizes = [8, 64], strides = [1, 1]} : vector<8x256xf32> to vector<8x64xf32>
    %185 = arith.negf %184 : vector<8x64xf32>
    %186 = math.exp %185 : vector<8x64xf32>
    %cst_51 = arith.constant 1.000000e+00 : f32
    %187 = vector.broadcast %cst_51 : f32 to vector<8x64xf32>
    %188 = arith.addf %187, %186 : vector<8x64xf32>
    %189 = arith.divf %187, %188 : vector<8x64xf32>
    %190 = vector.extract_strided_slice %183 {offsets = [0, 64], sizes = [8, 64], strides = [1, 1]} : vector<8x256xf32> to vector<8x64xf32>
    %191 = arith.negf %190 : vector<8x64xf32>
    %192 = math.exp %191 : vector<8x64xf32>
    %cst_52 = arith.constant 1.000000e+00 : f32
    %193 = vector.broadcast %cst_52 : f32 to vector<8x64xf32>
    %194 = arith.addf %193, %192 : vector<8x64xf32>
    %195 = arith.divf %193, %194 : vector<8x64xf32>
    %196 = vector.extract_strided_slice %183 {offsets = [0, 128], sizes = [8, 64], strides = [1, 1]} : vector<8x256xf32> to vector<8x64xf32>
    %197 = math.tanh %196 : vector<8x64xf32>
    %198 = vector.extract_strided_slice %183 {offsets = [0, 192], sizes = [8, 64], strides = [1, 1]} : vector<8x256xf32> to vector<8x64xf32>
    %199 = arith.negf %198 : vector<8x64xf32>
    %200 = math.exp %199 : vector<8x64xf32>
    %cst_53 = arith.constant 1.000000e+00 : f32
    %201 = vector.broadcast %cst_53 : f32 to vector<8x64xf32>
    %202 = arith.addf %201, %200 : vector<8x64xf32>
    %203 = arith.divf %201, %202 : vector<8x64xf32>
    %204 = arith.mulf %195, %177 : vector<8x64xf32>
    %205 = arith.mulf %189, %197 : vector<8x64xf32>
    %206 = arith.addf %204, %205 : vector<8x64xf32>
    %207 = math.tanh %206 : vector<8x64xf32>
    %208 = arith.mulf %203, %207 : vector<8x64xf32>
    %c40 = arith.constant 40 : index
    %c0_54 = arith.constant 0 : index
    %209 = vector.load %arg27[%c40, %c0_54] : memref<64x64xf32, #tpu.memory_space<vmem>>, vector<8x64xf32>
    tpu.vector_store %arg27[%c40, %c0_54], %208 {strides = array<i32>} : memref<64x64xf32, #tpu.memory_space<vmem>>, vector<8x64xf32>,
    %210 = vector.extract_strided_slice %32 {offsets = [48, 0], sizes = [8, 256], strides = [1, 1]} : vector<64x256xf32> to vector<8x256xf32>
    %cst_55 = arith.constant dense<0.000000e+00> : vector<8x256xf32>
    %211 = tpu.matmul %208, %33, %cst_55 {dimension_numbers = #tpu.dot_dimension_numbers<[1], [0], [0], [1], [0, 0, 1, 1], [], []>} : vector<8x64xf32>, vector<64x256xf32>, vector<8x256xf32> -> vector<8x256xf32>
    %212 = arith.addf %210, %211 : vector<8x256xf32>
    %213 = vector.extract_strided_slice %212 {offsets = [0, 0], sizes = [8, 64], strides = [1, 1]} : vector<8x256xf32> to vector<8x64xf32>
    %214 = arith.negf %213 : vector<8x64xf32>
    %215 = math.exp %214 : vector<8x64xf32>
    %cst_56 = arith.constant 1.000000e+00 : f32
    %216 = vector.broadcast %cst_56 : f32 to vector<8x64xf32>
    %217 = arith.addf %216, %215 : vector<8x64xf32>
    %218 = arith.divf %216, %217 : vector<8x64xf32>
    %219 = vector.extract_strided_slice %212 {offsets = [0, 64], sizes = [8, 64], strides = [1, 1]} : vector<8x256xf32> to vector<8x64xf32>
    %220 = arith.negf %219 : vector<8x64xf32>
    %221 = math.exp %220 : vector<8x64xf32>
    %cst_57 = arith.constant 1.000000e+00 : f32
    %222 = vector.broadcast %cst_57 : f32 to vector<8x64xf32>
    %223 = arith.addf %222, %221 : vector<8x64xf32>
    %224 = arith.divf %222, %223 : vector<8x64xf32>
    %225 = vector.extract_strided_slice %212 {offsets = [0, 128], sizes = [8, 64], strides = [1, 1]} : vector<8x256xf32> to vector<8x64xf32>
    %226 = math.tanh %225 : vector<8x64xf32>
    %227 = vector.extract_strided_slice %212 {offsets = [0, 192], sizes = [8, 64], strides = [1, 1]} : vector<8x256xf32> to vector<8x64xf32>
    %228 = arith.negf %227 : vector<8x64xf32>
    %229 = math.exp %228 : vector<8x64xf32>
    %cst_58 = arith.constant 1.000000e+00 : f32
    %230 = vector.broadcast %cst_58 : f32 to vector<8x64xf32>
    %231 = arith.addf %230, %229 : vector<8x64xf32>
    %232 = arith.divf %230, %231 : vector<8x64xf32>
    %233 = arith.mulf %224, %206 : vector<8x64xf32>
    %234 = arith.mulf %218, %226 : vector<8x64xf32>
    %235 = arith.addf %233, %234 : vector<8x64xf32>
    %236 = math.tanh %235 : vector<8x64xf32>
    %237 = arith.mulf %232, %236 : vector<8x64xf32>
    %c48 = arith.constant 48 : index
    %c0_59 = arith.constant 0 : index
    %238 = vector.load %arg27[%c48, %c0_59] : memref<64x64xf32, #tpu.memory_space<vmem>>, vector<8x64xf32>
    tpu.vector_store %arg27[%c48, %c0_59], %237 {strides = array<i32>} : memref<64x64xf32, #tpu.memory_space<vmem>>, vector<8x64xf32>,
    %239 = vector.extract_strided_slice %32 {offsets = [56, 0], sizes = [8, 256], strides = [1, 1]} : vector<64x256xf32> to vector<8x256xf32>
    %cst_60 = arith.constant dense<0.000000e+00> : vector<8x256xf32>
    %240 = tpu.matmul %237, %33, %cst_60 {dimension_numbers = #tpu.dot_dimension_numbers<[1], [0], [0], [1], [0, 0, 1, 1], [], []>} : vector<8x64xf32>, vector<64x256xf32>, vector<8x256xf32> -> vector<8x256xf32>
    %241 = arith.addf %239, %240 : vector<8x256xf32>
    %242 = vector.extract_strided_slice %241 {offsets = [0, 0], sizes = [8, 64], strides = [1, 1]} : vector<8x256xf32> to vector<8x64xf32>
    %243 = arith.negf %242 : vector<8x64xf32>
    %244 = math.exp %243 : vector<8x64xf32>
    %cst_61 = arith.constant 1.000000e+00 : f32
    %245 = vector.broadcast %cst_61 : f32 to vector<8x64xf32>
    %246 = arith.addf %245, %244 : vector<8x64xf32>
    %247 = arith.divf %245, %246 : vector<8x64xf32>
    %248 = vector.extract_strided_slice %241 {offsets = [0, 64], sizes = [8, 64], strides = [1, 1]} : vector<8x256xf32> to vector<8x64xf32>
    %249 = arith.negf %248 : vector<8x64xf32>
    %250 = math.exp %249 : vector<8x64xf32>
    %cst_62 = arith.constant 1.000000e+00 : f32
    %251 = vector.broadcast %cst_62 : f32 to vector<8x64xf32>
    %252 = arith.addf %251, %250 : vector<8x64xf32>
    %253 = arith.divf %251, %252 : vector<8x64xf32>
    %254 = vector.extract_strided_slice %241 {offsets = [0, 128], sizes = [8, 64], strides = [1, 1]} : vector<8x256xf32> to vector<8x64xf32>
    %255 = math.tanh %254 : vector<8x64xf32>
    %256 = vector.extract_strided_slice %241 {offsets = [0, 192], sizes = [8, 64], strides = [1, 1]} : vector<8x256xf32> to vector<8x64xf32>
    %257 = arith.negf %256 : vector<8x64xf32>
    %258 = math.exp %257 : vector<8x64xf32>
    %cst_63 = arith.constant 1.000000e+00 : f32
    %259 = vector.broadcast %cst_63 : f32 to vector<8x64xf32>
    %260 = arith.addf %259, %258 : vector<8x64xf32>
    %261 = arith.divf %259, %260 : vector<8x64xf32>
    %262 = arith.mulf %253, %235 : vector<8x64xf32>
    %263 = arith.mulf %247, %255 : vector<8x64xf32>
    %264 = arith.addf %262, %263 : vector<8x64xf32>
    %265 = math.tanh %264 : vector<8x64xf32>
    %266 = arith.mulf %261, %265 : vector<8x64xf32>
    %c56 = arith.constant 56 : index
    %c0_64 = arith.constant 0 : index
    %267 = vector.load %arg27[%c56, %c0_64] : memref<64x64xf32, #tpu.memory_space<vmem>>, vector<8x64xf32>
    tpu.vector_store %arg27[%c56, %c0_64], %266 {strides = array<i32>} : memref<64x64xf32, #tpu.memory_space<vmem>>, vector<8x64xf32>,
    %c0_65 = arith.constant 0 : index
    %c0_66 = arith.constant 0 : index
    %268 = vector.load %arg27[%c0_65, %c0_66] : memref<64x64xf32, #tpu.memory_space<vmem>>, vector<64x64xf32>
    %c0_67 = arith.constant 0 : index
    %c0_68 = arith.constant 0 : index
    %269 = vector.load %arg7[%c0_67, %c0_68] : memref<64x256xf32, #tpu.memory_space<vmem>>, vector<64x256xf32>
    %cst_69 = arith.constant dense<0.000000e+00> : vector<64x256xf32>
    %270 = tpu.matmul %268, %269, %cst_69 {dimension_numbers = #tpu.dot_dimension_numbers<[1], [0], [0], [1], [0, 0, 1, 1], [], []>} : vector<64x64xf32>, vector<64x256xf32>, vector<64x256xf32> -> vector<64x256xf32>
    %c0_70 = arith.constant 0 : index
    %c0_71 = arith.constant 0 : index
    %271 = vector.load %arg9[%c0_70, %c0_71] : memref<1x256xf32, #tpu.memory_space<vmem>>, vector<1x256xf32>
    %272 = vector.broadcast %271 : vector<1x256xf32> to vector<64x256xf32>
    %273 = arith.addf %270, %272 : vector<64x256xf32>
    %c0_72 = arith.constant 0 : index
    %c0_73 = arith.constant 0 : index
    %274 = vector.load %arg8[%c0_72, %c0_73] : memref<64x256xf32, #tpu.memory_space<vmem>>, vector<64x256xf32>
    %cst_74 = arith.constant 0.000000e+00 : f32
    %275 = vector.broadcast %cst_74 : f32 to vector<8x64xf32>
    %cst_75 = arith.constant 0.000000e+00 : f32
    %276 = vector.broadcast %cst_75 : f32 to vector<8x64xf32>
    %277 = vector.extract_strided_slice %273 {offsets = [0, 0], sizes = [8, 256], strides = [1, 1]} : vector<64x256xf32> to vector<8x256xf32>
    %cst_76 = arith.constant dense<0.000000e+00> : vector<8x256xf32>
    %278 = tpu.matmul %275, %274, %cst_76 {dimension_numbers = #tpu.dot_dimension_numbers<[1], [0], [0], [1], [0, 0, 1, 1], [], []>} : vector<8x64xf32>, vector<64x256xf32>, vector<8x256xf32> -> vector<8x256xf32>
    %279 = arith.addf %277, %278 : vector<8x256xf32>
    %280 = vector.extract_strided_slice %279 {offsets = [0, 0], sizes = [8, 64], strides = [1, 1]} : vector<8x256xf32> to vector<8x64xf32>
    %281 = arith.negf %280 : vector<8x64xf32>
    %282 = math.exp %281 : vector<8x64xf32>
    %cst_77 = arith.constant 1.000000e+00 : f32
    %283 = vector.broadcast %cst_77 : f32 to vector<8x64xf32>
    %284 = arith.addf %283, %282 : vector<8x64xf32>
    %285 = arith.divf %283, %284 : vector<8x64xf32>
    %286 = vector.extract_strided_slice %279 {offsets = [0, 64], sizes = [8, 64], strides = [1, 1]} : vector<8x256xf32> to vector<8x64xf32>
    %287 = arith.negf %286 : vector<8x64xf32>
    %288 = math.exp %287 : vector<8x64xf32>
    %cst_78 = arith.constant 1.000000e+00 : f32
    %289 = vector.broadcast %cst_78 : f32 to vector<8x64xf32>
    %290 = arith.addf %289, %288 : vector<8x64xf32>
    %291 = arith.divf %289, %290 : vector<8x64xf32>
    %292 = vector.extract_strided_slice %279 {offsets = [0, 128], sizes = [8, 64], strides = [1, 1]} : vector<8x256xf32> to vector<8x64xf32>
    %293 = math.tanh %292 : vector<8x64xf32>
    %294 = vector.extract_strided_slice %279 {offsets = [0, 192], sizes = [8, 64], strides = [1, 1]} : vector<8x256xf32> to vector<8x64xf32>
    %295 = arith.negf %294 : vector<8x64xf32>
    %296 = math.exp %295 : vector<8x64xf32>
    %cst_79 = arith.constant 1.000000e+00 : f32
    %297 = vector.broadcast %cst_79 : f32 to vector<8x64xf32>
    %298 = arith.addf %297, %296 : vector<8x64xf32>
    %299 = arith.divf %297, %298 : vector<8x64xf32>
    %300 = arith.mulf %291, %276 : vector<8x64xf32>
    %301 = arith.mulf %285, %293 : vector<8x64xf32>
    %302 = arith.addf %300, %301 : vector<8x64xf32>
    %303 = math.tanh %302 : vector<8x64xf32>
    %304 = arith.mulf %299, %303 : vector<8x64xf32>
    %c0_80 = arith.constant 0 : index
    %c0_81 = arith.constant 0 : index
    %305 = vector.load %arg28[%c0_80, %c0_81] : memref<64x64xf32, #tpu.memory_space<vmem>>, vector<8x64xf32>
    tpu.vector_store %arg28[%c0_80, %c0_81], %304 {strides = array<i32>} : memref<64x64xf32, #tpu.memory_space<vmem>>, vector<8x64xf32>,
    %306 = vector.extract_strided_slice %273 {offsets = [8, 0], sizes = [8, 256], strides = [1, 1]} : vector<64x256xf32> to vector<8x256xf32>
    %cst_82 = arith.constant dense<0.000000e+00> : vector<8x256xf32>
    %307 = tpu.matmul %304, %274, %cst_82 {dimension_numbers = #tpu.dot_dimension_numbers<[1], [0], [0], [1], [0, 0, 1, 1], [], []>} : vector<8x64xf32>, vector<64x256xf32>, vector<8x256xf32> -> vector<8x256xf32>
    %308 = arith.addf %306, %307 : vector<8x256xf32>
    %309 = vector.extract_strided_slice %308 {offsets = [0, 0], sizes = [8, 64], strides = [1, 1]} : vector<8x256xf32> to vector<8x64xf32>
    %310 = arith.negf %309 : vector<8x64xf32>
    %311 = math.exp %310 : vector<8x64xf32>
    %cst_83 = arith.constant 1.000000e+00 : f32
    %312 = vector.broadcast %cst_83 : f32 to vector<8x64xf32>
    %313 = arith.addf %312, %311 : vector<8x64xf32>
    %314 = arith.divf %312, %313 : vector<8x64xf32>
    %315 = vector.extract_strided_slice %308 {offsets = [0, 64], sizes = [8, 64], strides = [1, 1]} : vector<8x256xf32> to vector<8x64xf32>
    %316 = arith.negf %315 : vector<8x64xf32>
    %317 = math.exp %316 : vector<8x64xf32>
    %cst_84 = arith.constant 1.000000e+00 : f32
    %318 = vector.broadcast %cst_84 : f32 to vector<8x64xf32>
    %319 = arith.addf %318, %317 : vector<8x64xf32>
    %320 = arith.divf %318, %319 : vector<8x64xf32>
    %321 = vector.extract_strided_slice %308 {offsets = [0, 128], sizes = [8, 64], strides = [1, 1]} : vector<8x256xf32> to vector<8x64xf32>
    %322 = math.tanh %321 : vector<8x64xf32>
    %323 = vector.extract_strided_slice %308 {offsets = [0, 192], sizes = [8, 64], strides = [1, 1]} : vector<8x256xf32> to vector<8x64xf32>
    %324 = arith.negf %323 : vector<8x64xf32>
    %325 = math.exp %324 : vector<8x64xf32>
    %cst_85 = arith.constant 1.000000e+00 : f32
    %326 = vector.broadcast %cst_85 : f32 to vector<8x64xf32>
    %327 = arith.addf %326, %325 : vector<8x64xf32>
    %328 = arith.divf %326, %327 : vector<8x64xf32>
    %329 = arith.mulf %320, %302 : vector<8x64xf32>
    %330 = arith.mulf %314, %322 : vector<8x64xf32>
    %331 = arith.addf %329, %330 : vector<8x64xf32>
    %332 = math.tanh %331 : vector<8x64xf32>
    %333 = arith.mulf %328, %332 : vector<8x64xf32>
    %c8_86 = arith.constant 8 : index
    %c0_87 = arith.constant 0 : index
    %334 = vector.load %arg28[%c8_86, %c0_87] : memref<64x64xf32, #tpu.memory_space<vmem>>, vector<8x64xf32>
    tpu.vector_store %arg28[%c8_86, %c0_87], %333 {strides = array<i32>} : memref<64x64xf32, #tpu.memory_space<vmem>>, vector<8x64xf32>,
    %335 = vector.extract_strided_slice %273 {offsets = [16, 0], sizes = [8, 256], strides = [1, 1]} : vector<64x256xf32> to vector<8x256xf32>
    %cst_88 = arith.constant dense<0.000000e+00> : vector<8x256xf32>
    %336 = tpu.matmul %333, %274, %cst_88 {dimension_numbers = #tpu.dot_dimension_numbers<[1], [0], [0], [1], [0, 0, 1, 1], [], []>} : vector<8x64xf32>, vector<64x256xf32>, vector<8x256xf32> -> vector<8x256xf32>
    %337 = arith.addf %335, %336 : vector<8x256xf32>
    %338 = vector.extract_strided_slice %337 {offsets = [0, 0], sizes = [8, 64], strides = [1, 1]} : vector<8x256xf32> to vector<8x64xf32>
    %339 = arith.negf %338 : vector<8x64xf32>
    %340 = math.exp %339 : vector<8x64xf32>
    %cst_89 = arith.constant 1.000000e+00 : f32
    %341 = vector.broadcast %cst_89 : f32 to vector<8x64xf32>
    %342 = arith.addf %341, %340 : vector<8x64xf32>
    %343 = arith.divf %341, %342 : vector<8x64xf32>
    %344 = vector.extract_strided_slice %337 {offsets = [0, 64], sizes = [8, 64], strides = [1, 1]} : vector<8x256xf32> to vector<8x64xf32>
    %345 = arith.negf %344 : vector<8x64xf32>
    %346 = math.exp %345 : vector<8x64xf32>
    %cst_90 = arith.constant 1.000000e+00 : f32
    %347 = vector.broadcast %cst_90 : f32 to vector<8x64xf32>
    %348 = arith.addf %347, %346 : vector<8x64xf32>
    %349 = arith.divf %347, %348 : vector<8x64xf32>
    %350 = vector.extract_strided_slice %337 {offsets = [0, 128], sizes = [8, 64], strides = [1, 1]} : vector<8x256xf32> to vector<8x64xf32>
    %351 = math.tanh %350 : vector<8x64xf32>
    %352 = vector.extract_strided_slice %337 {offsets = [0, 192], sizes = [8, 64], strides = [1, 1]} : vector<8x256xf32> to vector<8x64xf32>
    %353 = arith.negf %352 : vector<8x64xf32>
    %354 = math.exp %353 : vector<8x64xf32>
    %cst_91 = arith.constant 1.000000e+00 : f32
    %355 = vector.broadcast %cst_91 : f32 to vector<8x64xf32>
    %356 = arith.addf %355, %354 : vector<8x64xf32>
    %357 = arith.divf %355, %356 : vector<8x64xf32>
    %358 = arith.mulf %349, %331 : vector<8x64xf32>
    %359 = arith.mulf %343, %351 : vector<8x64xf32>
    %360 = arith.addf %358, %359 : vector<8x64xf32>
    %361 = math.tanh %360 : vector<8x64xf32>
    %362 = arith.mulf %357, %361 : vector<8x64xf32>
    %c16_92 = arith.constant 16 : index
    %c0_93 = arith.constant 0 : index
    %363 = vector.load %arg28[%c16_92, %c0_93] : memref<64x64xf32, #tpu.memory_space<vmem>>, vector<8x64xf32>
    tpu.vector_store %arg28[%c16_92, %c0_93], %362 {strides = array<i32>} : memref<64x64xf32, #tpu.memory_space<vmem>>, vector<8x64xf32>,
    %364 = vector.extract_strided_slice %273 {offsets = [24, 0], sizes = [8, 256], strides = [1, 1]} : vector<64x256xf32> to vector<8x256xf32>
    %cst_94 = arith.constant dense<0.000000e+00> : vector<8x256xf32>
    %365 = tpu.matmul %362, %274, %cst_94 {dimension_numbers = #tpu.dot_dimension_numbers<[1], [0], [0], [1], [0, 0, 1, 1], [], []>} : vector<8x64xf32>, vector<64x256xf32>, vector<8x256xf32> -> vector<8x256xf32>
    %366 = arith.addf %364, %365 : vector<8x256xf32>
    %367 = vector.extract_strided_slice %366 {offsets = [0, 0], sizes = [8, 64], strides = [1, 1]} : vector<8x256xf32> to vector<8x64xf32>
    %368 = arith.negf %367 : vector<8x64xf32>
    %369 = math.exp %368 : vector<8x64xf32>
    %cst_95 = arith.constant 1.000000e+00 : f32
    %370 = vector.broadcast %cst_95 : f32 to vector<8x64xf32>
    %371 = arith.addf %370, %369 : vector<8x64xf32>
    %372 = arith.divf %370, %371 : vector<8x64xf32>
    %373 = vector.extract_strided_slice %366 {offsets = [0, 64], sizes = [8, 64], strides = [1, 1]} : vector<8x256xf32> to vector<8x64xf32>
    %374 = arith.negf %373 : vector<8x64xf32>
    %375 = math.exp %374 : vector<8x64xf32>
    %cst_96 = arith.constant 1.000000e+00 : f32
    %376 = vector.broadcast %cst_96 : f32 to vector<8x64xf32>
    %377 = arith.addf %376, %375 : vector<8x64xf32>
    %378 = arith.divf %376, %377 : vector<8x64xf32>
    %379 = vector.extract_strided_slice %366 {offsets = [0, 128], sizes = [8, 64], strides = [1, 1]} : vector<8x256xf32> to vector<8x64xf32>
    %380 = math.tanh %379 : vector<8x64xf32>
    %381 = vector.extract_strided_slice %366 {offsets = [0, 192], sizes = [8, 64], strides = [1, 1]} : vector<8x256xf32> to vector<8x64xf32>
    %382 = arith.negf %381 : vector<8x64xf32>
    %383 = math.exp %382 : vector<8x64xf32>
    %cst_97 = arith.constant 1.000000e+00 : f32
    %384 = vector.broadcast %cst_97 : f32 to vector<8x64xf32>
    %385 = arith.addf %384, %383 : vector<8x64xf32>
    %386 = arith.divf %384, %385 : vector<8x64xf32>
    %387 = arith.mulf %378, %360 : vector<8x64xf32>
    %388 = arith.mulf %372, %380 : vector<8x64xf32>
    %389 = arith.addf %387, %388 : vector<8x64xf32>
    %390 = math.tanh %389 : vector<8x64xf32>
    %391 = arith.mulf %386, %390 : vector<8x64xf32>
    %c24_98 = arith.constant 24 : index
    %c0_99 = arith.constant 0 : index
    %392 = vector.load %arg28[%c24_98, %c0_99] : memref<64x64xf32, #tpu.memory_space<vmem>>, vector<8x64xf32>
    tpu.vector_store %arg28[%c24_98, %c0_99], %391 {strides = array<i32>} : memref<64x64xf32, #tpu.memory_space<vmem>>, vector<8x64xf32>,
    %393 = vector.extract_strided_slice %273 {offsets = [32, 0], sizes = [8, 256], strides = [1, 1]} : vector<64x256xf32> to vector<8x256xf32>
    %cst_100 = arith.constant dense<0.000000e+00> : vector<8x256xf32>
    %394 = tpu.matmul %391, %274, %cst_100 {dimension_numbers = #tpu.dot_dimension_numbers<[1], [0], [0], [1], [0, 0, 1, 1], [], []>} : vector<8x64xf32>, vector<64x256xf32>, vector<8x256xf32> -> vector<8x256xf32>
    %395 = arith.addf %393, %394 : vector<8x256xf32>
    %396 = vector.extract_strided_slice %395 {offsets = [0, 0], sizes = [8, 64], strides = [1, 1]} : vector<8x256xf32> to vector<8x64xf32>
    %397 = arith.negf %396 : vector<8x64xf32>
    %398 = math.exp %397 : vector<8x64xf32>
    %cst_101 = arith.constant 1.000000e+00 : f32
    %399 = vector.broadcast %cst_101 : f32 to vector<8x64xf32>
    %400 = arith.addf %399, %398 : vector<8x64xf32>
    %401 = arith.divf %399, %400 : vector<8x64xf32>
    %402 = vector.extract_strided_slice %395 {offsets = [0, 64], sizes = [8, 64], strides = [1, 1]} : vector<8x256xf32> to vector<8x64xf32>
    %403 = arith.negf %402 : vector<8x64xf32>
    %404 = math.exp %403 : vector<8x64xf32>
    %cst_102 = arith.constant 1.000000e+00 : f32
    %405 = vector.broadcast %cst_102 : f32 to vector<8x64xf32>
    %406 = arith.addf %405, %404 : vector<8x64xf32>
    %407 = arith.divf %405, %406 : vector<8x64xf32>
    %408 = vector.extract_strided_slice %395 {offsets = [0, 128], sizes = [8, 64], strides = [1, 1]} : vector<8x256xf32> to vector<8x64xf32>
    %409 = math.tanh %408 : vector<8x64xf32>
    %410 = vector.extract_strided_slice %395 {offsets = [0, 192], sizes = [8, 64], strides = [1, 1]} : vector<8x256xf32> to vector<8x64xf32>
    %411 = arith.negf %410 : vector<8x64xf32>
    %412 = math.exp %411 : vector<8x64xf32>
    %cst_103 = arith.constant 1.000000e+00 : f32
    %413 = vector.broadcast %cst_103 : f32 to vector<8x64xf32>
    %414 = arith.addf %413, %412 : vector<8x64xf32>
    %415 = arith.divf %413, %414 : vector<8x64xf32>
    %416 = arith.mulf %407, %389 : vector<8x64xf32>
    %417 = arith.mulf %401, %409 : vector<8x64xf32>
    %418 = arith.addf %416, %417 : vector<8x64xf32>
    %419 = math.tanh %418 : vector<8x64xf32>
    %420 = arith.mulf %415, %419 : vector<8x64xf32>
    %c32_104 = arith.constant 32 : index
    %c0_105 = arith.constant 0 : index
    %421 = vector.load %arg28[%c32_104, %c0_105] : memref<64x64xf32, #tpu.memory_space<vmem>>, vector<8x64xf32>
    tpu.vector_store %arg28[%c32_104, %c0_105], %420 {strides = array<i32>} : memref<64x64xf32, #tpu.memory_space<vmem>>, vector<8x64xf32>,
    %422 = vector.extract_strided_slice %273 {offsets = [40, 0], sizes = [8, 256], strides = [1, 1]} : vector<64x256xf32> to vector<8x256xf32>
    %cst_106 = arith.constant dense<0.000000e+00> : vector<8x256xf32>
    %423 = tpu.matmul %420, %274, %cst_106 {dimension_numbers = #tpu.dot_dimension_numbers<[1], [0], [0], [1], [0, 0, 1, 1], [], []>} : vector<8x64xf32>, vector<64x256xf32>, vector<8x256xf32> -> vector<8x256xf32>
    %424 = arith.addf %422, %423 : vector<8x256xf32>
    %425 = vector.extract_strided_slice %424 {offsets = [0, 0], sizes = [8, 64], strides = [1, 1]} : vector<8x256xf32> to vector<8x64xf32>
    %426 = arith.negf %425 : vector<8x64xf32>
    %427 = math.exp %426 : vector<8x64xf32>
    %cst_107 = arith.constant 1.000000e+00 : f32
    %428 = vector.broadcast %cst_107 : f32 to vector<8x64xf32>
    %429 = arith.addf %428, %427 : vector<8x64xf32>
    %430 = arith.divf %428, %429 : vector<8x64xf32>
    %431 = vector.extract_strided_slice %424 {offsets = [0, 64], sizes = [8, 64], strides = [1, 1]} : vector<8x256xf32> to vector<8x64xf32>
    %432 = arith.negf %431 : vector<8x64xf32>
    %433 = math.exp %432 : vector<8x64xf32>
    %cst_108 = arith.constant 1.000000e+00 : f32
    %434 = vector.broadcast %cst_108 : f32 to vector<8x64xf32>
    %435 = arith.addf %434, %433 : vector<8x64xf32>
    %436 = arith.divf %434, %435 : vector<8x64xf32>
    %437 = vector.extract_strided_slice %424 {offsets = [0, 128], sizes = [8, 64], strides = [1, 1]} : vector<8x256xf32> to vector<8x64xf32>
    %438 = math.tanh %437 : vector<8x64xf32>
    %439 = vector.extract_strided_slice %424 {offsets = [0, 192], sizes = [8, 64], strides = [1, 1]} : vector<8x256xf32> to vector<8x64xf32>
    %440 = arith.negf %439 : vector<8x64xf32>
    %441 = math.exp %440 : vector<8x64xf32>
    %cst_109 = arith.constant 1.000000e+00 : f32
    %442 = vector.broadcast %cst_109 : f32 to vector<8x64xf32>
    %443 = arith.addf %442, %441 : vector<8x64xf32>
    %444 = arith.divf %442, %443 : vector<8x64xf32>
    %445 = arith.mulf %436, %418 : vector<8x64xf32>
    %446 = arith.mulf %430, %438 : vector<8x64xf32>
    %447 = arith.addf %445, %446 : vector<8x64xf32>
    %448 = math.tanh %447 : vector<8x64xf32>
    %449 = arith.mulf %444, %448 : vector<8x64xf32>
    %c40_110 = arith.constant 40 : index
    %c0_111 = arith.constant 0 : index
    %450 = vector.load %arg28[%c40_110, %c0_111] : memref<64x64xf32, #tpu.memory_space<vmem>>, vector<8x64xf32>
    tpu.vector_store %arg28[%c40_110, %c0_111], %449 {strides = array<i32>} : memref<64x64xf32, #tpu.memory_space<vmem>>, vector<8x64xf32>,
    %451 = vector.extract_strided_slice %273 {offsets = [48, 0], sizes = [8, 256], strides = [1, 1]} : vector<64x256xf32> to vector<8x256xf32>
    %cst_112 = arith.constant dense<0.000000e+00> : vector<8x256xf32>
    %452 = tpu.matmul %449, %274, %cst_112 {dimension_numbers = #tpu.dot_dimension_numbers<[1], [0], [0], [1], [0, 0, 1, 1], [], []>} : vector<8x64xf32>, vector<64x256xf32>, vector<8x256xf32> -> vector<8x256xf32>
    %453 = arith.addf %451, %452 : vector<8x256xf32>
    %454 = vector.extract_strided_slice %453 {offsets = [0, 0], sizes = [8, 64], strides = [1, 1]} : vector<8x256xf32> to vector<8x64xf32>
    %455 = arith.negf %454 : vector<8x64xf32>
    %456 = math.exp %455 : vector<8x64xf32>
    %cst_113 = arith.constant 1.000000e+00 : f32
    %457 = vector.broadcast %cst_113 : f32 to vector<8x64xf32>
    %458 = arith.addf %457, %456 : vector<8x64xf32>
    %459 = arith.divf %457, %458 : vector<8x64xf32>
    %460 = vector.extract_strided_slice %453 {offsets = [0, 64], sizes = [8, 64], strides = [1, 1]} : vector<8x256xf32> to vector<8x64xf32>
    %461 = arith.negf %460 : vector<8x64xf32>
    %462 = math.exp %461 : vector<8x64xf32>
    %cst_114 = arith.constant 1.000000e+00 : f32
    %463 = vector.broadcast %cst_114 : f32 to vector<8x64xf32>
    %464 = arith.addf %463, %462 : vector<8x64xf32>
    %465 = arith.divf %463, %464 : vector<8x64xf32>
    %466 = vector.extract_strided_slice %453 {offsets = [0, 128], sizes = [8, 64], strides = [1, 1]} : vector<8x256xf32> to vector<8x64xf32>
    %467 = math.tanh %466 : vector<8x64xf32>
    %468 = vector.extract_strided_slice %453 {offsets = [0, 192], sizes = [8, 64], strides = [1, 1]} : vector<8x256xf32> to vector<8x64xf32>
    %469 = arith.negf %468 : vector<8x64xf32>
    %470 = math.exp %469 : vector<8x64xf32>
    %cst_115 = arith.constant 1.000000e+00 : f32
    %471 = vector.broadcast %cst_115 : f32 to vector<8x64xf32>
    %472 = arith.addf %471, %470 : vector<8x64xf32>
    %473 = arith.divf %471, %472 : vector<8x64xf32>
    %474 = arith.mulf %465, %447 : vector<8x64xf32>
    %475 = arith.mulf %459, %467 : vector<8x64xf32>
    %476 = arith.addf %474, %475 : vector<8x64xf32>
    %477 = math.tanh %476 : vector<8x64xf32>
    %478 = arith.mulf %473, %477 : vector<8x64xf32>
    %c48_116 = arith.constant 48 : index
    %c0_117 = arith.constant 0 : index
    %479 = vector.load %arg28[%c48_116, %c0_117] : memref<64x64xf32, #tpu.memory_space<vmem>>, vector<8x64xf32>
    tpu.vector_store %arg28[%c48_116, %c0_117], %478 {strides = array<i32>} : memref<64x64xf32, #tpu.memory_space<vmem>>, vector<8x64xf32>,
    %480 = vector.extract_strided_slice %273 {offsets = [56, 0], sizes = [8, 256], strides = [1, 1]} : vector<64x256xf32> to vector<8x256xf32>
    %cst_118 = arith.constant dense<0.000000e+00> : vector<8x256xf32>
    %481 = tpu.matmul %478, %274, %cst_118 {dimension_numbers = #tpu.dot_dimension_numbers<[1], [0], [0], [1], [0, 0, 1, 1], [], []>} : vector<8x64xf32>, vector<64x256xf32>, vector<8x256xf32> -> vector<8x256xf32>
    %482 = arith.addf %480, %481 : vector<8x256xf32>
    %483 = vector.extract_strided_slice %482 {offsets = [0, 0], sizes = [8, 64], strides = [1, 1]} : vector<8x256xf32> to vector<8x64xf32>
    %484 = arith.negf %483 : vector<8x64xf32>
    %485 = math.exp %484 : vector<8x64xf32>
    %cst_119 = arith.constant 1.000000e+00 : f32
    %486 = vector.broadcast %cst_119 : f32 to vector<8x64xf32>
    %487 = arith.addf %486, %485 : vector<8x64xf32>
    %488 = arith.divf %486, %487 : vector<8x64xf32>
    %489 = vector.extract_strided_slice %482 {offsets = [0, 64], sizes = [8, 64], strides = [1, 1]} : vector<8x256xf32> to vector<8x64xf32>
    %490 = arith.negf %489 : vector<8x64xf32>
    %491 = math.exp %490 : vector<8x64xf32>
    %cst_120 = arith.constant 1.000000e+00 : f32
    %492 = vector.broadcast %cst_120 : f32 to vector<8x64xf32>
    %493 = arith.addf %492, %491 : vector<8x64xf32>
    %494 = arith.divf %492, %493 : vector<8x64xf32>
    %495 = vector.extract_strided_slice %482 {offsets = [0, 128], sizes = [8, 64], strides = [1, 1]} : vector<8x256xf32> to vector<8x64xf32>
    %496 = math.tanh %495 : vector<8x64xf32>
    %497 = vector.extract_strided_slice %482 {offsets = [0, 192], sizes = [8, 64], strides = [1, 1]} : vector<8x256xf32> to vector<8x64xf32>
    %498 = arith.negf %497 : vector<8x64xf32>
    %499 = math.exp %498 : vector<8x64xf32>
    %cst_121 = arith.constant 1.000000e+00 : f32
    %500 = vector.broadcast %cst_121 : f32 to vector<8x64xf32>
    %501 = arith.addf %500, %499 : vector<8x64xf32>
    %502 = arith.divf %500, %501 : vector<8x64xf32>
    %503 = arith.mulf %494, %476 : vector<8x64xf32>
    %504 = arith.mulf %488, %496 : vector<8x64xf32>
    %505 = arith.addf %503, %504 : vector<8x64xf32>
    %506 = math.tanh %505 : vector<8x64xf32>
    %507 = arith.mulf %502, %506 : vector<8x64xf32>
    %c56_122 = arith.constant 56 : index
    %c0_123 = arith.constant 0 : index
    %508 = vector.load %arg28[%c56_122, %c0_123] : memref<64x64xf32, #tpu.memory_space<vmem>>, vector<8x64xf32>
    tpu.vector_store %arg28[%c56_122, %c0_123], %507 {strides = array<i32>} : memref<64x64xf32, #tpu.memory_space<vmem>>, vector<8x64xf32>,
    %c0_124 = arith.constant 0 : index
    %c0_125 = arith.constant 0 : index
    %509 = vector.load %arg28[%c0_124, %c0_125] : memref<64x64xf32, #tpu.memory_space<vmem>>, vector<64x64xf32>
    %c0_126 = arith.constant 0 : index
    %c0_127 = arith.constant 0 : index
    %510 = vector.load %arg10[%c0_126, %c0_127] : memref<64x64xf32, #tpu.memory_space<vmem>>, vector<64x64xf32>
    %cst_128 = arith.constant dense<0.000000e+00> : vector<8x64xf32>
    %511 = tpu.matmul %507, %510, %cst_128 {dimension_numbers = #tpu.dot_dimension_numbers<[1], [0], [0], [1], [0, 0, 1, 1], [], []>} : vector<8x64xf32>, vector<64x64xf32>, vector<8x64xf32> -> vector<8x64xf32>
    %c0_129 = arith.constant 0 : index
    %c0_130 = arith.constant 0 : index
    %512 = vector.load %arg11[%c0_129, %c0_130] : memref<1x64xf32, #tpu.memory_space<vmem>>, vector<1x64xf32>
    %513 = vector.broadcast %512 : vector<1x64xf32> to vector<8x64xf32>
    %514 = arith.addf %511, %513 : vector<8x64xf32>
    %c0_131 = arith.constant 0 : index
    %c0_132 = arith.constant 0 : index
    %515 = vector.load %arg12[%c0_131, %c0_132] : memref<64x64xf32, #tpu.memory_space<vmem>>, vector<64x64xf32>
    %cst_133 = arith.constant dense<0.000000e+00> : vector<64x64xf32>
    %516 = tpu.matmul %509, %515, %cst_133 {dimension_numbers = #tpu.dot_dimension_numbers<[1], [0], [0], [1], [0, 0, 1, 1], [], []>} : vector<64x64xf32>, vector<64x64xf32>, vector<64x64xf32> -> vector<64x64xf32>
    %c0_134 = arith.constant 0 : index
    %c0_135 = arith.constant 0 : index
    %517 = vector.load %arg13[%c0_134, %c0_135] : memref<1x64xf32, #tpu.memory_space<vmem>>, vector<1x64xf32>
    %518 = vector.broadcast %517 : vector<1x64xf32> to vector<64x64xf32>
    %519 = arith.addf %516, %518 : vector<64x64xf32>
    %c0_136 = arith.constant 0 : index
    %c0_137 = arith.constant 0 : index
    %520 = vector.load %arg14[%c0_136, %c0_137] : memref<64x64xf32, #tpu.memory_space<vmem>>, vector<64x64xf32>
    %cst_138 = arith.constant dense<0.000000e+00> : vector<64x64xf32>
    %521 = tpu.matmul %509, %520, %cst_138 {dimension_numbers = #tpu.dot_dimension_numbers<[1], [0], [0], [1], [0, 0, 1, 1], [], []>} : vector<64x64xf32>, vector<64x64xf32>, vector<64x64xf32> -> vector<64x64xf32>
    %c0_139 = arith.constant 0 : index
    %c0_140 = arith.constant 0 : index
    %522 = vector.load %arg15[%c0_139, %c0_140] : memref<1x64xf32, #tpu.memory_space<vmem>>, vector<1x64xf32>
    %523 = vector.broadcast %522 : vector<1x64xf32> to vector<64x64xf32>
    %524 = arith.addf %521, %523 : vector<64x64xf32>
    %525 = vector.shape_cast %519 : vector<64x64xf32> to vector<8x8x64xf32>
    %526 = vector.shape_cast %514 : vector<8x64xf32> to vector<1x8x64xf32>
    %527 = vector.broadcast %526 : vector<1x8x64xf32> to vector<8x8x64xf32>
    %528 = arith.mulf %525, %527 : vector<8x8x64xf32>
    %529 = vector.shape_cast %528 : vector<8x8x64xf32> to vector<64x64xf32>
    %c0_141 = arith.constant 0 : index
    %c0_142 = arith.constant 0 : index
    %530 = vector.load %arg18[%c0_141, %c0_142] : memref<64x128xf32, #tpu.memory_space<vmem>>, vector<64x128xf32>
    %cst_143 = arith.constant dense<0.000000e+00> : vector<64x128xf32>
    %531 = tpu.matmul %529, %530, %cst_143 {dimension_numbers = #tpu.dot_dimension_numbers<[1], [0], [0], [1], [0, 0, 1, 1], [], []>} : vector<64x64xf32>, vector<64x128xf32>, vector<64x128xf32> -> vector<64x128xf32>
    %cst_144 = arith.constant 2.500000e-01 : f32
    %532 = vector.broadcast %cst_144 : f32 to vector<64x128xf32>
    %533 = arith.mulf %531, %532 : vector<64x128xf32>
    %534 = vector.shape_cast %533 : vector<64x128xf32> to vector<8x8x128xf32>
    %cst_145 = arith.constant dense<0xFF800000> : vector<8x128xf32>
    %535 = vector.multi_reduction <maximumf>, %534, %cst_145 [0] : vector<8x8x128xf32> to vector<8x128xf32>
    %536 = vector.shape_cast %535 : vector<8x128xf32> to vector<1x8x128xf32>
    %537 = vector.broadcast %536 : vector<1x8x128xf32> to vector<8x8x128xf32>
    %538 = arith.subf %534, %537 : vector<8x8x128xf32>
    %539 = math.exp %538 : vector<8x8x128xf32>
    %cst_146 = arith.constant dense<0.000000e+00> : vector<8x128xf32>
    %540 = vector.multi_reduction <add>, %539, %cst_146 [0] : vector<8x8x128xf32> to vector<8x128xf32>
    %541 = vector.shape_cast %540 : vector<8x128xf32> to vector<1x8x128xf32>
    %542 = tpu.reciprocal %541 {approx = true} : vector<1x8x128xf32> -> vector<1x8x128xf32>
    %543 = vector.broadcast %542 : vector<1x8x128xf32> to vector<8x8x128xf32>
    %544 = arith.mulf %539, %543 : vector<8x8x128xf32>
    %545 = vector.shape_cast %544 : vector<8x8x128xf32> to vector<64x128xf32>
    %c0_147 = arith.constant 0 : index
    %c0_148 = arith.constant 0 : index
    %546 = vector.load %arg19[%c0_147, %c0_148] : memref<128x64xf32, #tpu.memory_space<vmem>>, vector<128x64xf32>
    %cst_149 = arith.constant dense<0.000000e+00> : vector<64x64xf32>
    %547 = tpu.matmul %545, %546, %cst_149 {dimension_numbers = #tpu.dot_dimension_numbers<[1], [0], [0], [1], [0, 0, 1, 1], [], []>} : vector<64x128xf32>, vector<128x64xf32>, vector<64x64xf32> -> vector<64x64xf32>
    %548 = arith.mulf %547, %524 : vector<64x64xf32>
    %549 = vector.shape_cast %548 : vector<64x64xf32> to vector<8x8x64xf32>
    %cst_150 = arith.constant dense<0.000000e+00> : vector<8x64xf32>
    %550 = vector.multi_reduction <add>, %549, %cst_150 [0] : vector<8x8x64xf32> to vector<8x64xf32>
    %c0_151 = arith.constant 0 : index
    %c0_152 = arith.constant 0 : index
    %551 = vector.load %arg16[%c0_151, %c0_152] : memref<64x64xf32, #tpu.memory_space<vmem>>, vector<64x64xf32>
    %cst_153 = arith.constant dense<0.000000e+00> : vector<8x64xf32>
    %552 = tpu.matmul %550, %551, %cst_153 {dimension_numbers = #tpu.dot_dimension_numbers<[1], [0], [0], [1], [0, 0, 1, 1], [], []>} : vector<8x64xf32>, vector<64x64xf32>, vector<8x64xf32> -> vector<8x64xf32>
    %c0_154 = arith.constant 0 : index
    %c0_155 = arith.constant 0 : index
    %553 = vector.load %arg17[%c0_154, %c0_155] : memref<1x64xf32, #tpu.memory_space<vmem>>, vector<1x64xf32>
    %554 = vector.broadcast %553 : vector<1x64xf32> to vector<8x64xf32>
    %555 = arith.addf %552, %554 : vector<8x64xf32>
    %c0_156 = arith.constant 0 : index
    %c0_157 = arith.constant 0 : index
    %556 = vector.load %arg20[%c0_156, %c0_157] : memref<64x400xf32, #tpu.memory_space<vmem>>, vector<64x400xf32>
    %cst_158 = arith.constant dense<0.000000e+00> : vector<8x400xf32>
    %557 = tpu.matmul %555, %556, %cst_158 {dimension_numbers = #tpu.dot_dimension_numbers<[1], [0], [0], [1], [0, 0, 1, 1], [], []>} : vector<8x64xf32>, vector<64x400xf32>, vector<8x400xf32> -> vector<8x400xf32>
    %c0_159 = arith.constant 0 : index
    %c0_160 = arith.constant 0 : index
    %558 = vector.load %arg21[%c0_159, %c0_160] : memref<1x400xf32, #tpu.memory_space<vmem>>, vector<1x400xf32>
    %559 = vector.broadcast %558 : vector<1x400xf32> to vector<8x400xf32>
    %560 = arith.addf %557, %559 : vector<8x400xf32>
    %cst_161 = arith.constant 0.000000e+00 : f32
    %561 = vector.broadcast %cst_161 : f32 to vector<8x400xf32>
    %562 = arith.maximumf %560, %561 : vector<8x400xf32>
    %c0_162 = arith.constant 0 : index
    %c0_163 = arith.constant 0 : index
    %563 = vector.load %arg22[%c0_162, %c0_163] : memref<400x100xf32, #tpu.memory_space<vmem>>, vector<400x100xf32>
    %cst_164 = arith.constant dense<0.000000e+00> : vector<8x100xf32>
    %564 = tpu.matmul %562, %563, %cst_164 {dimension_numbers = #tpu.dot_dimension_numbers<[1], [0], [0], [1], [0, 0, 1, 1], [], []>} : vector<8x400xf32>, vector<400x100xf32>, vector<8x100xf32> -> vector<8x100xf32>
    %c0_165 = arith.constant 0 : index
    %c0_166 = arith.constant 0 : index
    %565 = vector.load %arg23[%c0_165, %c0_166] : memref<1x100xf32, #tpu.memory_space<vmem>>, vector<1x100xf32>
    %566 = vector.broadcast %565 : vector<1x100xf32> to vector<8x100xf32>
    %567 = arith.addf %564, %566 : vector<8x100xf32>
    %cst_167 = arith.constant 0.000000e+00 : f32
    %568 = vector.broadcast %cst_167 : f32 to vector<8x100xf32>
    %569 = arith.maximumf %567, %568 : vector<8x100xf32>
    %c0_168 = arith.constant 0 : index
    %c0_169 = arith.constant 0 : index
    %570 = vector.load %arg24[%c0_168, %c0_169] : memref<100x128xf32, #tpu.memory_space<vmem>>, vector<100x128xf32>
    %cst_170 = arith.constant dense<0.000000e+00> : vector<8x128xf32>
    %571 = tpu.matmul %569, %570, %cst_170 {dimension_numbers = #tpu.dot_dimension_numbers<[1], [0], [0], [1], [0, 0, 1, 1], [], []>} : vector<8x100xf32>, vector<100x128xf32>, vector<8x128xf32> -> vector<8x128xf32>
    %c0_171 = arith.constant 0 : index
    %c0_172 = arith.constant 0 : index
    %572 = vector.load %arg25[%c0_171, %c0_172] : memref<1x128xf32, #tpu.memory_space<vmem>>, vector<1x128xf32>
    %573 = vector.broadcast %572 : vector<1x128xf32> to vector<8x128xf32>
    %574 = arith.addf %571, %573 : vector<8x128xf32>
    %c0_173 = arith.constant 0 : index
    %c0_174 = arith.constant 0 : index
    %575 = vector.load %arg26[%c0_173, %c0_174] : memref<8x128xf32, #tpu.memory_space<vmem>>, vector<8x128xf32>
    tpu.vector_store %arg26[%c0_173, %c0_174], %574 {strides = array<i32>} : memref<8x128xf32, #tpu.memory_space<vmem>>, vector<8x128xf32>,
    return
  }
  func.func @transform_0(%arg0: i32) -> (i32, i32, i32) {
    %c0_i32 = arith.constant 0 : i32
    %c0_i32_0 = arith.constant 0 : i32
    %c0_i32_1 = arith.constant 0 : i32
    return %c0_i32, %arg0, %c0_i32_0 : i32, i32, i32
  }
  func.func @transform_1(%arg0: i32) -> (i32, i32, i32) {
    %c0_i32 = arith.constant 0 : i32
    %c0_i32_0 = arith.constant 0 : i32
    %c0_i32_1 = arith.constant 0 : i32
    %c0_i32_2 = arith.constant 0 : i32
    return %c0_i32, %c0_i32_0, %c0_i32_1 : i32, i32, i32
  }
  func.func @transform_2(%arg0: i32) -> (i32, i32) {
    %c0_i32 = arith.constant 0 : i32
    %c0_i32_0 = arith.constant 0 : i32
    %c0_i32_1 = arith.constant 0 : i32
    return %c0_i32, %c0_i32_0 : i32, i32
  }
  func.func @transform_3(%arg0: i32) -> (i32, i32) {
    %c0_i32 = arith.constant 0 : i32
    %c0_i32_0 = arith.constant 0 : i32
    %c0_i32_1 = arith.constant 0 : i32
    return %c0_i32, %c0_i32_0 : i32, i32
  }
  func.func @transform_4(%arg0: i32) -> (i32, i32) {
    %c0_i32 = arith.constant 0 : i32
    %c0_i32_0 = arith.constant 0 : i32
    %c0_i32_1 = arith.constant 0 : i32
    return %c0_i32, %c0_i32_0 : i32, i32
  }
  func.func @transform_5(%arg0: i32) -> (i32, i32) {
    %c0_i32 = arith.constant 0 : i32
    %c0_i32_0 = arith.constant 0 : i32
    %c0_i32_1 = arith.constant 0 : i32
    return %c0_i32, %c0_i32_0 : i32, i32
  }
  func.func @transform_6(%arg0: i32) -> (i32, i32) {
    %c0_i32 = arith.constant 0 : i32
    %c0_i32_0 = arith.constant 0 : i32
    %c0_i32_1 = arith.constant 0 : i32
    return %c0_i32, %c0_i32_0 : i32, i32
  }
  func.func @transform_7(%arg0: i32) -> (i32, i32) {
    %c0_i32 = arith.constant 0 : i32
    %c0_i32_0 = arith.constant 0 : i32
    %c0_i32_1 = arith.constant 0 : i32
    return %c0_i32, %c0_i32_0 : i32, i32
  }
  func.func @transform_8(%arg0: i32) -> (i32, i32) {
    %c0_i32 = arith.constant 0 : i32
    %c0_i32_0 = arith.constant 0 : i32
    %c0_i32_1 = arith.constant 0 : i32
    return %c0_i32, %c0_i32_0 : i32, i32
  }
  func.func @transform_9(%arg0: i32) -> (i32, i32) {
    %c0_i32 = arith.constant 0 : i32
    %c0_i32_0 = arith.constant 0 : i32
    %c0_i32_1 = arith.constant 0 : i32
    return %c0_i32, %c0_i32_0 : i32, i32
  }
  func.func @transform_10(%arg0: i32) -> (i32, i32) {
    %c0_i32 = arith.constant 0 : i32
    %c0_i32_0 = arith.constant 0 : i32
    %c0_i32_1 = arith.constant 0 : i32
    return %c0_i32, %c0_i32_0 : i32, i32
  }
  func.func @transform_11(%arg0: i32) -> (i32, i32) {
    %c0_i32 = arith.constant 0 : i32
    %c0_i32_0 = arith.constant 0 : i32
    %c0_i32_1 = arith.constant 0 : i32
    return %c0_i32, %c0_i32_0 : i32, i32
  }
  func.func @transform_12(%arg0: i32) -> (i32, i32) {
    %c0_i32 = arith.constant 0 : i32
    %c0_i32_0 = arith.constant 0 : i32
    %c0_i32_1 = arith.constant 0 : i32
    return %c0_i32, %c0_i32_0 : i32, i32
  }
  func.func @transform_13(%arg0: i32) -> (i32, i32) {
    %c0_i32 = arith.constant 0 : i32
    %c0_i32_0 = arith.constant 0 : i32
    %c0_i32_1 = arith.constant 0 : i32
    return %c0_i32, %c0_i32_0 : i32, i32
  }
  func.func @transform_14(%arg0: i32) -> (i32, i32) {
    %c0_i32 = arith.constant 0 : i32
    %c0_i32_0 = arith.constant 0 : i32
    %c0_i32_1 = arith.constant 0 : i32
    return %c0_i32, %c0_i32_0 : i32, i32
  }
  func.func @transform_15(%arg0: i32) -> (i32, i32) {
    %c0_i32 = arith.constant 0 : i32
    %c0_i32_0 = arith.constant 0 : i32
    %c0_i32_1 = arith.constant 0 : i32
    return %c0_i32, %c0_i32_0 : i32, i32
  }
  func.func @transform_16(%arg0: i32) -> (i32, i32) {
    %c0_i32 = arith.constant 0 : i32
    %c0_i32_0 = arith.constant 0 : i32
    %c0_i32_1 = arith.constant 0 : i32
    return %c0_i32, %c0_i32_0 : i32, i32
  }
  func.func @transform_17(%arg0: i32) -> (i32, i32) {
    %c0_i32 = arith.constant 0 : i32
    %c0_i32_0 = arith.constant 0 : i32
    %c0_i32_1 = arith.constant 0 : i32
    return %c0_i32, %c0_i32_0 : i32, i32
  }
  func.func @transform_18(%arg0: i32) -> (i32, i32) {
    %c0_i32 = arith.constant 0 : i32
    %c0_i32_0 = arith.constant 0 : i32
    %c0_i32_1 = arith.constant 0 : i32
    return %c0_i32, %c0_i32_0 : i32, i32
  }
  func.func @transform_19(%arg0: i32) -> (i32, i32) {
    %c0_i32 = arith.constant 0 : i32
    %c0_i32_0 = arith.constant 0 : i32
    %c0_i32_1 = arith.constant 0 : i32
    return %c0_i32, %c0_i32_0 : i32, i32
  }
  func.func @transform_20(%arg0: i32) -> (i32, i32) {
    %c0_i32 = arith.constant 0 : i32
    %c0_i32_0 = arith.constant 0 : i32
    %c0_i32_1 = arith.constant 0 : i32
    return %c0_i32, %c0_i32_0 : i32, i32
  }
  func.func @transform_21(%arg0: i32) -> (i32, i32) {
    %c0_i32 = arith.constant 0 : i32
    %c0_i32_0 = arith.constant 0 : i32
    %c0_i32_1 = arith.constant 0 : i32
    return %c0_i32, %c0_i32_0 : i32, i32
  }
  func.func @transform_22(%arg0: i32) -> (i32, i32) {
    %c0_i32 = arith.constant 0 : i32
    %c0_i32_0 = arith.constant 0 : i32
    %c0_i32_1 = arith.constant 0 : i32
    return %c0_i32, %c0_i32_0 : i32, i32
  }
  func.func @transform_23(%arg0: i32) -> (i32, i32) {
    %c0_i32 = arith.constant 0 : i32
    %c0_i32_0 = arith.constant 0 : i32
    %c0_i32_1 = arith.constant 0 : i32
    return %c0_i32, %c0_i32_0 : i32, i32
  }
  func.func @transform_24(%arg0: i32) -> (i32, i32) {
    %c0_i32 = arith.constant 0 : i32
    %c0_i32_0 = arith.constant 0 : i32
    %c0_i32_1 = arith.constant 0 : i32
    return %c0_i32, %c0_i32_0 : i32, i32
  }
  func.func @transform_25(%arg0: i32) -> (i32, i32) {
    %c0_i32 = arith.constant 0 : i32
    %c0_i32_0 = arith.constant 0 : i32
    return %arg0, %c0_i32 : i32, i32
  }
}

</mosaic_0001>

<llo_original>
// kernel: tpu_custom_call.1
$region0: #{tpu_custom_call.1}
  #allocation0 [shape = 'u32[]', space=smem, size = 0x4, offset = 0x4, fixed_abs, tag = 'smem constant byte address 0x4 - core index']
  #allocation1 [shape = 'u32[144,128]{1,0:T(1,128)}', space=vmem, size = 0x12000, scoped, tag = 'internal scratch']
  #allocation2 [shape = 'f32[64,64]{1,0:T(8,128)}', space=vmem, size = 0x8000, scoped, tag = 'scratch operand']
  #allocation3 [shape = 'f32[64,64]{1,0:T(8,128)}', space=vmem, size = 0x8000, scoped, tag = 'scratch operand']
  %s0 = inlined_call_operand.vmem [shape: f32[8,8,4], index: 0, kind: input, shape index: {}]
  %s1 = inlined_call_operand.hbm [shape: f32[3,4,32], index: 1, kind: input, shape index: {}]
  %s2 = inlined_call_operand.vmem [shape: f32[1,32], index: 2, kind: input, shape index: {}]
  %s3 = inlined_call_operand.hbm [shape: f32[32,256], index: 3, kind: input, shape index: {}]
  %s4 = inlined_call_operand.hbm [shape: f32[64,256], index: 4, kind: input, shape index: {}]
  %s5 = inlined_call_operand.vmem [shape: f32[1,256], index: 5, kind: input, shape index: {}]
  %s6 = inlined_call_operand.hbm [shape: f32[64,256], index: 6, kind: input, shape index: {}]
  %s7 = inlined_call_operand.hbm [shape: f32[64,256], index: 7, kind: input, shape index: {}]
  %s8 = inlined_call_operand.hbm [shape: f32[1,256], index: 8, kind: input, shape index: {}]
  %s9 = inlined_call_operand.hbm [shape: f32[64,64], index: 9, kind: input, shape index: {}]
  %s10 = inlined_call_operand.hbm [shape: f32[1,64], index: 10, kind: input, shape index: {}]
  %s11 = inlined_call_operand.hbm [shape: f32[64,64], index: 11, kind: input, shape index: {}]
  %s12 = inlined_call_operand.hbm [shape: f32[1,64], index: 12, kind: input, shape index: {}]
  %s13 = inlined_call_operand.hbm [shape: f32[64,64], index: 13, kind: input, shape index: {}]
  %s14 = inlined_call_operand.hbm [shape: f32[1,64], index: 14, kind: input, shape index: {}]
  %s15 = inlined_call_operand.hbm [shape: f32[64,64], index: 15, kind: input, shape index: {}]
  %s16 = inlined_call_operand.hbm [shape: f32[1,64], index: 16, kind: input, shape index: {}]
  %s17 = inlined_call_operand.hbm [shape: f32[64,128], index: 17, kind: input, shape index: {}]
  %s18 = inlined_call_operand.vmem [shape: f32[128,64], index: 18, kind: input, shape index: {}]
  %s19 = inlined_call_operand.vmem [shape: f32[64,400], index: 19, kind: input, shape index: {}]
  %s20 = inlined_call_operand.hbm [shape: f32[1,400], index: 20, kind: input, shape index: {}]
  %s21 = inlined_call_operand.hbm [shape: f32[400,100], index: 21, kind: input, shape index: {}]
  %s22 = inlined_call_operand.vmem [shape: f32[1,100], index: 22, kind: input, shape index: {}]
  %s23 = inlined_call_operand.vmem [shape: f32[100,128], index: 23, kind: input, shape index: {}]
  %s24 = inlined_call_operand.vmem [shape: f32[1,128], index: 24, kind: input, shape index: {}]
  %s25 = inlined_call_operand.hbm [shape: f32[8,128], index: 25, kind: output, shape index: {}]
  %s26 = sld [smem:[#allocation0]]
  $region178: #{tpu_custom_call.1} parent=0
    _
  %s28 = ssub.s32 1, %s26
  %s29 = scalar_select 0, %s28, %s26
  $region1: #{tpu_custom_call.1} parent=0
    #allocation4 [shape = 'u8[6144]{0}', space=vmem, size = 0x1800, scoped, tag = 'input window, operand 1, single buffered']
    #allocation5 [shape = 's32[1]{0}', space=sflag, size = 0x4, scoped, tag = 'scoped memory for tpu_custom_call.1']
    #allocation6 [shape = 's32[1]{0}', space=sflag, size = 0x4, scoped, tag = 'scoped memory for tpu_custom_call.1']
    #allocation7 [shape = 'u8[32768]{0}', space=vmem, size = 0x8000, scoped, tag = 'input window, operand 3, single buffered']
    #allocation8 [shape = 's32[1]{0}', space=sflag, size = 0x4, scoped, tag = 'scoped memory for tpu_custom_call.1']
    #allocation9 [shape = 'u8[65536]{0}', space=vmem, size = 0x10000, scoped, tag = 'input window, operand 4, single buffered']
    #allocation10 [shape = 'u8[65536]{0}', space=vmem, size = 0x10000, scoped, tag = 'input window, operand 6, single buffered']
    #allocation11 [shape = 's32[1]{0}', space=sflag, size = 0x4, scoped, tag = 'scoped memory for tpu_custom_call.1']
    #allocation12 [shape = 'u8[65536]{0}', space=vmem, size = 0x10000, scoped, tag = 'input window, operand 7, single buffered']
    #allocation13 [shape = 'u8[1024]{0}', space=vmem, size = 0x400, scoped, tag = 'input window, operand 8, single buffered']
    #allocation14 [shape = 's32[1]{0}', space=sflag, size = 0x4, scoped, tag = 'scoped memory for tpu_custom_call.1']
    #allocation15 [shape = 'u8[32768]{0}', space=vmem, size = 0x8000, scoped, tag = 'input window, operand 9, single buffered']
    #allocation16 [shape = 'u8[512]{0}', space=vmem, size = 0x400, scoped, tag = 'input window, operand 10, single buffered']
    #allocation17 [shape = 's32[1]{0}', space=sflag, size = 0x4, scoped, tag = 'scoped memory for tpu_custom_call.1']
    #allocation18 [shape = 'u8[32768]{0}', space=vmem, size = 0x8000, scoped, tag = 'input window, operand 11, single buffered']
    #allocation19 [shape = 'u8[512]{0}', space=vmem, size = 0x400, scoped, tag = 'input window, operand 12, single buffered']
    #allocation20 [shape = 's32[1]{0}', space=sflag, size = 0x4, scoped, tag = 'scoped memory for tpu_custom_call.1']
    #allocation21 [shape = 'u8[32768]{0}', space=vmem, size = 0x8000, scoped, tag = 'input window, operand 13, single buffered']
    #allocation22 [shape = 'u8[512]{0}', space=vmem, size = 0x400, scoped, tag = 'input window, operand 14, single buffered']
    #allocation23 [shape = 's32[1]{0}', space=sflag, size = 0x4, scoped, tag = 'scoped memory for tpu_custom_call.1']
    #allocation24 [shape = 'u8[32768]{0}', space=vmem, size = 0x8000, scoped, tag = 'input window, operand 15, single buffered']
    #allocation25 [shape = 'u8[512]{0}', space=vmem, size = 0x400, scoped, tag = 'input window, operand 16, single buffered']
    #allocation26 [shape = 's32[1]{0}', space=sflag, size = 0x4, scoped, tag = 'scoped memory for tpu_custom_call.1']
    #allocation27 [shape = 'u8[32768]{0}', space=vmem, size = 0x8000, scoped, tag = 'input window, operand 17, single buffered']
    #allocation28 [shape = 'u8[2048]{0}', space=vmem, size = 0x800, scoped, tag = 'input window, operand 20, single buffered']
    #allocation29 [shape = 's32[1]{0}', space=sflag, size = 0x4, scoped, tag = 'scoped memory for tpu_custom_call.1']
    #allocation30 [shape = 'u8[204800]{0}', space=vmem, size = 0x32000, scoped, tag = 'input window, operand 21, single buffered']
    #allocation31 [shape = 'u8[4096]{0}', space=vmem, size = 0x1000, scoped, tag = 'output window, operand 0, single buffered']
    %30 = vsyncpa [#allocation5], 0
    %31 = vsyncpa [#allocation8], 0
    %32 = vsyncpa [#allocation11], 0
    %33 = vsyncpa [#allocation14], 0
    %34 = vsyncpa [#allocation17], 0
    %35 = vsyncpa [#allocation20], 0
    %36 = vsyncpa [#allocation23], 0
    %37 = vsyncpa [#allocation26], 0
    %38 = vsyncpa [#allocation29], 0
    %39 = vsyncpa [#allocation6], 0
    // Predicated region
    $region2: #{tpu_custom_call.1} parent=1 // pred_check
      _
    $region3: #{tpu_custom_call.1} parent=1 // pred_check_branch
      %41 = sbr.rel (0) target = $region5
    $region4: #{tpu_custom_call.1} parent=1 // pred_region
      _
    $region5: #{tpu_custom_call.1} parent=1 // pred_fallthru
      _
    // Predicated region
    $region6: #{tpu_custom_call.1} parent=1 // pred_check
      _
    $region7: #{tpu_custom_call.1} parent=1 // pred_check_branch
      %43 = sbr.rel (0) target = $region9
    $region8: #{tpu_custom_call.1} parent=1 // pred_region
      %s45 = ssub.s32 192, 192
      %46 = vsyncadd [#allocation5], %s45
      %s47 = sshll.u32 [#allocation4], 4
      %s48 = int_to_ptr.vmem [resolvable:$true] %s47
      %53 = dma.hbm_to_vmem [thread:$0]  %s1, 192, %s48, [#allocation5], 64, 64, 4
    $region9: #{tpu_custom_call.1} parent=1 // pred_fallthru
      _
    // Predicated region
    $region10: #{tpu_custom_call.1} parent=1 // pred_check
      _
    $region11: #{tpu_custom_call.1} parent=1 // pred_check_branch
      %55 = sbr.rel (0) target = $region13
    $region12: #{tpu_custom_call.1} parent=1 // pred_region
      _
    $region13: #{tpu_custom_call.1} parent=1 // pred_fallthru
      _
    // Predicated region
    $region14: #{tpu_custom_call.1} parent=1 // pred_check
      _
    $region15: #{tpu_custom_call.1} parent=1 // pred_check_branch
      %57 = sbr.rel (0) target = $region17
    $region16: #{tpu_custom_call.1} parent=1 // pred_region
      %s59 = ssub.s32 1024, 1024
      %60 = vsyncadd [#allocation8], %s59
      %s61 = sshll.u32 [#allocation7], 4
      %s62 = int_to_ptr.vmem [resolvable:$true] %s61
      %67 = dma.hbm_to_vmem [thread:$0]  %s3, 1024, %s62, [#allocation8], 256, 256, 16
    $region17: #{tpu_custom_call.1} parent=1 // pred_fallthru
      _
    // Predicated region
    $region18: #{tpu_custom_call.1} parent=1 // pred_check
      _
    $region19: #{tpu_custom_call.1} parent=1 // pred_check_branch
      %69 = sbr.rel (0) target = $region21
    $region20: #{tpu_custom_call.1} parent=1 // pred_region
      %s71 = ssub.s32 2048, 2048
      %72 = vsyncadd [#allocation8], %s71
      %s73 = sshll.u32 [#allocation9], 4
      %s74 = int_to_ptr.vmem [resolvable:$true] %s73
      %79 = dma.hbm_to_vmem [thread:$0]  %s4, 2048, %s74, [#allocation8], 256, 256, 16
    $region21: #{tpu_custom_call.1} parent=1 // pred_fallthru
      _
    // Predicated region
    $region22: #{tpu_custom_call.1} parent=1 // pred_check
      _
    $region23: #{tpu_custom_call.1} parent=1 // pred_check_branch
      %81 = sbr.rel (0) target = $region25
    $region24: #{tpu_custom_call.1} parent=1 // pred_region
      _
    $region25: #{tpu_custom_call.1} parent=1 // pred_fallthru
      _
    // Predicated region
    $region26: #{tpu_custom_call.1} parent=1 // pred_check
      _
    $region27: #{tpu_custom_call.1} parent=1 // pred_check_branch
      %83 = sbr.rel (0) target = $region29
    $region28: #{tpu_custom_call.1} parent=1 // pred_region
      %s85 = ssub.s32 2048, 2048
      %86 = vsyncadd [#allocation11], %s85
      %s87 = sshll.u32 [#allocation10], 4
      %s88 = int_to_ptr.vmem [resolvable:$true] %s87
      %93 = dma.hbm_to_vmem [thread:$0]  %s6, 2048, %s88, [#allocation11], 256, 256, 16
    $region29: #{tpu_custom_call.1} parent=1 // pred_fallthru
      _
    // Predicated region
    $region30: #{tpu_custom_call.1} parent=1 // pred_check
      _
    $region31: #{tpu_custom_call.1} parent=1 // pred_check_branch
      %95 = sbr.rel (0) target = $region33
    $region32: #{tpu_custom_call.1} parent=1 // pred_region
      %s97 = ssub.s32 2048, 2048
      %98 = vsyncadd [#allocation11], %s97
      %s99 = sshll.u32 [#allocation12], 4
      %s100 = int_to_ptr.vmem [resolvable:$true] %s99
      %105 = dma.hbm_to_vmem [thread:$0]  %s7, 2048, %s100, [#allocation11], 256, 256, 16
    $region33: #{tpu_custom_call.1} parent=1 // pred_fallthru
      _
    // Predicated region
    $region34: #{tpu_custom_call.1} parent=1 // pred_check
      _
    $region35: #{tpu_custom_call.1} parent=1 // pred_check_branch
      %107 = sbr.rel (0) target = $region37
    $region36: #{tpu_custom_call.1} parent=1 // pred_region
      %s109 = ssub.s32 32, 32
      %110 = vsyncadd [#allocation14], %s109
      %s112 = sshll.u32 [#allocation13], 4
      %s113 = int_to_ptr.vmem [resolvable:$true] %s112
      %115 = dma.hbm_to_vmem [thread:$0]  %s8, 32, %s113, [#allocation14]
    $region37: #{tpu_custom_call.1} parent=1 // pred_fallthru
      _
    // Predicated region
    $region38: #{tpu_custom_call.1} parent=1 // pred_check
      _
    $region39: #{tpu_custom_call.1} parent=1 // pred_check_branch
      %117 = sbr.rel (0) target = $region41
    $region40: #{tpu_custom_call.1} parent=1 // pred_region
      %s119 = ssub.s32 1024, 1024
      %120 = vsyncadd [#allocation14], %s119
      %s121 = sshll.u32 [#allocation15], 4
      %s122 = int_to_ptr.vmem [resolvable:$true] %s121
      %127 = dma.hbm_to_vmem [thread:$0]  %s9, 1024, %s122, [#allocation14], 128, 128, 8
    $region41: #{tpu_custom_call.1} parent=1 // pred_fallthru
      _
    // Predicated region
    $region42: #{tpu_custom_call.1} parent=1 // pred_check
      _
    $region43: #{tpu_custom_call.1} parent=1 // pred_check_branch
      %129 = sbr.rel (0) target = $region45
    $region44: #{tpu_custom_call.1} parent=1 // pred_region
      %s131 = ssub.s32 16, 16
      %132 = vsyncadd [#allocation17], %s131
      %s134 = sshll.u32 [#allocation16], 4
      %s135 = int_to_ptr.vmem [resolvable:$true] %s134
      %137 = dma.hbm_to_vmem [thread:$0]  %s10, 16, %s135, [#allocation17]
    $region45: #{tpu_custom_call.1} parent=1 // pred_fallthru
      _
    // Predicated region
    $region46: #{tpu_custom_call.1} parent=1 // pred_check
      _
    $region47: #{tpu_custom_call.1} parent=1 // pred_check_branch
      %139 = sbr.rel (0) target = $region49
    $region48: #{tpu_custom_call.1} parent=1 // pred_region
      %s141 = ssub.s32 1024, 1024
      %142 = vsyncadd [#allocation17], %s141
      %s143 = sshll.u32 [#allocation18], 4
      %s144 = int_to_ptr.vmem [resolvable:$true] %s143
      %149 = dma.hbm_to_vmem [thread:$0]  %s11, 1024, %s144, [#allocation17], 128, 128, 8
    $region49: #{tpu_custom_call.1} parent=1 // pred_fallthru
      _
    // Predicated region
    $region50: #{tpu_custom_call.1} parent=1 // pred_check
      _
    $region51: #{tpu_custom_call.1} parent=1 // pred_check_branch
      %151 = sbr.rel (0) target = $region53
    $region52: #{tpu_custom_call.1} parent=1 // pred_region
      %s153 = ssub.s32 16, 16
      %154 = vsyncadd [#allocation20], %s153
      %s156 = sshll.u32 [#allocation19], 4
      %s157 = int_to_ptr.vmem [resolvable:$true] %s156
      %159 = dma.hbm_to_vmem [thread:$0]  %s12, 16, %s157, [#allocation20]
    $region53: #{tpu_custom_call.1} parent=1 // pred_fallthru
      _
    // Predicated region
    $region54: #{tpu_custom_call.1} parent=1 // pred_check
      _
    $region55: #{tpu_custom_call.1} parent=1 // pred_check_branch
      %161 = sbr.rel (0) target = $region57
    $region56: #{tpu_custom_call.1} parent=1 // pred_region
      %s163 = ssub.s32 1024, 1024
      %164 = vsyncadd [#allocation20], %s163
      %s165 = sshll.u32 [#allocation21], 4
      %s166 = int_to_ptr.vmem [resolvable:$true] %s165
      %171 = dma.hbm_to_vmem [thread:$0]  %s13, 1024, %s166, [#allocation20], 128, 128, 8
    $region57: #{tpu_custom_call.1} parent=1 // pred_fallthru
      _
    // Predicated region
    $region58: #{tpu_custom_call.1} parent=1 // pred_check
      _
    $region59: #{tpu_custom_call.1} parent=1 // pred_check_branch
      %173 = sbr.rel (0) target = $region61
    $region60: #{tpu_custom_call.1} parent=1 // pred_region
      %s175 = ssub.s32 16, 16
      %176 = vsyncadd [#allocation23], %s175
      %s178 = sshll.u32 [#allocation22], 4
      %s179 = int_to_ptr.vmem [resolvable:$true] %s178
      %181 = dma.hbm_to_vmem [thread:$0]  %s14, 16, %s179, [#allocation23]
    $region61: #{tpu_custom_call.1} parent=1 // pred_fallthru
      _
    // Predicated region
    $region62: #{tpu_custom_call.1} parent=1 // pred_check
      _
    $region63: #{tpu_custom_call.1} parent=1 // pred_check_branch
      %183 = sbr.rel (0) target = $region65
    $region64: #{tpu_custom_call.1} parent=1 // pred_region
      %s185 = ssub.s32 1024, 1024
      %186 = vsyncadd [#allocation23], %s185
      %s187 = sshll.u32 [#allocation24], 4
      %s188 = int_to_ptr.vmem [resolvable:$true] %s187
      %193 = dma.hbm_to_vmem [thread:$0]  %s15, 1024, %s188, [#allocation23], 128, 128, 8
    $region65: #{tpu_custom_call.1} parent=1 // pred_fallthru
      _
    // Predicated region
    $region66: #{tpu_custom_call.1} parent=1 // pred_check
      _
    $region67: #{tpu_custom_call.1} parent=1 // pred_check_branch
      %195 = sbr.rel (0) target = $region69
    $region68: #{tpu_custom_call.1} parent=1 // pred_region
      %s197 = ssub.s32 16, 16
      %198 = vsyncadd [#allocation26], %s197
      %s200 = sshll.u32 [#allocation25], 4
      %s201 = int_to_ptr.vmem [resolvable:$true] %s200
      %203 = dma.hbm_to_vmem [thread:$0]  %s16, 16, %s201, [#allocation26]
    $region69: #{tpu_custom_call.1} parent=1 // pred_fallthru
      _
    // Predicated region
    $region70: #{tpu_custom_call.1} parent=1 // pred_check
      _
    $region71: #{tpu_custom_call.1} parent=1 // pred_check_branch
      %205 = sbr.rel (0) target = $region73
    $region72: #{tpu_custom_call.1} parent=1 // pred_region
      %s207 = ssub.s32 1024, 1024
      %208 = vsyncadd [#allocation26], %s207
      %s209 = sshll.u32 [#allocation27], 4
      %s210 = int_to_ptr.vmem [resolvable:$true] %s209
      %215 = dma.hbm_to_vmem [thread:$0]  %s17, 1024, %s210, [#allocation26], 128, 128, 8
    $region73: #{tpu_custom_call.1} parent=1 // pred_fallthru
      _
    // Predicated region
    $region74: #{tpu_custom_call.1} parent=1 // pred_check
      _
    $region75: #{tpu_custom_call.1} parent=1 // pred_check_branch
      %217 = sbr.rel (0) target = $region77
    $region76: #{tpu_custom_call.1} parent=1 // pred_region
      _
    $region77: #{tpu_custom_call.1} parent=1 // pred_fallthru
      _
    // Predicated region
    $region78: #{tpu_custom_call.1} parent=1 // pred_check
      _
    $region79: #{tpu_custom_call.1} parent=1 // pred_check_branch
      %219 = sbr.rel (0) target = $region81
    $region80: #{tpu_custom_call.1} parent=1 // pred_region
      _
    $region81: #{tpu_custom_call.1} parent=1 // pred_fallthru
      _
    // Predicated region
    $region82: #{tpu_custom_call.1} parent=1 // pred_check
      _
    $region83: #{tpu_custom_call.1} parent=1 // pred_check_branch
      %221 = sbr.rel (0) target = $region85
    $region84: #{tpu_custom_call.1} parent=1 // pred_region
      %s223 = ssub.s32 64, 64
      %224 = vsyncadd [#allocation29], %s223
      %s226 = sshll.u32 [#allocation28], 4
      %s227 = int_to_ptr.vmem [resolvable:$true] %s226
      %229 = dma.hbm_to_vmem [thread:$0]  %s20, 64, %s227, [#allocation29]
    $region85: #{tpu_custom_call.1} parent=1 // pred_fallthru
      _
    // Predicated region
    $region86: #{tpu_custom_call.1} parent=1 // pred_check
      _
    $region87: #{tpu_custom_call.1} parent=1 // pred_check_branch
      %231 = sbr.rel (0) target = $region89
    $region88: #{tpu_custom_call.1} parent=1 // pred_region
      %s233 = ssub.s32 6400, 6400
      %234 = vsyncadd [#allocation29], %s233
      %s235 = sshll.u32 [#allocation30], 4
      %s236 = int_to_ptr.vmem [resolvable:$true] %s235
      %241 = dma.hbm_to_vmem [thread:$0]  %s21, 6400, %s236, [#allocation29], 128, 128, 8
    $region89: #{tpu_custom_call.1} parent=1 // pred_fallthru
      _
    // Predicated region
    $region90: #{tpu_custom_call.1} parent=1 // pred_check
      _
    $region91: #{tpu_custom_call.1} parent=1 // pred_check_branch
      %243 = sbr.rel (0) target = $region93
    $region92: #{tpu_custom_call.1} parent=1 // pred_region
      _
    $region93: #{tpu_custom_call.1} parent=1 // pred_fallthru
      _
    // Predicated region
    $region94: #{tpu_custom_call.1} parent=1 // pred_check
      _
    $region95: #{tpu_custom_call.1} parent=1 // pred_check_branch
      %245 = sbr.rel (0) target = $region97
    $region96: #{tpu_custom_call.1} parent=1 // pred_region
      _
    $region97: #{tpu_custom_call.1} parent=1 // pred_fallthru
      _
    // Predicated region
    $region98: #{tpu_custom_call.1} parent=1 // pred_check
      _
    $region99: #{tpu_custom_call.1} parent=1 // pred_check_branch
      %247 = sbr.rel (0) target = $region101
    $region100: #{tpu_custom_call.1} parent=1 // pred_region
      _
    $region101: #{tpu_custom_call.1} parent=1 // pred_fallthru
      _
    // Predicated region
    $region102: #{tpu_custom_call.1} parent=1 // pred_check
      _
    $region103: #{tpu_custom_call.1} parent=1 // pred_check_branch
      %249 = sbr.rel (0) target = $region105
    $region104: #{tpu_custom_call.1} parent=1 // pred_region
      %250 = dma.done [#allocation5], 192
    $region105: #{tpu_custom_call.1} parent=1 // pred_fallthru
      _
    // Predicated region
    $region106: #{tpu_custom_call.1} parent=1 // pred_check
      _
    $region107: #{tpu_custom_call.1} parent=1 // pred_check_branch
      %252 = sbr.rel (0) target = $region109
    $region108: #{tpu_custom_call.1} parent=1 // pred_region
      %253 = dma.done [#allocation8], 1024
    $region109: #{tpu_custom_call.1} parent=1 // pred_fallthru
      _
    // Predicated region
    $region110: #{tpu_custom_call.1} parent=1 // pred_check
      _
    $region111: #{tpu_custom_call.1} parent=1 // pred_check_branch
      %255 = sbr.rel (0) target = $region113
    $region112: #{tpu_custom_call.1} parent=1 // pred_region
      %256 = dma.done [#allocation8], 2048
    $region113: #{tpu_custom_call.1} parent=1 // pred_fallthru
      _
    // Predicated region
    $region114: #{tpu_custom_call.1} parent=1 // pred_check
      _
    $region115: #{tpu_custom_call.1} parent=1 // pred_check_branch
      %258 = sbr.rel (0) target = $region117
    $region116: #{tpu_custom_call.1} parent=1 // pred_region
      %259 = dma.done [#allocation11], 2048
    $region117: #{tpu_custom_call.1} parent=1 // pred_fallthru
      _
    // Predicated region
    $region118: #{tpu_custom_call.1} parent=1 // pred_check
      _
    $region119: #{tpu_custom_call.1} parent=1 // pred_check_branch
      %261 = sbr.rel (0) target = $region121
    $region120: #{tpu_custom_call.1} parent=1 // pred_region
      %262 = dma.done [#allocation11], 2048
    $region121: #{tpu_custom_call.1} parent=1 // pred_fallthru
      _
    // Predicated region
    $region122: #{tpu_custom_call.1} parent=1 // pred_check
      _
    $region123: #{tpu_custom_call.1} parent=1 // pred_check_branch
      %264 = sbr.rel (0) target = $region125
    $region124: #{tpu_custom_call.1} parent=1 // pred_region
      %265 = dma.done [#allocation14], 32
    $region125: #{tpu_custom_call.1} parent=1 // pred_fallthru
      _
    // Predicated region
    $region126: #{tpu_custom_call.1} parent=1 // pred_check
      _
    $region127: #{tpu_custom_call.1} parent=1 // pred_check_branch
      %267 = sbr.rel (0) target = $region129
    $region128: #{tpu_custom_call.1} parent=1 // pred_region
      %268 = dma.done [#allocation14], 1024
    $region129: #{tpu_custom_call.1} parent=1 // pred_fallthru
      _
    // Predicated region
    $region130: #{tpu_custom_call.1} parent=1 // pred_check
      _
    $region131: #{tpu_custom_call.1} parent=1 // pred_check_branch
      %270 = sbr.rel (0) target = $region133
    $region132: #{tpu_custom_call.1} parent=1 // pred_region
      %271 = dma.done [#allocation17], 16
    $region133: #{tpu_custom_call.1} parent=1 // pred_fallthru
      _
    // Predicated region
    $region134: #{tpu_custom_call.1} parent=1 // pred_check
      _
    $region135: #{tpu_custom_call.1} parent=1 // pred_check_branch
      %273 = sbr.rel (0) target = $region137
    $region136: #{tpu_custom_call.1} parent=1 // pred_region
      %274 = dma.done [#allocation17], 1024
    $region137: #{tpu_custom_call.1} parent=1 // pred_fallthru
      _
    // Predicated region
    $region138: #{tpu_custom_call.1} parent=1 // pred_check
      _
    $region139: #{tpu_custom_call.1} parent=1 // pred_check_branch
      %276 = sbr.rel (0) target = $region141
    $region140: #{tpu_custom_call.1} parent=1 // pred_region
      %277 = dma.done [#allocation20], 16
    $region141: #{tpu_custom_call.1} parent=1 // pred_fallthru
      _
    // Predicated region
    $region142: #{tpu_custom_call.1} parent=1 // pred_check
      _
    $region143: #{tpu_custom_call.1} parent=1 // pred_check_branch
      %279 = sbr.rel (0) target = $region145
    $region144: #{tpu_custom_call.1} parent=1 // pred_region
      %280 = dma.done [#allocation20], 1024
    $region145: #{tpu_custom_call.1} parent=1 // pred_fallthru
      _
    // Predicated region
    $region146: #{tpu_custom_call.1} parent=1 // pred_check
      _
    $region147: #{tpu_custom_call.1} parent=1 // pred_check_branch
      %282 = sbr.rel (0) target = $region149
    $region148: #{tpu_custom_call.1} parent=1 // pred_region
      %283 = dma.done [#allocation23], 16
    $region149: #{tpu_custom_call.1} parent=1 // pred_fallthru
      _
    // Predicated region
    $region150: #{tpu_custom_call.1} parent=1 // pred_check
      _
    $region151: #{tpu_custom_call.1} parent=1 // pred_check_branch
      %285 = sbr.rel (0) target = $region153
    $region152: #{tpu_custom_call.1} parent=1 // pred_region
      %286 = dma.done [#allocation23], 1024
    $region153: #{tpu_custom_call.1} parent=1 // pred_fallthru
      _
    // Predicated region
    $region154: #{tpu_custom_call.1} parent=1 // pred_check
      _
    $region155: #{tpu_custom_call.1} parent=1 // pred_check_branch
      %288 = sbr.rel (0) target = $region157
    $region156: #{tpu_custom_call.1} parent=1 // pred_region
      %289 = dma.done [#allocation26], 16
    $region157: #{tpu_custom_call.1} parent=1 // pred_fallthru
      _
    // Predicated region
    $region158: #{tpu_custom_call.1} parent=1 // pred_check
      _
    $region159: #{tpu_custom_call.1} parent=1 // pred_check_branch
      %291 = sbr.rel (0) target = $region161
    $region160: #{tpu_custom_call.1} parent=1 // pred_region
      %292 = dma.done [#allocation26], 1024
    $region161: #{tpu_custom_call.1} parent=1 // pred_fallthru
      _
    // Predicated region
    $region162: #{tpu_custom_call.1} parent=1 // pred_check
      _
    $region163: #{tpu_custom_call.1} parent=1 // pred_check_branch
      %294 = sbr.rel (0) target = $region165
    $region164: #{tpu_custom_call.1} parent=1 // pred_region
      %295 = dma.done [#allocation29], 64
    $region165: #{tpu_custom_call.1} parent=1 // pred_fallthru
      _
    // Predicated region
    $region166: #{tpu_custom_call.1} parent=1 // pred_check
      _
    $region167: #{tpu_custom_call.1} parent=1 // pred_check_branch
      %297 = sbr.rel (0) target = $region169
    $region168: #{tpu_custom_call.1} parent=1 // pred_region
      %298 = dma.done [#allocation29], 6400
    $region169: #{tpu_custom_call.1} parent=1 // pred_fallthru
      _
    %v299 = vld [vmem:[%s0] sm:$0xff]
    %v300 = vld [vmem:[%s0 + $0x8] sm:$0xff]
    %v301 = vld [vmem:[%s0 + $0x10] sm:$0xff]
    %v302 = vld [vmem:[%s0 + $0x18] sm:$0xff]
    %v303 = vld [vmem:[%s0 + $0x20] sm:$0xff]
    %v304 = vld [vmem:[%s0 + $0x28] sm:$0xff]
    %v305 = vld [vmem:[%s0 + $0x30] sm:$0xff]
    %v306 = vld [vmem:[%s0 + $0x38] sm:$0xff]
    %v307 = vld [vmem:[#allocation4] sm:$0xf]
    %vm308 = vcmask 31744
    %v310 = vsel %vm308, %v299, 0
    %v313 = vsel %vm308, %v300, 0
    %v316 = vsel %vm308, %v301, 0
    %v319 = vsel %vm308, %v302, 0
    %v322 = vsel %vm308, %v303, 0
    %v325 = vsel %vm308, %v304, 0
    %v328 = vsel %vm308, %v305, 0
    %v331 = vsel %vm308, %v306, 0
    %vm333 = vcmask 1043456
    %v335 = vsel %vm333, %v307, 0
    %337 = vmatprep.subr.mxu0 0.0
    %338 = vmatpush1.msra.mxu0 %v335
    %339 = vmatprep.subr.mxu0 0.0
    %340 = vmatpush1.msra.mxu0 0.0
    %341 = vmatprep.subr.mxu0 0.0
    %342 = vmatpush1.msra.mxu0 0.0
    %343 = vmatprep.subr.mxu0 0.0
    %344 = vmatpush1.msra.mxu0 0.0
    %345 = vmatprep.subr.mxu0 0.0
    %346 = vmatpush1.msra.mxu0 0.0
    %347 = vmatprep.subr.mxu0 0.0
    %348 = vmatpush1.msra.mxu0 0.0
    %349 = vmatprep.subr.mxu0 0.0
    %350 = vmatpush1.msra.mxu0 0.0
    %351 = vmatprep.subr.mxu0 0.0
    %352 = vmatpush1.msra.mxu0 0.0
    %353 = vmatprep.subr.mxu0 0.0
    %354 = vmatpush1.msra.mxu0 0.0
    %355 = vmatprep.subr.mxu0 0.0
    %356 = vmatpush1.msra.mxu0 0.0
    %357 = vmatprep.subr.mxu0 0.0
    %358 = vmatpush1.msra.mxu0 0.0
    %359 = vmatprep.subr.mxu0 0.0
    %360 = vmatpush1.msra.mxu0 0.0
    %361 = vmatprep.subr.mxu0 0.0
    %362 = vmatpush1.msra.mxu0 0.0
    %363 = vmatprep.subr.mxu0 0.0
    %364 = vmatpush1.msra.mxu0 0.0
    %365 = vmatprep.subr.mxu0 0.0
    %366 = vmatpush1.msra.mxu0 0.0
    %367 = vmatprep.subr.mxu0 0.0
    %368 = vmatpush1.msra.mxu0 0.0
    %369 = vmatprep.subr.mxu0 0.0
    %370 = vmatpush1.msra.mxu0 0.0
    %371 = vmatprep.subr.mxu0 0.0
    %372 = vmatpush1.msra.mxu0 0.0
    %373 = vmatprep.subr.mxu0 0.0
    %374 = vmatpush1.msra.mxu0 0.0
    %375 = vmatprep.subr.mxu0 0.0
    %376 = vmatpush1.msra.mxu0 0.0
    %377 = vmatprep.subr.mxu0 0.0
    %378 = vmatpush1.msra.mxu0 0.0
    %379 = vmatprep.subr.mxu0 0.0
    %380 = vmatpush1.msra.mxu0 0.0
    %381 = vmatprep.subr.mxu0 0.0
    %382 = vmatpush1.msra.mxu0 0.0
    %383 = vmatprep.subr.mxu0 0.0
    %384 = vmatpush1.msra.mxu0 0.0
    %385 = vmatprep.subr.mxu0 0.0
    %386 = vmatpush1.msra.mxu0 0.0
    %387 = vmatprep.subr.mxu0 0.0
    %388 = vmatpush1.msra.mxu0 0.0
    %389 = vmatprep.subr.mxu0 0.0
    %390 = vmatpush1.msra.mxu0 0.0
    %391 = vmatprep.subr.mxu0 0.0
    %392 = vmatpush1.msra.mxu0 0.0
    %393 = vmatprep.subr.mxu0 0.0
    %394 = vmatpush1.msra.mxu0 0.0
    %395 = vmatprep.subr.mxu0 0.0
    %396 = vmatpush1.msra.mxu0 0.0
    %397 = vmatprep.subr.mxu0 0.0
    %398 = vmatpush1.msra.mxu0 0.0
    %399 = vmatprep.subr.mxu0 0.0
    %400 = vmatpush1.msra.mxu0 0.0
    %401 = vmatprep.mubr.f32.mxu0 0.0
    %402 = vmatmul.mubr.f32.gmra.mrb[0].mxu0 %v310
    %v403 = vpop.f32.mrb[0].mxu0
    %v404 = vadd.f32 0.0, %v403
    %v405 = vpop.f32.mrb[0].mxu0
    %406 = vmatprep.mubr.f32.mxu0 0.0
    %407 = vmatmul.mubr.f32.gmra.mrb[0].mxu0 %v313
    %v408 = vpop.f32.mrb[0].mxu0
    %v409 = vadd.f32 0.0, %v408
    %v410 = vpop.f32.mrb[0].mxu0
    %411 = vmatprep.mubr.f32.mxu0 0.0
    %412 = vmatmul.mubr.f32.gmra.mrb[0].mxu0 %v316
    %v413 = vpop.f32.mrb[0].mxu0
    %v414 = vadd.f32 0.0, %v413
    %v415 = vpop.f32.mrb[0].mxu0
    %416 = vmatprep.mubr.f32.mxu0 0.0
    %417 = vmatmul.mubr.f32.gmra.mrb[0].mxu0 %v319
    %v418 = vpop.f32.mrb[0].mxu0
    %v419 = vadd.f32 0.0, %v418
    %v420 = vpop.f32.mrb[0].mxu0
    %421 = vmatprep.mubr.f32.mxu0 0.0
    %422 = vmatmul.mubr.f32.gmra.mrb[0].mxu0 %v322
    %v423 = vpop.f32.mrb[0].mxu0
    %v424 = vadd.f32 0.0, %v423
    %v425 = vpop.f32.mrb[0].mxu0
    %426 = vmatprep.mubr.f32.mxu0 0.0
    %427 = vmatmul.mubr.f32.gmra.mrb[0].mxu0 %v325
    %v428 = vpop.f32.mrb[0].mxu0
    %v429 = vadd.f32 0.0, %v428
    %v430 = vpop.f32.mrb[0].mxu0
    %431 = vmatprep.mubr.f32.mxu0 0.0
    %432 = vmatmul.mubr.f32.gmra.mrb[0].mxu0 %v328
    %v433 = vpop.f32.mrb[0].mxu0
    %v434 = vadd.f32 0.0, %v433
    %v435 = vpop.f32.mrb[0].mxu0
    %436 = vmatprep.mubr.f32.mxu0 0.0
    %437 = vmatmul.mubr.f32.gmra.mrb[0].mxu0 %v331
    %v438 = vpop.f32.mrb[0].mxu0
    %v439 = vpop.f32.mrb[0].mxu0
    %440 = vdwg.mxu0
    %s441 = scalar_lea.vmem [#allocation4], 4
    %v442 = vld [vmem:[%s441] sm:$0xf]
    %v444 = vsel %vm333, %v442, 0
    %446 = vmatprep.subr.mxu0 0.0
    %447 = vmatpush1.msra.mxu0 %v444
    %448 = vmatprep.subr.mxu0 0.0
    %449 = vmatpush1.msra.mxu0 0.0
    %450 = vmatprep.subr.mxu0 0.0
    %451 = vmatpush1.msra.mxu0 0.0
    %452 = vmatprep.subr.mxu0 0.0
    %453 = vmatpush1.msra.mxu0 0.0
    %454 = vmatprep.subr.mxu0 0.0
    %455 = vmatpush1.msra.mxu0 0.0
    %456 = vmatprep.subr.mxu0 0.0
    %457 = vmatpush1.msra.mxu0 0.0
    %458 = vmatprep.subr.mxu0 0.0
    %459 = vmatpush1.msra.mxu0 0.0
    %460 = vmatprep.subr.mxu0 0.0
    %461 = vmatpush1.msra.mxu0 0.0
    %462 = vmatprep.subr.mxu0 0.0
    %463 = vmatpush1.msra.mxu0 0.0
    %464 = vmatprep.subr.mxu0 0.0
    %465 = vmatpush1.msra.mxu0 0.0
    %466 = vmatprep.subr.mxu0 0.0
    %467 = vmatpush1.msra.mxu0 0.0
    %468 = vmatprep.subr.mxu0 0.0
    %469 = vmatpush1.msra.mxu0 0.0
    %470 = vmatprep.subr.mxu0 0.0
    %471 = vmatpush1.msra.mxu0 0.0
    %472 = vmatprep.subr.mxu0 0.0
    %473 = vmatpush1.msra.mxu0 0.0
    %474 = vmatprep.subr.mxu0 0.0
    %475 = vmatpush1.msra.mxu0 0.0
    %476 = vmatprep.subr.mxu0 0.0
    %477 = vmatpush1.msra.mxu0 0.0
    %478 = vmatprep.subr.mxu0 0.0
    %479 = vmatpush1.msra.mxu0 0.0
    %480 = vmatprep.subr.mxu0 0.0
    %481 = vmatpush1.msra.mxu0 0.0
    %482 = vmatprep.subr.mxu0 0.0
    %483 = vmatpush1.msra.mxu0 0.0
    %484 = vmatprep.subr.mxu0 0.0
    %485 = vmatpush1.msra.mxu0 0.0
    %486 = vmatprep.subr.mxu0 0.0
    %487 = vmatpush1.msra.mxu0 0.0
    %488 = vmatprep.subr.mxu0 0.0
    %489 = vmatpush1.msra.mxu0 0.0
    %490 = vmatprep.subr.mxu0 0.0
    %491 = vmatpush1.msra.mxu0 0.0
    %492 = vmatprep.subr.mxu0 0.0
    %493 = vmatpush1.msra.mxu0 0.0
    %494 = vmatprep.subr.mxu0 0.0
    %495 = vmatpush1.msra.mxu0 0.0
    %496 = vmatprep.subr.mxu0 0.0
    %497 = vmatpush1.msra.mxu0 0.0
    %498 = vmatprep.subr.mxu0 0.0
    %499 = vmatpush1.msra.mxu0 0.0
    %500 = vmatprep.subr.mxu0 0.0
    %501 = vmatpush1.msra.mxu0 0.0
    %502 = vmatprep.subr.mxu0 0.0
    %503 = vmatpush1.msra.mxu0 0.0
    %504 = vmatprep.subr.mxu0 0.0
    %505 = vmatpush1.msra.mxu0 0.0
    %506 = vmatprep.subr.mxu0 0.0
    %507 = vmatpush1.msra.mxu0 0.0
    %508 = vmatprep.subr.mxu0 0.0
    %509 = vmatpush1.msra.mxu0 0.0
    %510 = vmatprep.mubr.f32.mxu0 0.0
    %511 = vmatmul.mubr.f32.gmra.mrb[0].mxu0 %v310
    %v512 = vpop.f32.mrb[0].mxu0
    %v513 = vadd.f32 0.0, %v512
    %v514 = vpop.f32.mrb[0].mxu0
    %515 = vmatprep.mubr.f32.mxu0 0.0
    %516 = vmatmul.mubr.f32.gmra.mrb[0].mxu0 %v313
    %v517 = vpop.f32.mrb[0].mxu0
    %v518 = vadd.f32 0.0, %v517
    %v519 = vpop.f32.mrb[0].mxu0
    %520 = vmatprep.mubr.f32.mxu0 0.0
    %521 = vmatmul.mubr.f32.gmra.mrb[0].mxu0 %v316
    %v522 = vpop.f32.mrb[0].mxu0
    %v523 = vadd.f32 0.0, %v522
    %v524 = vpop.f32.mrb[0].mxu0
    %525 = vmatprep.mubr.f32.mxu0 0.0
    %526 = vmatmul.mubr.f32.gmra.mrb[0].mxu0 %v319
    %v527 = vpop.f32.mrb[0].mxu0
    %v528 = vadd.f32 0.0, %v527
    %v529 = vpop.f32.mrb[0].mxu0
    %530 = vmatprep.mubr.f32.mxu0 0.0
    %531 = vmatmul.mubr.f32.gmra.mrb[0].mxu0 %v322
    %v532 = vpop.f32.mrb[0].mxu0
    %v533 = vadd.f32 0.0, %v532
    %v534 = vpop.f32.mrb[0].mxu0
    %535 = vmatprep.mubr.f32.mxu0 0.0
    %536 = vmatmul.mubr.f32.gmra.mrb[0].mxu0 %v325
    %v537 = vpop.f32.mrb[0].mxu0
    %v538 = vadd.f32 0.0, %v537
    %v539 = vpop.f32.mrb[0].mxu0
    %540 = vmatprep.mubr.f32.mxu0 0.0
    %541 = vmatmul.mubr.f32.gmra.mrb[0].mxu0 %v328
    %v542 = vpop.f32.mrb[0].mxu0
    %v543 = vadd.f32 0.0, %v542
    %v544 = vpop.f32.mrb[0].mxu0
    %545 = vmatprep.mubr.f32.mxu0 0.0
    %546 = vmatmul.mubr.f32.gmra.mrb[0].mxu0 %v331
    %v547 = vpop.f32.mrb[0].mxu0
    %v548 = vadd.f32 0.0, %v547
    %v549 = vpop.f32.mrb[0].mxu0
    %550 = vdwg.mxu0
    %s551 = scalar_lea.vmem [#allocation4], 8
    %v552 = vld [vmem:[%s551] sm:$0xf]
    %v554 = vsel %vm333, %v552, 0
    %556 = vmatprep.subr.mxu0 0.0
    %557 = vmatpush1.msra.mxu0 %v554
    %558 = vmatprep.subr.mxu0 0.0
    %559 = vmatpush1.msra.mxu0 0.0
    %560 = vmatprep.subr.mxu0 0.0
    %561 = vmatpush1.msra.mxu0 0.0
    %562 = vmatprep.subr.mxu0 0.0
    %563 = vmatpush1.msra.mxu0 0.0
    %564 = vmatprep.subr.mxu0 0.0
    %565 = vmatpush1.msra.mxu0 0.0
    %566 = vmatprep.subr.mxu0 0.0
    %567 = vmatpush1.msra.mxu0 0.0
    %568 = vmatprep.subr.mxu0 0.0
    %569 = vmatpush1.msra.mxu0 0.0
    %570 = vmatprep.subr.mxu0 0.0
    %571 = vmatpush1.msra.mxu0 0.0
    %572 = vmatprep.subr.mxu0 0.0
    %573 = vmatpush1.msra.mxu0 0.0
    %574 = vmatprep.subr.mxu0 0.0
    %575 = vmatpush1.msra.mxu0 0.0
    %576 = vmatprep.subr.mxu0 0.0
    %577 = vmatpush1.msra.mxu0 0.0
    %578 = vmatprep.subr.mxu0 0.0
    %579 = vmatpush1.msra.mxu0 0.0
    %580 = vmatprep.subr.mxu0 0.0
    %581 = vmatpush1.msra.mxu0 0.0
    %582 = vmatprep.subr.mxu0 0.0
    %583 = vmatpush1.msra.mxu0 0.0
    %584 = vmatprep.subr.mxu0 0.0
    %585 = vmatpush1.msra.mxu0 0.0
    %586 = vmatprep.subr.mxu0 0.0
    %587 = vmatpush1.msra.mxu0 0.0
    %588 = vmatprep.subr.mxu0 0.0
    %589 = vmatpush1.msra.mxu0 0.0
    %590 = vmatprep.subr.mxu0 0.0
    %591 = vmatpush1.msra.mxu0 0.0
    %592 = vmatprep.subr.mxu0 0.0
    %593 = vmatpush1.msra.mxu0 0.0
    %594 = vmatprep.subr.mxu0 0.0
    %595 = vmatpush1.msra.mxu0 0.0
    %596 = vmatprep.subr.mxu0 0.0
    %597 = vmatpush1.msra.mxu0 0.0
    %598 = vmatprep.subr.mxu0 0.0
    %599 = vmatpush1.msra.mxu0 0.0
    %600 = vmatprep.subr.mxu0 0.0
    %601 = vmatpush1.msra.mxu0 0.0
    %602 = vmatprep.subr.mxu0 0.0
    %603 = vmatpush1.msra.mxu0 0.0
    %604 = vmatprep.subr.mxu0 0.0
    %605 = vmatpush1.msra.mxu0 0.0
    %606 = vmatprep.subr.mxu0 0.0
    %607 = vmatpush1.msra.mxu0 0.0
    %608 = vmatprep.subr.mxu0 0.0
    %609 = vmatpush1.msra.mxu0 0.0
    %610 = vmatprep.subr.mxu0 0.0
    %611 = vmatpush1.msra.mxu0 0.0
    %612 = vmatprep.subr.mxu0 0.0
    %613 = vmatpush1.msra.mxu0 0.0
    %614 = vmatprep.subr.mxu0 0.0
    %615 = vmatpush1.msra.mxu0 0.0
    %616 = vmatprep.subr.mxu0 0.0
    %617 = vmatpush1.msra.mxu0 0.0
    %618 = vmatprep.subr.mxu0 0.0
    %619 = vmatpush1.msra.mxu0 0.0
    %620 = vmatprep.mubr.f32.mxu0 0.0
    %621 = vmatmul.mubr.f32.gmra.mrb[0].mxu0 %v310
    %v622 = vpop.f32.mrb[0].mxu0
    %v623 = vpop.f32.mrb[0].mxu0
    %624 = vmatprep.mubr.f32.mxu0 0.0
    %625 = vmatmul.mubr.f32.gmra.mrb[0].mxu0 %v313
    %v626 = vpop.f32.mrb[0].mxu0
    %v627 = vadd.f32 0.0, %v626
    %v628 = vpop.f32.mrb[0].mxu0
    %629 = vmatprep.mubr.f32.mxu0 0.0
    %630 = vmatmul.mubr.f32.gmra.mrb[0].mxu0 %v316
    %v631 = vpop.f32.mrb[0].mxu0
    %v632 = vadd.f32 0.0, %v631
    %v633 = vpop.f32.mrb[0].mxu0
    %634 = vmatprep.mubr.f32.mxu0 0.0
    %635 = vmatmul.mubr.f32.gmra.mrb[0].mxu0 %v319
    %v636 = vpop.f32.mrb[0].mxu0
    %v637 = vadd.f32 0.0, %v636
    %v638 = vpop.f32.mrb[0].mxu0
    %639 = vmatprep.mubr.f32.mxu0 0.0
    %640 = vmatmul.mubr.f32.gmra.mrb[0].mxu0 %v322
    %v641 = vpop.f32.mrb[0].mxu0
    %v642 = vadd.f32 0.0, %v641
    %v643 = vpop.f32.mrb[0].mxu0
    %644 = vmatprep.mubr.f32.mxu0 0.0
    %645 = vmatmul.mubr.f32.gmra.mrb[0].mxu0 %v325
    %v646 = vpop.f32.mrb[0].mxu0
    %v647 = vadd.f32 0.0, %v646
    %v648 = vpop.f32.mrb[0].mxu0
    %649 = vmatprep.mubr.f32.mxu0 0.0
    %650 = vmatmul.mubr.f32.gmra.mrb[0].mxu0 %v328
    %v651 = vpop.f32.mrb[0].mxu0
    %v652 = vadd.f32 0.0, %v651
    %v653 = vpop.f32.mrb[0].mxu0
    %654 = vmatprep.mubr.f32.mxu0 0.0
    %655 = vmatmul.mubr.f32.gmra.mrb[0].mxu0 %v331
    %v656 = vpop.f32.mrb[0].mxu0
    %v657 = vadd.f32 0.0, %v656
    %v658 = vpop.f32.mrb[0].mxu0
    %659 = vdwg.mxu0
    %v660 = vadd.f32 %v513, 0.0
    %v661 = vadd.f32 %v404, %v518
    %v662 = vadd.f32 %v409, %v523
    %v663 = vadd.f32 %v414, %v528
    %v664 = vadd.f32 %v419, %v533
    %v665 = vadd.f32 %v424, %v538
    %v666 = vadd.f32 %v429, %v543
    %v667 = vadd.f32 %v434, %v548
    %v668 = vadd.f32 %v660, %v627
    %v669 = vadd.f32 %v661, %v632
    %v670 = vadd.f32 %v662, %v637
    %v671 = vadd.f32 %v663, %v642
    %v672 = vadd.f32 %v664, %v647
    %v673 = vadd.f32 %v665, %v652
    %v674 = vadd.f32 %v666, %v657
    %v675 = vadd.f32 %v667, 0.0
    %v676 = vld [vmem:[%s2] sm:$0x1]
    %v678 = vlaneseq
    %v679 = vshrl.u32 %v678, 7
    %v680 = vsub.s32 0, %v679
    %v681 = vrot.slane %v676, %v680
    %v683 = vadd.f32 %v668, %v681
    %v684 = vadd.f32 %v669, %v681
    %v685 = vadd.f32 %v670, %v681
    %v686 = vadd.f32 %v671, %v681
    %v687 = vadd.f32 %v672, %v681
    %v688 = vadd.f32 %v673, %v681
    %v689 = vadd.f32 %v674, %v681
    %v690 = vadd.f32 %v675, %v681
    %v691 = vmax.f32 %v683, 0.0
    %v692 = vmax.f32 %v684, 0.0
    %v693 = vmax.f32 %v685, 0.0
    %v694 = vmax.f32 %v686, 0.0
    %v695 = vmax.f32 %v687, 0.0
    %v696 = vmax.f32 %v688, 0.0
    %v697 = vmax.f32 %v689, 0.0
    %v698 = vmax.f32 %v690, 0.0
    %v699 = vld [vmem:[#allocation7] sm:$0xff]
    %v700 = vld [vmem:[#allocation7 + $0x8] sm:$0xff]
    %v701 = vld [vmem:[#allocation7 + $0x10] sm:$0xff]
    %v702 = vld [vmem:[#allocation7 + $0x18] sm:$0xff]
    %v703 = vld [vmem:[#allocation7 + $0x20] sm:$0xff]
    %v704 = vld [vmem:[#allocation7 + $0x28] sm:$0xff]
    %v705 = vld [vmem:[#allocation7 + $0x30] sm:$0xff]
    %v706 = vld [vmem:[#allocation7 + $0x38] sm:$0xff]
    %v707 = vld [vmem:[%s5] sm:$0x3]
    %v709 = vlaneseq
    %v710 = vshrl.u32 %v709, 7
    %v711 = vsub.s32 0, %v710
    %v712 = vrot.slane %v707, %v711
    %v713 = vlaneseq
    %v714 = vshrl.u32 %v713, 7
    %v715 = vsub.s32 1, %v714
    %v716 = vrot.slane %v707, %v715
    %vm719 = vcmask 261120
    %v721 = vsel %vm719, %v691, 0
    %v724 = vsel %vm719, %v692, 0
    %v727 = vsel %vm719, %v693, 0
    %v730 = vsel %vm719, %v694, 0
    %v733 = vsel %vm719, %v695, 0
    %v736 = vsel %vm719, %v696, 0
    %v739 = vsel %vm719, %v697, 0
    %v742 = vsel %vm719, %v698, 0
    %744 = vmatprep.subr.mxu0 %v700
    %745 = vmatpush1.msra.mxu0 %v699
    %746 = vmatprep.subr.mxu0 %v702
    %747 = vmatpush1.msra.mxu0 %v701
    %748 = vmatprep.subr.mxu0 %v704
    %749 = vmatpush1.msra.mxu0 %v703
    %750 = vmatprep.subr.mxu0 %v706
    %751 = vmatpush1.msra.mxu0 %v705
    %752 = vmatprep.subr.mxu0 0.0
    %753 = vmatpush1.msra.mxu0 0.0
    %754 = vmatprep.subr.mxu0 0.0
    %755 = vmatpush1.msra.mxu0 0.0
    %756 = vmatprep.subr.mxu0 0.0
    %757 = vmatpush1.msra.mxu0 0.0
    %758 = vmatprep.subr.mxu0 0.0
    %759 = vmatpush1.msra.mxu0 0.0
    %760 = vmatprep.subr.mxu0 0.0
    %761 = vmatpush1.msra.mxu0 0.0
    %762 = vmatprep.subr.mxu0 0.0
    %763 = vmatpush1.msra.mxu0 0.0
    %764 = vmatprep.subr.mxu0 0.0
    %765 = vmatpush1.msra.mxu0 0.0
    %766 = vmatprep.subr.mxu0 0.0
    %767 = vmatpush1.msra.mxu0 0.0
    %768 = vmatprep.subr.mxu0 0.0
    %769 = vmatpush1.msra.mxu0 0.0
    %770 = vmatprep.subr.mxu0 0.0
    %771 = vmatpush1.msra.mxu0 0.0
    %772 = vmatprep.subr.mxu0 0.0
    %773 = vmatpush1.msra.mxu0 0.0
    %774 = vmatprep.subr.mxu0 0.0
    %775 = vmatpush1.msra.mxu0 0.0
    %776 = vmatprep.subr.mxu0 0.0
    %777 = vmatpush1.msra.mxu0 0.0
    %778 = vmatprep.subr.mxu0 0.0
    %779 = vmatpush1.msra.mxu0 0.0
    %780 = vmatprep.subr.mxu0 0.0
    %781 = vmatpush1.msra.mxu0 0.0
    %782 = vmatprep.subr.mxu0 0.0
    %783 = vmatpush1.msra.mxu0 0.0
    %784 = vmatprep.subr.mxu0 0.0
    %785 = vmatpush1.msra.mxu0 0.0
    %786 = vmatprep.subr.mxu0 0.0
    %787 = vmatpush1.msra.mxu0 0.0
    %788 = vmatprep.subr.mxu0 0.0
    %789 = vmatpush1.msra.mxu0 0.0
    %790 = vmatprep.subr.mxu0 0.0
    %791 = vmatpush1.msra.mxu0 0.0
    %792 = vmatprep.subr.mxu0 0.0
    %793 = vmatpush1.msra.mxu0 0.0
    %794 = vmatprep.subr.mxu0 0.0
    %795 = vmatpush1.msra.mxu0 0.0
    %796 = vmatprep.subr.mxu0 0.0
    %797 = vmatpush1.msra.mxu0 0.0
    %798 = vmatprep.subr.mxu0 0.0
    %799 = vmatpush1.msra.mxu0 0.0
    %800 = vmatprep.subr.mxu0 0.0
    %801 = vmatpush1.msra.mxu0 0.0
    %802 = vmatprep.subr.mxu0 0.0
    %803 = vmatpush1.msra.mxu0 0.0
    %804 = vmatprep.subr.mxu0 0.0
    %805 = vmatpush1.msra.mxu0 0.0
    %806 = vmatprep.subr.mxu0 0.0
    %807 = vmatpush1.msra.mxu0 0.0
    %808 = vmatprep.mubr.f32.mxu0 0.0
    %809 = vmatmul.mubr.f32.gmra.mrb[0].mxu0 %v721
    %v810 = vpop.f32.mrb[0].mxu0
    %v811 = vadd.f32 %v712, %v810
    %v812 = vpop.f32.mrb[0].mxu0
    %v813 = vadd.f32 %v716, %v812
    %814 = vmatprep.mubr.f32.mxu0 0.0
    %815 = vmatmul.mubr.f32.gmra.mrb[0].mxu0 %v724
    %v816 = vpop.f32.mrb[0].mxu0
    %v817 = vadd.f32 %v712, %v816
    %v818 = vpop.f32.mrb[0].mxu0
    %v819 = vadd.f32 %v716, %v818
    %820 = vmatprep.mubr.f32.mxu0 0.0
    %821 = vmatmul.mubr.f32.gmra.mrb[0].mxu0 %v727
    %v822 = vpop.f32.mrb[0].mxu0
    %v823 = vadd.f32 %v712, %v822
    %v824 = vpop.f32.mrb[0].mxu0
    %v825 = vadd.f32 %v716, %v824
    %826 = vmatprep.mubr.f32.mxu0 0.0
    %827 = vmatmul.mubr.f32.gmra.mrb[0].mxu0 %v730
    %v828 = vpop.f32.mrb[0].mxu0
    %v829 = vadd.f32 %v712, %v828
    %v830 = vpop.f32.mrb[0].mxu0
    %v831 = vadd.f32 %v716, %v830
    %832 = vmatprep.mubr.f32.mxu0 0.0
    %833 = vmatmul.mubr.f32.gmra.mrb[0].mxu0 %v733
    %v834 = vpop.f32.mrb[0].mxu0
    %v835 = vadd.f32 %v712, %v834
    %v836 = vpop.f32.mrb[0].mxu0
    %v837 = vadd.f32 %v716, %v836
    %838 = vmatprep.mubr.f32.mxu0 0.0
    %839 = vmatmul.mubr.f32.gmra.mrb[0].mxu0 %v736
    %v840 = vpop.f32.mrb[0].mxu0
    %v841 = vadd.f32 %v712, %v840
    %v842 = vpop.f32.mrb[0].mxu0
    %v843 = vadd.f32 %v716, %v842
    %844 = vmatprep.mubr.f32.mxu0 0.0
    %845 = vmatmul.mubr.f32.gmra.mrb[0].mxu0 %v739
    %v846 = vpop.f32.mrb[0].mxu0
    %v847 = vadd.f32 %v712, %v846
    %v848 = vpop.f32.mrb[0].mxu0
    %v849 = vadd.f32 %v716, %v848
    %850 = vmatprep.mubr.f32.mxu0 0.0
    %851 = vmatmul.mubr.f32.gmra.mrb[0].mxu0 %v742
    %v852 = vpop.f32.mrb[0].mxu0
    %v853 = vadd.f32 %v712, %v852
    %v854 = vpop.f32.mrb[0].mxu0
    %v855 = vadd.f32 %v716, %v854
    %856 = vdwg.mxu0
    %v857 = vld [vmem:[#allocation9] sm:$0xff]
    %v858 = vld [vmem:[#allocation9 + $0x8] sm:$0xff]
    %v859 = vld [vmem:[#allocation9 + $0x10] sm:$0xff]
    %v860 = vld [vmem:[#allocation9 + $0x18] sm:$0xff]
    %v861 = vld [vmem:[#allocation9 + $0x20] sm:$0xff]
    %v862 = vld [vmem:[#allocation9 + $0x28] sm:$0xff]
    %v863 = vld [vmem:[#allocation9 + $0x30] sm:$0xff]
    %v864 = vld [vmem:[#allocation9 + $0x38] sm:$0xff]
    %v865 = vld [vmem:[#allocation9 + $0x40] sm:$0xff]
    %v866 = vld [vmem:[#allocation9 + $0x48] sm:$0xff]
    %v867 = vld [vmem:[#allocation9 + $0x50] sm:$0xff]
    %v868 = vld [vmem:[#allocation9 + $0x58] sm:$0xff]
    %v869 = vld [vmem:[#allocation9 + $0x60] sm:$0xff]
    %v870 = vld [vmem:[#allocation9 + $0x68] sm:$0xff]
    %v871 = vld [vmem:[#allocation9 + $0x70] sm:$0xff]
    %v872 = vld [vmem:[#allocation9 + $0x78] sm:$0xff]
    %vm873 = vcmask 523264
    %v875 = vsel %vm873, 0.0, 0
    %877 = vmatprep.subr.mxu0 %v858
    %878 = vmatpush1.msra.mxu0 %v857
    %879 = vmatprep.subr.mxu0 %v860
    %880 = vmatpush1.msra.mxu0 %v859
    %881 = vmatprep.subr.mxu0 %v862
    %882 = vmatpush1.msra.mxu0 %v861
    %883 = vmatprep.subr.mxu0 %v864
    %884 = vmatpush1.msra.mxu0 %v863
    %885 = vmatprep.subr.mxu0 %v866
    %886 = vmatpush1.msra.mxu0 %v865
    %887 = vmatprep.subr.mxu0 %v868
    %888 = vmatpush1.msra.mxu0 %v867
    %889 = vmatprep.subr.mxu0 %v870
    %890 = vmatpush1.msra.mxu0 %v869
    %891 = vmatprep.subr.mxu0 %v872
    %892 = vmatpush1.msra.mxu0 %v871
    %893 = vmatprep.subr.mxu0 0.0
    %894 = vmatpush1.msra.mxu0 0.0
    %895 = vmatprep.subr.mxu0 0.0
    %896 = vmatpush1.msra.mxu0 0.0
    %897 = vmatprep.subr.mxu0 0.0
    %898 = vmatpush1.msra.mxu0 0.0
    %899 = vmatprep.subr.mxu0 0.0
    %900 = vmatpush1.msra.mxu0 0.0
    %901 = vmatprep.subr.mxu0 0.0
    %902 = vmatpush1.msra.mxu0 0.0
    %903 = vmatprep.subr.mxu0 0.0
    %904 = vmatpush1.msra.mxu0 0.0
    %905 = vmatprep.subr.mxu0 0.0
    %906 = vmatpush1.msra.mxu0 0.0
    %907 = vmatprep.subr.mxu0 0.0
    %908 = vmatpush1.msra.mxu0 0.0
    %909 = vmatprep.subr.mxu0 0.0
    %910 = vmatpush1.msra.mxu0 0.0
    %911 = vmatprep.subr.mxu0 0.0
    %912 = vmatpush1.msra.mxu0 0.0
    %913 = vmatprep.subr.mxu0 0.0
    %914 = vmatpush1.msra.mxu0 0.0
    %915 = vmatprep.subr.mxu0 0.0
    %916 = vmatpush1.msra.mxu0 0.0
    %917 = vmatprep.subr.mxu0 0.0
    %918 = vmatpush1.msra.mxu0 0.0
    %919 = vmatprep.subr.mxu0 0.0
    %920 = vmatpush1.msra.mxu0 0.0
    %921 = vmatprep.subr.mxu0 0.0
    %922 = vmatpush1.msra.mxu0 0.0
    %923 = vmatprep.subr.mxu0 0.0
    %924 = vmatpush1.msra.mxu0 0.0
    %925 = vmatprep.subr.mxu0 0.0
    %926 = vmatpush1.msra.mxu0 0.0
    %927 = vmatprep.subr.mxu0 0.0
    %928 = vmatpush1.msra.mxu0 0.0
    %929 = vmatprep.subr.mxu0 0.0
    %930 = vmatpush1.msra.mxu0 0.0
    %931 = vmatprep.subr.mxu0 0.0
    %932 = vmatpush1.msra.mxu0 0.0
    %933 = vmatprep.subr.mxu0 0.0
    %934 = vmatpush1.msra.mxu0 0.0
    %935 = vmatprep.subr.mxu0 0.0
    %936 = vmatpush1.msra.mxu0 0.0
    %937 = vmatprep.subr.mxu0 0.0
    %938 = vmatpush1.msra.mxu0 0.0
    %939 = vmatprep.subr.mxu0 0.0
    %940 = vmatpush1.msra.mxu0 0.0
    %941 = vmatprep.mubr.f32.mxu0 0.0
    %942 = vmatmul.mubr.f32.gmra.mrb[0].mxu0 %v875
    %v943 = vpop.f32.mrb[0].mxu0
    %v944 = vadd.f32 0.0, %v943
    %v945 = vpop.f32.mrb[0].mxu0
    %v946 = vadd.f32 0.0, %v945
    %947 = vdwg.mxu0
    %v948 = vadd.f32 %v811, %v944
    %v949 = vadd.f32 %v813, %v946
    %v950 = vxor.u32 %v948, 2147483648
    %v951 = vmul.f32 %v950, 1.442695
    %v952 = vpow.pop %v951
    %v953 = vadd.f32 %v952, 1.0
    %v954 = vrcp.pop %v953
    %v955 = vmul.f32 1.0, %v954
    %v956 = vtanh.pop %v949
    %v957 = vxor.u32 %v949, 2147483648
    %v958 = vmul.f32 %v957, 1.442695
    %v959 = vpow.pop %v958
    %v960 = vadd.f32 %v959, 1.0
    %v961 = vrcp.pop %v960
    %v962 = vmul.f32 1.0, %v961
    %v963 = vmul.f32 %v955, 0.0
    %v964 = vmul.f32 %v955, %v956
    %966 = vrot.lane.b32.xlu0 %v964, 64
    %v967 = vpop.permute.xlu0 %966
    %v969 = vadd.f32 %v963, %v967
    %v970 = vtanh.pop %v969
    %v971 = vmul.f32 %v962, %v970
    %973 = vrot.lane.b32.xlu0 %v971, 64
    %v974 = vpop.permute.xlu0 %973
    %976 = vst.msk [vmem:[#allocation2] sm:$0xff] %vm873, %v974
    %v977 = vsel %vm873, %v974, 0
    %979 = vmatprep.subr.mxu0 %v858
    %980 = vmatpush1.msra.mxu0 %v857
    %981 = vmatprep.subr.mxu0 %v860
    %982 = vmatpush1.msra.mxu0 %v859
    %983 = vmatprep.subr.mxu0 %v862
    %984 = vmatpush1.msra.mxu0 %v861
    %985 = vmatprep.subr.mxu0 %v864
    %986 = vmatpush1.msra.mxu0 %v863
    %987 = vmatprep.subr.mxu0 %v866
    %988 = vmatpush1.msra.mxu0 %v865
    %989 = vmatprep.subr.mxu0 %v868
    %990 = vmatpush1.msra.mxu0 %v867
    %991 = vmatprep.subr.mxu0 %v870
    %992 = vmatpush1.msra.mxu0 %v869
    %993 = vmatprep.subr.mxu0 %v872
    %994 = vmatpush1.msra.mxu0 %v871
    %995 = vmatprep.subr.mxu0 0.0
    %996 = vmatpush1.msra.mxu0 0.0
    %997 = vmatprep.subr.mxu0 0.0
    %998 = vmatpush1.msra.mxu0 0.0
    %999 = vmatprep.subr.mxu0 0.0
    %1000 = vmatpush1.msra.mxu0 0.0
    %1001 = vmatprep.subr.mxu0 0.0
    %1002 = vmatpush1.msra.mxu0 0.0
    %1003 = vmatprep.subr.mxu0 0.0
    %1004 = vmatpush1.msra.mxu0 0.0
    %1005 = vmatprep.subr.mxu0 0.0
    %1006 = vmatpush1.msra.mxu0 0.0
    %1007 = vmatprep.subr.mxu0 0.0
    %1008 = vmatpush1.msra.mxu0 0.0
    %1009 = vmatprep.subr.mxu0 0.0
    %1010 = vmatpush1.msra.mxu0 0.0
    %1011 = vmatprep.subr.mxu0 0.0
    %1012 = vmatpush1.msra.mxu0 0.0
    %1013 = vmatprep.subr.mxu0 0.0
    %1014 = vmatpush1.msra.mxu0 0.0
    %1015 = vmatprep.subr.mxu0 0.0
    %1016 = vmatpush1.msra.mxu0 0.0
    %1017 = vmatprep.subr.mxu0 0.0
    %1018 = vmatpush1.msra.mxu0 0.0
    %1019 = vmatprep.subr.mxu0 0.0
    %1020 = vmatpush1.msra.mxu0 0.0
    %1021 = vmatprep.subr.mxu0 0.0
    %1022 = vmatpush1.msra.mxu0 0.0
    %1023 = vmatprep.subr.mxu0 0.0
    %1024 = vmatpush1.msra.mxu0 0.0
    %1025 = vmatprep.subr.mxu0 0.0
    %1026 = vmatpush1.msra.mxu0 0.0
    %1027 = vmatprep.subr.mxu0 0.0
    %1028 = vmatpush1.msra.mxu0 0.0
    %1029 = vmatprep.subr.mxu0 0.0
    %1030 = vmatpush1.msra.mxu0 0.0
    %1031 = vmatprep.subr.mxu0 0.0
    %1032 = vmatpush1.msra.mxu0 0.0
    %1033 = vmatprep.subr.mxu0 0.0
    %1034 = vmatpush1.msra.mxu0 0.0
    %1035 = vmatprep.subr.mxu0 0.0
    %1036 = vmatpush1.msra.mxu0 0.0
    %1037 = vmatprep.subr.mxu0 0.0
    %1038 = vmatpush1.msra.mxu0 0.0
    %1039 = vmatprep.subr.mxu0 0.0
    %1040 = vmatpush1.msra.mxu0 0.0
    %1041 = vmatprep.subr.mxu0 0.0
    %1042 = vmatpush1.msra.mxu0 0.0
    %1043 = vmatprep.mubr.f32.mxu0 0.0
    %1044 = vmatmul.mubr.f32.gmra.mrb[0].mxu0 %v977
    %v1045 = vpop.f32.mrb[0].mxu0
    %v1046 = vadd.f32 0.0, %v1045
    %v1047 = vpop.f32.mrb[0].mxu0
    %v1048 = vadd.f32 0.0, %v1047
    %1049 = vdwg.mxu0
    %v1050 = vadd.f32 %v817, %v1046
    %v1051 = vadd.f32 %v819, %v1048
    %v1052 = vxor.u32 %v1050, 2147483648
    %v1053 = vmul.f32 %v1052, 1.442695
    %v1054 = vpow.pop %v1053
    %v1055 = vadd.f32 %v1054, 1.0
    %v1056 = vrcp.pop %v1055
    %v1057 = vmul.f32 1.0, %v1056
    %v1058 = vtanh.pop %v1051
    %v1059 = vxor.u32 %v1051, 2147483648
    %v1060 = vmul.f32 %v1059, 1.442695
    %v1061 = vpow.pop %v1060
    %v1062 = vadd.f32 %v1061, 1.0
    %v1063 = vrcp.pop %v1062
    %v1064 = vmul.f32 1.0, %v1063
    %v1065 = vmul.f32 %v1057, %v969
    %v1066 = vmul.f32 %v1057, %v1058
    %1068 = vrot.lane.b32.xlu0 %v1066, 64
    %v1069 = vpop.permute.xlu0 %1068
    %v1071 = vadd.f32 %v1065, %v1069
    %v1072 = vtanh.pop %v1071
    %v1073 = vmul.f32 %v1064, %v1072
    %1075 = vrot.lane.b32.xlu0 %v1073, 64
    %v1076 = vpop.permute.xlu0 %1075
    %1078 = vst.msk [vmem:[#allocation2 + $0x8] sm:$0xff] %vm873, %v1076
    %v1079 = vsel %vm873, %v1076, 0
    %1081 = vmatprep.subr.mxu0 %v858
    %1082 = vmatpush1.msra.mxu0 %v857
    %1083 = vmatprep.subr.mxu0 %v860
    %1084 = vmatpush1.msra.mxu0 %v859
    %1085 = vmatprep.subr.mxu0 %v862
    %1086 = vmatpush1.msra.mxu0 %v861
    %1087 = vmatprep.subr.mxu0 %v864
    %1088 = vmatpush1.msra.mxu0 %v863
    %1089 = vmatprep.subr.mxu0 %v866
    %1090 = vmatpush1.msra.mxu0 %v865
    %1091 = vmatprep.subr.mxu0 %v868
    %1092 = vmatpush1.msra.mxu0 %v867
    %1093 = vmatprep.subr.mxu0 %v870
    %1094 = vmatpush1.msra.mxu0 %v869
    %1095 = vmatprep.subr.mxu0 %v872
    %1096 = vmatpush1.msra.mxu0 %v871
    %1097 = vmatprep.subr.mxu0 0.0
    %1098 = vmatpush1.msra.mxu0 0.0
    %1099 = vmatprep.subr.mxu0 0.0
    %1100 = vmatpush1.msra.mxu0 0.0
    %1101 = vmatprep.subr.mxu0 0.0
    %1102 = vmatpush1.msra.mxu0 0.0
    %1103 = vmatprep.subr.mxu0 0.0
    %1104 = vmatpush1.msra.mxu0 0.0
    %1105 = vmatprep.subr.mxu0 0.0
    %1106 = vmatpush1.msra.mxu0 0.0
    %1107 = vmatprep.subr.mxu0 0.0
    %1108 = vmatpush1.msra.mxu0 0.0
    %1109 = vmatprep.subr.mxu0 0.0
    %1110 = vmatpush1.msra.mxu0 0.0
    %1111 = vmatprep.subr.mxu0 0.0
    %1112 = vmatpush1.msra.mxu0 0.0
    %1113 = vmatprep.subr.mxu0 0.0
    %1114 = vmatpush1.msra.mxu0 0.0
    %1115 = vmatprep.subr.mxu0 0.0
    %1116 = vmatpush1.msra.mxu0 0.0
    %1117 = vmatprep.subr.mxu0 0.0
    %1118 = vmatpush1.msra.mxu0 0.0
    %1119 = vmatprep.subr.mxu0 0.0
    %1120 = vmatpush1.msra.mxu0 0.0
    %1121 = vmatprep.subr.mxu0 0.0
    %1122 = vmatpush1.msra.mxu0 0.0
    %1123 = vmatprep.subr.mxu0 0.0
    %1124 = vmatpush1.msra.mxu0 0.0
    %1125 = vmatprep.subr.mxu0 0.0
    %1126 = vmatpush1.msra.mxu0 0.0
    %1127 = vmatprep.subr.mxu0 0.0
    %1128 = vmatpush1.msra.mxu0 0.0
    %1129 = vmatprep.subr.mxu0 0.0
    %1130 = vmatpush1.msra.mxu0 0.0
    %1131 = vmatprep.subr.mxu0 0.0
    %1132 = vmatpush1.msra.mxu0 0.0
    %1133 = vmatprep.subr.mxu0 0.0
    %1134 = vmatpush1.msra.mxu0 0.0
    %1135 = vmatprep.subr.mxu0 0.0
    %1136 = vmatpush1.msra.mxu0 0.0
    %1137 = vmatprep.subr.mxu0 0.0
    %1138 = vmatpush1.msra.mxu0 0.0
    %1139 = vmatprep.subr.mxu0 0.0
    %1140 = vmatpush1.msra.mxu0 0.0
    %1141 = vmatprep.subr.mxu0 0.0
    %1142 = vmatpush1.msra.mxu0 0.0
    %1143 = vmatprep.subr.mxu0 0.0
    %1144 = vmatpush1.msra.mxu0 0.0
    %1145 = vmatprep.mubr.f32.mxu0 0.0
    %1146 = vmatmul.mubr.f32.gmra.mrb[0].mxu0 %v1079
    %v1147 = vpop.f32.mrb[0].mxu0
    %v1148 = vadd.f32 0.0, %v1147
    %v1149 = vpop.f32.mrb[0].mxu0
    %v1150 = vadd.f32 0.0, %v1149
    %1151 = vdwg.mxu0
    %v1152 = vadd.f32 %v823, %v1148
    %v1153 = vadd.f32 %v825, %v1150
    %v1154 = vxor.u32 %v1152, 2147483648
    %v1155 = vmul.f32 %v1154, 1.442695
    %v1156 = vpow.pop %v1155
    %v1157 = vadd.f32 %v1156, 1.0
    %v1158 = vrcp.pop %v1157
    %v1159 = vmul.f32 1.0, %v1158
    %v1160 = vtanh.pop %v1153
    %v1161 = vxor.u32 %v1153, 2147483648
    %v1162 = vmul.f32 %v1161, 1.442695
    %v1163 = vpow.pop %v1162
    %v1164 = vadd.f32 %v1163, 1.0
    %v1165 = vrcp.pop %v1164
    %v1166 = vmul.f32 1.0, %v1165
    %v1167 = vmul.f32 %v1159, %v1071
    %v1168 = vmul.f32 %v1159, %v1160
    %1170 = vrot.lane.b32.xlu0 %v1168, 64
    %v1171 = vpop.permute.xlu0 %1170
    %v1173 = vadd.f32 %v1167, %v1171
    %v1174 = vtanh.pop %v1173
    %v1175 = vmul.f32 %v1166, %v1174
    %1177 = vrot.lane.b32.xlu0 %v1175, 64
    %v1178 = vpop.permute.xlu0 %1177
    %1180 = vst.msk [vmem:[#allocation2 + $0x10] sm:$0xff] %vm873, %v1178
    %v1181 = vsel %vm873, %v1178, 0
    %1183 = vmatprep.subr.mxu0 %v858
    %1184 = vmatpush1.msra.mxu0 %v857
    %1185 = vmatprep.subr.mxu0 %v860
    %1186 = vmatpush1.msra.mxu0 %v859
    %1187 = vmatprep.subr.mxu0 %v862
    %1188 = vmatpush1.msra.mxu0 %v861
    %1189 = vmatprep.subr.mxu0 %v864
    %1190 = vmatpush1.msra.mxu0 %v863
    %1191 = vmatprep.subr.mxu0 %v866
    %1192 = vmatpush1.msra.mxu0 %v865
    %1193 = vmatprep.subr.mxu0 %v868
    %1194 = vmatpush1.msra.mxu0 %v867
    %1195 = vmatprep.subr.mxu0 %v870
    %1196 = vmatpush1.msra.mxu0 %v869
    %1197 = vmatprep.subr.mxu0 %v872
    %1198 = vmatpush1.msra.mxu0 %v871
    %1199 = vmatprep.subr.mxu0 0.0
    %1200 = vmatpush1.msra.mxu0 0.0
    %1201 = vmatprep.subr.mxu0 0.0
    %1202 = vmatpush1.msra.mxu0 0.0
    %1203 = vmatprep.subr.mxu0 0.0
    %1204 = vmatpush1.msra.mxu0 0.0
    %1205 = vmatprep.subr.mxu0 0.0
    %1206 = vmatpush1.msra.mxu0 0.0
    %1207 = vmatprep.subr.mxu0 0.0
    %1208 = vmatpush1.msra.mxu0 0.0
    %1209 = vmatprep.subr.mxu0 0.0
    %1210 = vmatpush1.msra.mxu0 0.0
    %1211 = vmatprep.subr.mxu0 0.0
    %1212 = vmatpush1.msra.mxu0 0.0
    %1213 = vmatprep.subr.mxu0 0.0
    %1214 = vmatpush1.msra.mxu0 0.0
    %1215 = vmatprep.subr.mxu0 0.0
    %1216 = vmatpush1.msra.mxu0 0.0
    %1217 = vmatprep.subr.mxu0 0.0
    %1218 = vmatpush1.msra.mxu0 0.0
    %1219 = vmatprep.subr.mxu0 0.0
    %1220 = vmatpush1.msra.mxu0 0.0
    %1221 = vmatprep.subr.mxu0 0.0
    %1222 = vmatpush1.msra.mxu0 0.0
    %1223 = vmatprep.subr.mxu0 0.0
    %1224 = vmatpush1.msra.mxu0 0.0
    %1225 = vmatprep.subr.mxu0 0.0
    %1226 = vmatpush1.msra.mxu0 0.0
    %1227 = vmatprep.subr.mxu0 0.0
    %1228 = vmatpush1.msra.mxu0 0.0
    %1229 = vmatprep.subr.mxu0 0.0
    %1230 = vmatpush1.msra.mxu0 0.0
    %1231 = vmatprep.subr.mxu0 0.0
    %1232 = vmatpush1.msra.mxu0 0.0
    %1233 = vmatprep.subr.mxu0 0.0
    %1234 = vmatpush1.msra.mxu0 0.0
    %1235 = vmatprep.subr.mxu0 0.0
    %1236 = vmatpush1.msra.mxu0 0.0
    %1237 = vmatprep.subr.mxu0 0.0
    %1238 = vmatpush1.msra.mxu0 0.0
    %1239 = vmatprep.subr.mxu0 0.0
    %1240 = vmatpush1.msra.mxu0 0.0
    %1241 = vmatprep.subr.mxu0 0.0
    %1242 = vmatpush1.msra.mxu0 0.0
    %1243 = vmatprep.subr.mxu0 0.0
    %1244 = vmatpush1.msra.mxu0 0.0
    %1245 = vmatprep.subr.mxu0 0.0
    %1246 = vmatpush1.msra.mxu0 0.0
    %1247 = vmatprep.mubr.f32.mxu0 0.0
    %1248 = vmatmul.mubr.f32.gmra.mrb[0].mxu0 %v1181
    %v1249 = vpop.f32.mrb[0].mxu0
    %v1250 = vadd.f32 0.0, %v1249
    %v1251 = vpop.f32.mrb[0].mxu0
    %v1252 = vadd.f32 0.0, %v1251
    %1253 = vdwg.mxu0
    %v1254 = vadd.f32 %v829, %v1250
    %v1255 = vadd.f32 %v831, %v1252
    %v1256 = vxor.u32 %v1254, 2147483648
    %v1257 = vmul.f32 %v1256, 1.442695
    %v1258 = vpow.pop %v1257
    %v1259 = vadd.f32 %v1258, 1.0
    %v1260 = vrcp.pop %v1259
    %v1261 = vmul.f32 1.0, %v1260
    %v1262 = vtanh.pop %v1255
    %v1263 = vxor.u32 %v1255, 2147483648
    %v1264 = vmul.f32 %v1263, 1.442695
    %v1265 = vpow.pop %v1264
    %v1266 = vadd.f32 %v1265, 1.0
    %v1267 = vrcp.pop %v1266
    %v1268 = vmul.f32 1.0, %v1267
    %v1269 = vmul.f32 %v1261, %v1173
    %v1270 = vmul.f32 %v1261, %v1262
    %1272 = vrot.lane.b32.xlu0 %v1270, 64
    %v1273 = vpop.permute.xlu0 %1272
    %v1275 = vadd.f32 %v1269, %v1273
    %v1276 = vtanh.pop %v1275
    %v1277 = vmul.f32 %v1268, %v1276
    %1279 = vrot.lane.b32.xlu0 %v1277, 64
    %v1280 = vpop.permute.xlu0 %1279
    %1282 = vst.msk [vmem:[#allocation2 + $0x18] sm:$0xff] %vm873, %v1280
    %v1283 = vsel %vm873, %v1280, 0
    %1285 = vmatprep.subr.mxu0 %v858
    %1286 = vmatpush1.msra.mxu0 %v857
    %1287 = vmatprep.subr.mxu0 %v860
    %1288 = vmatpush1.msra.mxu0 %v859
    %1289 = vmatprep.subr.mxu0 %v862
    %1290 = vmatpush1.msra.mxu0 %v861
    %1291 = vmatprep.subr.mxu0 %v864
    %1292 = vmatpush1.msra.mxu0 %v863
    %1293 = vmatprep.subr.mxu0 %v866
    %1294 = vmatpush1.msra.mxu0 %v865
    %1295 = vmatprep.subr.mxu0 %v868
    %1296 = vmatpush1.msra.mxu0 %v867
    %1297 = vmatprep.subr.mxu0 %v870
    %1298 = vmatpush1.msra.mxu0 %v869
    %1299 = vmatprep.subr.mxu0 %v872
    %1300 = vmatpush1.msra.mxu0 %v871
    %1301 = vmatprep.subr.mxu0 0.0
    %1302 = vmatpush1.msra.mxu0 0.0
    %1303 = vmatprep.subr.mxu0 0.0
    %1304 = vmatpush1.msra.mxu0 0.0
    %1305 = vmatprep.subr.mxu0 0.0
    %1306 = vmatpush1.msra.mxu0 0.0
    %1307 = vmatprep.subr.mxu0 0.0
    %1308 = vmatpush1.msra.mxu0 0.0
    %1309 = vmatprep.subr.mxu0 0.0
    %1310 = vmatpush1.msra.mxu0 0.0
    %1311 = vmatprep.subr.mxu0 0.0
    %1312 = vmatpush1.msra.mxu0 0.0
    %1313 = vmatprep.subr.mxu0 0.0
    %1314 = vmatpush1.msra.mxu0 0.0
    %1315 = vmatprep.subr.mxu0 0.0
    %1316 = vmatpush1.msra.mxu0 0.0
    %1317 = vmatprep.subr.mxu0 0.0
    %1318 = vmatpush1.msra.mxu0 0.0
    %1319 = vmatprep.subr.mxu0 0.0
    %1320 = vmatpush1.msra.mxu0 0.0
    %1321 = vmatprep.subr.mxu0 0.0
    %1322 = vmatpush1.msra.mxu0 0.0
    %1323 = vmatprep.subr.mxu0 0.0
    %1324 = vmatpush1.msra.mxu0 0.0
    %1325 = vmatprep.subr.mxu0 0.0
    %1326 = vmatpush1.msra.mxu0 0.0
    %1327 = vmatprep.subr.mxu0 0.0
    %1328 = vmatpush1.msra.mxu0 0.0
    %1329 = vmatprep.subr.mxu0 0.0
    %1330 = vmatpush1.msra.mxu0 0.0
    %1331 = vmatprep.subr.mxu0 0.0
    %1332 = vmatpush1.msra.mxu0 0.0
    %1333 = vmatprep.subr.mxu0 0.0
    %1334 = vmatpush1.msra.mxu0 0.0
    %1335 = vmatprep.subr.mxu0 0.0
    %1336 = vmatpush1.msra.mxu0 0.0
    %1337 = vmatprep.subr.mxu0 0.0
    %1338 = vmatpush1.msra.mxu0 0.0
    %1339 = vmatprep.subr.mxu0 0.0
    %1340 = vmatpush1.msra.mxu0 0.0
    %1341 = vmatprep.subr.mxu0 0.0
    %1342 = vmatpush1.msra.mxu0 0.0
    %1343 = vmatprep.subr.mxu0 0.0
    %1344 = vmatpush1.msra.mxu0 0.0
    %1345 = vmatprep.subr.mxu0 0.0
    %1346 = vmatpush1.msra.mxu0 0.0
    %1347 = vmatprep.subr.mxu0 0.0
    %1348 = vmatpush1.msra.mxu0 0.0
    %1349 = vmatprep.mubr.f32.mxu0 0.0
    %1350 = vmatmul.mubr.f32.gmra.mrb[0].mxu0 %v1283
    %v1351 = vpop.f32.mrb[0].mxu0
    %v1352 = vadd.f32 0.0, %v1351
    %v1353 = vpop.f32.mrb[0].mxu0
    %v1354 = vadd.f32 0.0, %v1353
    %1355 = vdwg.mxu0
    %v1356 = vadd.f32 %v835, %v1352
    %v1357 = vadd.f32 %v837, %v1354
    %v1358 = vxor.u32 %v1356, 2147483648
    %v1359 = vmul.f32 %v1358, 1.442695
    %v1360 = vpow.pop %v1359
    %v1361 = vadd.f32 %v1360, 1.0
    %v1362 = vrcp.pop %v1361
    %v1363 = vmul.f32 1.0, %v1362
    %v1364 = vtanh.pop %v1357
    %v1365 = vxor.u32 %v1357, 2147483648
    %v1366 = vmul.f32 %v1365, 1.442695
    %v1367 = vpow.pop %v1366
    %v1368 = vadd.f32 %v1367, 1.0
    %v1369 = vrcp.pop %v1368
    %v1370 = vmul.f32 1.0, %v1369
    %v1371 = vmul.f32 %v1363, %v1275
    %v1372 = vmul.f32 %v1363, %v1364
    %1374 = vrot.lane.b32.xlu0 %v1372, 64
    %v1375 = vpop.permute.xlu0 %1374
    %v1377 = vadd.f32 %v1371, %v1375
    %v1378 = vtanh.pop %v1377
    %v1379 = vmul.f32 %v1370, %v1378
    %1381 = vrot.lane.b32.xlu0 %v1379, 64
    %v1382 = vpop.permute.xlu0 %1381
    %1384 = vst.msk [vmem:[#allocation2 + $0x20] sm:$0xff] %vm873, %v1382
    %v1385 = vsel %vm873, %v1382, 0
    %1387 = vmatprep.subr.mxu0 %v858
    %1388 = vmatpush1.msra.mxu0 %v857
    %1389 = vmatprep.subr.mxu0 %v860
    %1390 = vmatpush1.msra.mxu0 %v859
    %1391 = vmatprep.subr.mxu0 %v862
    %1392 = vmatpush1.msra.mxu0 %v861
    %1393 = vmatprep.subr.mxu0 %v864
    %1394 = vmatpush1.msra.mxu0 %v863
    %1395 = vmatprep.subr.mxu0 %v866
    %1396 = vmatpush1.msra.mxu0 %v865
    %1397 = vmatprep.subr.mxu0 %v868
    %1398 = vmatpush1.msra.mxu0 %v867
    %1399 = vmatprep.subr.mxu0 %v870
    %1400 = vmatpush1.msra.mxu0 %v869
    %1401 = vmatprep.subr.mxu0 %v872
    %1402 = vmatpush1.msra.mxu0 %v871
    %1403 = vmatprep.subr.mxu0 0.0
    %1404 = vmatpush1.msra.mxu0 0.0
    %1405 = vmatprep.subr.mxu0 0.0
    %1406 = vmatpush1.msra.mxu0 0.0
    %1407 = vmatprep.subr.mxu0 0.0
    %1408 = vmatpush1.msra.mxu0 0.0
    %1409 = vmatprep.subr.mxu0 0.0
    %1410 = vmatpush1.msra.mxu0 0.0
    %1411 = vmatprep.subr.mxu0 0.0
    %1412 = vmatpush1.msra.mxu0 0.0
    %1413 = vmatprep.subr.mxu0 0.0
    %1414 = vmatpush1.msra.mxu0 0.0
    %1415 = vmatprep.subr.mxu0 0.0
    %1416 = vmatpush1.msra.mxu0 0.0
    %1417 = vmatprep.subr.mxu0 0.0
    %1418 = vmatpush1.msra.mxu0 0.0
    %1419 = vmatprep.subr.mxu0 0.0
    %1420 = vmatpush1.msra.mxu0 0.0
    %1421 = vmatprep.subr.mxu0 0.0
    %1422 = vmatpush1.msra.mxu0 0.0
    %1423 = vmatprep.subr.mxu0 0.0
    %1424 = vmatpush1.msra.mxu0 0.0
    %1425 = vmatprep.subr.mxu0 0.0
    %1426 = vmatpush1.msra.mxu0 0.0
    %1427 = vmatprep.subr.mxu0 0.0
    %1428 = vmatpush1.msra.mxu0 0.0
    %1429 = vmatprep.subr.mxu0 0.0
    %1430 = vmatpush1.msra.mxu0 0.0
    %1431 = vmatprep.subr.mxu0 0.0
    %1432 = vmatpush1.msra.mxu0 0.0
    %1433 = vmatprep.subr.mxu0 0.0
    %1434 = vmatpush1.msra.mxu0 0.0
    %1435 = vmatprep.subr.mxu0 0.0
    %1436 = vmatpush1.msra.mxu0 0.0
    %1437 = vmatprep.subr.mxu0 0.0
    %1438 = vmatpush1.msra.mxu0 0.0
    %1439 = vmatprep.subr.mxu0 0.0
    %1440 = vmatpush1.msra.mxu0 0.0
    %1441 = vmatprep.subr.mxu0 0.0
    %1442 = vmatpush1.msra.mxu0 0.0
    %1443 = vmatprep.subr.mxu0 0.0
    %1444 = vmatpush1.msra.mxu0 0.0
    %1445 = vmatprep.subr.mxu0 0.0
    %1446 = vmatpush1.msra.mxu0 0.0
    %1447 = vmatprep.subr.mxu0 0.0
    %1448 = vmatpush1.msra.mxu0 0.0
    %1449 = vmatprep.subr.mxu0 0.0
    %1450 = vmatpush1.msra.mxu0 0.0
    %1451 = vmatprep.mubr.f32.mxu0 0.0
    %1452 = vmatmul.mubr.f32.gmra.mrb[0].mxu0 %v1385
    %v1453 = vpop.f32.mrb[0].mxu0
    %v1454 = vadd.f32 0.0, %v1453
    %v1455 = vpop.f32.mrb[0].mxu0
    %v1456 = vadd.f32 0.0, %v1455
    %1457 = vdwg.mxu0
    %v1458 = vadd.f32 %v841, %v1454
    %v1459 = vadd.f32 %v843, %v1456
    %v1460 = vxor.u32 %v1458, 2147483648
    %v1461 = vmul.f32 %v1460, 1.442695
    %v1462 = vpow.pop %v1461
    %v1463 = vadd.f32 %v1462, 1.0
    %v1464 = vrcp.pop %v1463
    %v1465 = vmul.f32 1.0, %v1464
    %v1466 = vtanh.pop %v1459
    %v1467 = vxor.u32 %v1459, 2147483648
    %v1468 = vmul.f32 %v1467, 1.442695
    %v1469 = vpow.pop %v1468
    %v1470 = vadd.f32 %v1469, 1.0
    %v1471 = vrcp.pop %v1470
    %v1472 = vmul.f32 1.0, %v1471
    %v1473 = vmul.f32 %v1465, %v1377
    %v1474 = vmul.f32 %v1465, %v1466
    %1476 = vrot.lane.b32.xlu0 %v1474, 64
    %v1477 = vpop.permute.xlu0 %1476
    %v1479 = vadd.f32 %v1473, %v1477
    %v1480 = vtanh.pop %v1479
    %v1481 = vmul.f32 %v1472, %v1480
    %1483 = vrot.lane.b32.xlu0 %v1481, 64
    %v1484 = vpop.permute.xlu0 %1483
    %1486 = vst.msk [vmem:[#allocation2 + $0x28] sm:$0xff] %vm873, %v1484
    %v1487 = vsel %vm873, %v1484, 0
    %1489 = vmatprep.subr.mxu0 %v858
    %1490 = vmatpush1.msra.mxu0 %v857
    %1491 = vmatprep.subr.mxu0 %v860
    %1492 = vmatpush1.msra.mxu0 %v859
    %1493 = vmatprep.subr.mxu0 %v862
    %1494 = vmatpush1.msra.mxu0 %v861
    %1495 = vmatprep.subr.mxu0 %v864
    %1496 = vmatpush1.msra.mxu0 %v863
    %1497 = vmatprep.subr.mxu0 %v866
    %1498 = vmatpush1.msra.mxu0 %v865
    %1499 = vmatprep.subr.mxu0 %v868
    %1500 = vmatpush1.msra.mxu0 %v867
    %1501 = vmatprep.subr.mxu0 %v870
    %1502 = vmatpush1.msra.mxu0 %v869
    %1503 = vmatprep.subr.mxu0 %v872
    %1504 = vmatpush1.msra.mxu0 %v871
    %1505 = vmatprep.subr.mxu0 0.0
    %1506 = vmatpush1.msra.mxu0 0.0
    %1507 = vmatprep.subr.mxu0 0.0
    %1508 = vmatpush1.msra.mxu0 0.0
    %1509 = vmatprep.subr.mxu0 0.0
    %1510 = vmatpush1.msra.mxu0 0.0
    %1511 = vmatprep.subr.mxu0 0.0
    %1512 = vmatpush1.msra.mxu0 0.0
    %1513 = vmatprep.subr.mxu0 0.0
    %1514 = vmatpush1.msra.mxu0 0.0
    %1515 = vmatprep.subr.mxu0 0.0
    %1516 = vmatpush1.msra.mxu0 0.0
    %1517 = vmatprep.subr.mxu0 0.0
    %1518 = vmatpush1.msra.mxu0 0.0
    %1519 = vmatprep.subr.mxu0 0.0
    %1520 = vmatpush1.msra.mxu0 0.0
    %1521 = vmatprep.subr.mxu0 0.0
    %1522 = vmatpush1.msra.mxu0 0.0
    %1523 = vmatprep.subr.mxu0 0.0
    %1524 = vmatpush1.msra.mxu0 0.0
    %1525 = vmatprep.subr.mxu0 0.0
    %1526 = vmatpush1.msra.mxu0 0.0
    %1527 = vmatprep.subr.mxu0 0.0
    %1528 = vmatpush1.msra.mxu0 0.0
    %1529 = vmatprep.subr.mxu0 0.0
    %1530 = vmatpush1.msra.mxu0 0.0
    %1531 = vmatprep.subr.mxu0 0.0
    %1532 = vmatpush1.msra.mxu0 0.0
    %1533 = vmatprep.subr.mxu0 0.0
    %1534 = vmatpush1.msra.mxu0 0.0
    %1535 = vmatprep.subr.mxu0 0.0
    %1536 = vmatpush1.msra.mxu0 0.0
    %1537 = vmatprep.subr.mxu0 0.0
    %1538 = vmatpush1.msra.mxu0 0.0
    %1539 = vmatprep.subr.mxu0 0.0
    %1540 = vmatpush1.msra.mxu0 0.0
    %1541 = vmatprep.subr.mxu0 0.0
    %1542 = vmatpush1.msra.mxu0 0.0
    %1543 = vmatprep.subr.mxu0 0.0
    %1544 = vmatpush1.msra.mxu0 0.0
    %1545 = vmatprep.subr.mxu0 0.0
    %1546 = vmatpush1.msra.mxu0 0.0
    %1547 = vmatprep.subr.mxu0 0.0
    %1548 = vmatpush1.msra.mxu0 0.0
    %1549 = vmatprep.subr.mxu0 0.0
    %1550 = vmatpush1.msra.mxu0 0.0
    %1551 = vmatprep.subr.mxu0 0.0
    %1552 = vmatpush1.msra.mxu0 0.0
    %1553 = vmatprep.mubr.f32.mxu0 0.0
    %1554 = vmatmul.mubr.f32.gmra.mrb[0].mxu0 %v1487
    %v1555 = vpop.f32.mrb[0].mxu0
    %v1556 = vadd.f32 0.0, %v1555
    %v1557 = vpop.f32.mrb[0].mxu0
    %v1558 = vadd.f32 0.0, %v1557
    %1559 = vdwg.mxu0
    %v1560 = vadd.f32 %v847, %v1556
    %v1561 = vadd.f32 %v849, %v1558
    %v1562 = vxor.u32 %v1560, 2147483648
    %v1563 = vmul.f32 %v1562, 1.442695
    %v1564 = vpow.pop %v1563
    %v1565 = vadd.f32 %v1564, 1.0
    %v1566 = vrcp.pop %v1565
    %v1567 = vmul.f32 1.0, %v1566
    %v1568 = vtanh.pop %v1561
    %v1569 = vxor.u32 %v1561, 2147483648
    %v1570 = vmul.f32 %v1569, 1.442695
    %v1571 = vpow.pop %v1570
    %v1572 = vadd.f32 %v1571, 1.0
    %v1573 = vrcp.pop %v1572
    %v1574 = vmul.f32 1.0, %v1573
    %v1575 = vmul.f32 %v1567, %v1479
    %v1576 = vmul.f32 %v1567, %v1568
    %1578 = vrot.lane.b32.xlu0 %v1576, 64
    %v1579 = vpop.permute.xlu0 %1578
    %v1581 = vadd.f32 %v1575, %v1579
    %v1582 = vtanh.pop %v1581
    %v1583 = vmul.f32 %v1574, %v1582
    %1585 = vrot.lane.b32.xlu0 %v1583, 64
    %v1586 = vpop.permute.xlu0 %1585
    %1588 = vst.msk [vmem:[#allocation2 + $0x30] sm:$0xff] %vm873, %v1586
    %v1589 = vsel %vm873, %v1586, 0
    %1591 = vmatprep.subr.mxu0 %v858
    %1592 = vmatpush1.msra.mxu0 %v857
    %1593 = vmatprep.subr.mxu0 %v860
    %1594 = vmatpush1.msra.mxu0 %v859
    %1595 = vmatprep.subr.mxu0 %v862
    %1596 = vmatpush1.msra.mxu0 %v861
    %1597 = vmatprep.subr.mxu0 %v864
    %1598 = vmatpush1.msra.mxu0 %v863
    %1599 = vmatprep.subr.mxu0 %v866
    %1600 = vmatpush1.msra.mxu0 %v865
    %1601 = vmatprep.subr.mxu0 %v868
    %1602 = vmatpush1.msra.mxu0 %v867
    %1603 = vmatprep.subr.mxu0 %v870
    %1604 = vmatpush1.msra.mxu0 %v869
    %1605 = vmatprep.subr.mxu0 %v872
    %1606 = vmatpush1.msra.mxu0 %v871
    %1607 = vmatprep.subr.mxu0 0.0
    %1608 = vmatpush1.msra.mxu0 0.0
    %1609 = vmatprep.subr.mxu0 0.0
    %1610 = vmatpush1.msra.mxu0 0.0
    %1611 = vmatprep.subr.mxu0 0.0
    %1612 = vmatpush1.msra.mxu0 0.0
    %1613 = vmatprep.subr.mxu0 0.0
    %1614 = vmatpush1.msra.mxu0 0.0
    %1615 = vmatprep.subr.mxu0 0.0
    %1616 = vmatpush1.msra.mxu0 0.0
    %1617 = vmatprep.subr.mxu0 0.0
    %1618 = vmatpush1.msra.mxu0 0.0
    %1619 = vmatprep.subr.mxu0 0.0
    %1620 = vmatpush1.msra.mxu0 0.0
    %1621 = vmatprep.subr.mxu0 0.0
    %1622 = vmatpush1.msra.mxu0 0.0
    %1623 = vmatprep.subr.mxu0 0.0
    %1624 = vmatpush1.msra.mxu0 0.0
    %1625 = vmatprep.subr.mxu0 0.0
    %1626 = vmatpush1.msra.mxu0 0.0
    %1627 = vmatprep.subr.mxu0 0.0
    %1628 = vmatpush1.msra.mxu0 0.0
    %1629 = vmatprep.subr.mxu0 0.0
    %1630 = vmatpush1.msra.mxu0 0.0
    %1631 = vmatprep.subr.mxu0 0.0
    %1632 = vmatpush1.msra.mxu0 0.0
    %1633 = vmatprep.subr.mxu0 0.0
    %1634 = vmatpush1.msra.mxu0 0.0
    %1635 = vmatprep.subr.mxu0 0.0
    %1636 = vmatpush1.msra.mxu0 0.0
    %1637 = vmatprep.subr.mxu0 0.0
    %1638 = vmatpush1.msra.mxu0 0.0
    %1639 = vmatprep.subr.mxu0 0.0
    %1640 = vmatpush1.msra.mxu0 0.0
    %1641 = vmatprep.subr.mxu0 0.0
    %1642 = vmatpush1.msra.mxu0 0.0
    %1643 = vmatprep.subr.mxu0 0.0
    %1644 = vmatpush1.msra.mxu0 0.0
    %1645 = vmatprep.subr.mxu0 0.0
    %1646 = vmatpush1.msra.mxu0 0.0
    %1647 = vmatprep.subr.mxu0 0.0
    %1648 = vmatpush1.msra.mxu0 0.0
    %1649 = vmatprep.subr.mxu0 0.0
    %1650 = vmatpush1.msra.mxu0 0.0
    %1651 = vmatprep.subr.mxu0 0.0
    %1652 = vmatpush1.msra.mxu0 0.0
    %1653 = vmatprep.subr.mxu0 0.0
    %1654 = vmatpush1.msra.mxu0 0.0
    %1655 = vmatprep.mubr.f32.mxu0 0.0
    %1656 = vmatmul.mubr.f32.gmra.mrb[0].mxu0 %v1589
    %v1657 = vpop.f32.mrb[0].mxu0
    %v1658 = vadd.f32 0.0, %v1657
    %v1659 = vpop.f32.mrb[0].mxu0
    %v1660 = vadd.f32 0.0, %v1659
    %1661 = vdwg.mxu0
    %v1662 = vadd.f32 %v853, %v1658
    %v1663 = vadd.f32 %v855, %v1660
    %v1664 = vxor.u32 %v1662, 2147483648
    %v1665 = vmul.f32 %v1664, 1.442695
    %v1666 = vpow.pop %v1665
    %v1667 = vadd.f32 %v1666, 1.0
    %v1668 = vrcp.pop %v1667
    %v1669 = vmul.f32 1.0, %v1668
    %v1670 = vtanh.pop %v1663
    %v1671 = vxor.u32 %v1663, 2147483648
    %v1672 = vmul.f32 %v1671, 1.442695
    %v1673 = vpow.pop %v1672
    %v1674 = vadd.f32 %v1673, 1.0
    %v1675 = vrcp.pop %v1674
    %v1676 = vmul.f32 1.0, %v1675
    %v1677 = vmul.f32 %v1669, %v1581
    %v1678 = vmul.f32 %v1669, %v1670
    %1680 = vrot.lane.b32.xlu0 %v1678, 64
    %v1681 = vpop.permute.xlu0 %1680
    %v1683 = vadd.f32 %v1677, %v1681
    %v1684 = vtanh.pop %v1683
    %v1685 = vmul.f32 %v1676, %v1684
    %1687 = vrot.lane.b32.xlu0 %v1685, 64
    %v1688 = vpop.permute.xlu0 %1687
    %1690 = vst.msk [vmem:[#allocation2 + $0x38] sm:$0xff] %vm873, %v1688
    %v1691 = vld [vmem:[#allocation2] sm:$0xff]
    %v1692 = vld [vmem:[#allocation2 + $0x8] sm:$0xff]
    %v1693 = vld [vmem:[#allocation2 + $0x10] sm:$0xff]
    %v1694 = vld [vmem:[#allocation2 + $0x18] sm:$0xff]
    %v1695 = vld [vmem:[#allocation2 + $0x20] sm:$0xff]
    %v1696 = vld [vmem:[#allocation2 + $0x28] sm:$0xff]
    %v1697 = vld [vmem:[#allocation2 + $0x30] sm:$0xff]
    %v1698 = vld [vmem:[#allocation2 + $0x38] sm:$0xff]
    %v1699 = vld [vmem:[#allocation10] sm:$0xff]
    %v1700 = vld [vmem:[#allocation10 + $0x8] sm:$0xff]
    %v1701 = vld [vmem:[#allocation10 + $0x10] sm:$0xff]
    %v1702 = vld [vmem:[#allocation10 + $0x18] sm:$0xff]
    %v1703 = vld [vmem:[#allocation10 + $0x20] sm:$0xff]
    %v1704 = vld [vmem:[#allocation10 + $0x28] sm:$0xff]
    %v1705 = vld [vmem:[#allocation10 + $0x30] sm:$0xff]
    %v1706 = vld [vmem:[#allocation10 + $0x38] sm:$0xff]
    %v1707 = vld [vmem:[#allocation10 + $0x40] sm:$0xff]
    %v1708 = vld [vmem:[#allocation10 + $0x48] sm:$0xff]
    %v1709 = vld [vmem:[#allocation10 + $0x50] sm:$0xff]
    %v1710 = vld [vmem:[#allocation10 + $0x58] sm:$0xff]
    %v1711 = vld [vmem:[#allocation10 + $0x60] sm:$0xff]
    %v1712 = vld [vmem:[#allocation10 + $0x68] sm:$0xff]
    %v1713 = vld [vmem:[#allocation10 + $0x70] sm:$0xff]
    %v1714 = vld [vmem:[#allocation10 + $0x78] sm:$0xff]
    %v1715 = vld [vmem:[#allocation13] sm:$0x3]
    %v1717 = vlaneseq
    %v1718 = vshrl.u32 %v1717, 7
    %v1719 = vsub.s32 0, %v1718
    %v1720 = vrot.slane %v1715, %v1719
    %v1721 = vlaneseq
    %v1722 = vshrl.u32 %v1721, 7
    %v1723 = vsub.s32 1, %v1722
    %v1724 = vrot.slane %v1715, %v1723
    %v1728 = vsel %vm873, %v1691, 0
    %v1731 = vsel %vm873, %v1692, 0
    %v1734 = vsel %vm873, %v1693, 0
    %v1737 = vsel %vm873, %v1694, 0
    %v1740 = vsel %vm873, %v1695, 0
    %v1743 = vsel %vm873, %v1696, 0
    %v1746 = vsel %vm873, %v1697, 0
    %v1749 = vsel %vm873, %v1698, 0
    %1751 = vmatprep.subr.mxu0 %v1700
    %1752 = vmatpush1.msra.mxu0 %v1699
    %1753 = vmatprep.subr.mxu0 %v1702
    %1754 = vmatpush1.msra.mxu0 %v1701
    %1755 = vmatprep.subr.mxu0 %v1704
    %1756 = vmatpush1.msra.mxu0 %v1703
    %1757 = vmatprep.subr.mxu0 %v1706
    %1758 = vmatpush1.msra.mxu0 %v1705
    %1759 = vmatprep.subr.mxu0 %v1708
    %1760 = vmatpush1.msra.mxu0 %v1707
    %1761 = vmatprep.subr.mxu0 %v1710
    %1762 = vmatpush1.msra.mxu0 %v1709
    %1763 = vmatprep.subr.mxu0 %v1712
    %1764 = vmatpush1.msra.mxu0 %v1711
    %1765 = vmatprep.subr.mxu0 %v1714
    %1766 = vmatpush1.msra.mxu0 %v1713
    %1767 = vmatprep.subr.mxu0 0.0
    %1768 = vmatpush1.msra.mxu0 0.0
    %1769 = vmatprep.subr.mxu0 0.0
    %1770 = vmatpush1.msra.mxu0 0.0
    %1771 = vmatprep.subr.mxu0 0.0
    %1772 = vmatpush1.msra.mxu0 0.0
    %1773 = vmatprep.subr.mxu0 0.0
    %1774 = vmatpush1.msra.mxu0 0.0
    %1775 = vmatprep.subr.mxu0 0.0
    %1776 = vmatpush1.msra.mxu0 0.0
    %1777 = vmatprep.subr.mxu0 0.0
    %1778 = vmatpush1.msra.mxu0 0.0
    %1779 = vmatprep.subr.mxu0 0.0
    %1780 = vmatpush1.msra.mxu0 0.0
    %1781 = vmatprep.subr.mxu0 0.0
    %1782 = vmatpush1.msra.mxu0 0.0
    %1783 = vmatprep.subr.mxu0 0.0
    %1784 = vmatpush1.msra.mxu0 0.0
    %1785 = vmatprep.subr.mxu0 0.0
    %1786 = vmatpush1.msra.mxu0 0.0
    %1787 = vmatprep.subr.mxu0 0.0
    %1788 = vmatpush1.msra.mxu0 0.0
    %1789 = vmatprep.subr.mxu0 0.0
    %1790 = vmatpush1.msra.mxu0 0.0
    %1791 = vmatprep.subr.mxu0 0.0
    %1792 = vmatpush1.msra.mxu0 0.0
    %1793 = vmatprep.subr.mxu0 0.0
    %1794 = vmatpush1.msra.mxu0 0.0
    %1795 = vmatprep.subr.mxu0 0.0
    %1796 = vmatpush1.msra.mxu0 0.0
    %1797 = vmatprep.subr.mxu0 0.0
    %1798 = vmatpush1.msra.mxu0 0.0
    %1799 = vmatprep.subr.mxu0 0.0
    %1800 = vmatpush1.msra.mxu0 0.0
    %1801 = vmatprep.subr.mxu0 0.0
    %1802 = vmatpush1.msra.mxu0 0.0
    %1803 = vmatprep.subr.mxu0 0.0
    %1804 = vmatpush1.msra.mxu0 0.0
    %1805 = vmatprep.subr.mxu0 0.0
    %1806 = vmatpush1.msra.mxu0 0.0
    %1807 = vmatprep.subr.mxu0 0.0
    %1808 = vmatpush1.msra.mxu0 0.0
    %1809 = vmatprep.subr.mxu0 0.0
    %1810 = vmatpush1.msra.mxu0 0.0
    %1811 = vmatprep.subr.mxu0 0.0
    %1812 = vmatpush1.msra.mxu0 0.0
    %1813 = vmatprep.subr.mxu0 0.0
    %1814 = vmatpush1.msra.mxu0 0.0
    %1815 = vmatprep.mubr.f32.mxu0 0.0
    %1816 = vmatmul.mubr.f32.gmra.mrb[0].mxu0 %v1728
    %v1817 = vpop.f32.mrb[0].mxu0
    %v1818 = vadd.f32 %v1720, %v1817
    %v1819 = vpop.f32.mrb[0].mxu0
    %v1820 = vadd.f32 %v1724, %v1819
    %1821 = vmatprep.mubr.f32.mxu0 0.0
    %1822 = vmatmul.mubr.f32.gmra.mrb[0].mxu0 %v1731
    %v1823 = vpop.f32.mrb[0].mxu0
    %v1824 = vadd.f32 %v1720, %v1823
    %v1825 = vpop.f32.mrb[0].mxu0
    %v1826 = vadd.f32 %v1724, %v1825
    %1827 = vmatprep.mubr.f32.mxu0 0.0
    %1828 = vmatmul.mubr.f32.gmra.mrb[0].mxu0 %v1734
    %v1829 = vpop.f32.mrb[0].mxu0
    %v1830 = vadd.f32 %v1720, %v1829
    %v1831 = vpop.f32.mrb[0].mxu0
    %v1832 = vadd.f32 %v1724, %v1831
    %1833 = vmatprep.mubr.f32.mxu0 0.0
    %1834 = vmatmul.mubr.f32.gmra.mrb[0].mxu0 %v1737
    %v1835 = vpop.f32.mrb[0].mxu0
    %v1836 = vadd.f32 %v1720, %v1835
    %v1837 = vpop.f32.mrb[0].mxu0
    %v1838 = vadd.f32 %v1724, %v1837
    %1839 = vmatprep.mubr.f32.mxu0 0.0
    %1840 = vmatmul.mubr.f32.gmra.mrb[0].mxu0 %v1740
    %v1841 = vpop.f32.mrb[0].mxu0
    %v1842 = vadd.f32 %v1720, %v1841
    %v1843 = vpop.f32.mrb[0].mxu0
    %v1844 = vadd.f32 %v1724, %v1843
    %1845 = vmatprep.mubr.f32.mxu0 0.0
    %1846 = vmatmul.mubr.f32.gmra.mrb[0].mxu0 %v1743
    %v1847 = vpop.f32.mrb[0].mxu0
    %v1848 = vadd.f32 %v1720, %v1847
    %v1849 = vpop.f32.mrb[0].mxu0
    %v1850 = vadd.f32 %v1724, %v1849
    %1851 = vmatprep.mubr.f32.mxu0 0.0
    %1852 = vmatmul.mubr.f32.gmra.mrb[0].mxu0 %v1746
    %v1853 = vpop.f32.mrb[0].mxu0
    %v1854 = vadd.f32 %v1720, %v1853
    %v1855 = vpop.f32.mrb[0].mxu0
    %v1856 = vadd.f32 %v1724, %v1855
    %1857 = vmatprep.mubr.f32.mxu0 0.0
    %1858 = vmatmul.mubr.f32.gmra.mrb[0].mxu0 %v1749
    %v1859 = vpop.f32.mrb[0].mxu0
    %v1860 = vadd.f32 %v1720, %v1859
    %v1861 = vpop.f32.mrb[0].mxu0
    %v1862 = vadd.f32 %v1724, %v1861
    %1863 = vdwg.mxu0
    %v1864 = vld [vmem:[#allocation12] sm:$0xff]
    %v1865 = vld [vmem:[#allocation12 + $0x8] sm:$0xff]
    %v1866 = vld [vmem:[#allocation12 + $0x10] sm:$0xff]
    %v1867 = vld [vmem:[#allocation12 + $0x18] sm:$0xff]
    %v1868 = vld [vmem:[#allocation12 + $0x20] sm:$0xff]
    %v1869 = vld [vmem:[#allocation12 + $0x28] sm:$0xff]
    %v1870 = vld [vmem:[#allocation12 + $0x30] sm:$0xff]
    %v1871 = vld [vmem:[#allocation12 + $0x38] sm:$0xff]
    %v1872 = vld [vmem:[#allocation12 + $0x40] sm:$0xff]
    %v1873 = vld [vmem:[#allocation12 + $0x48] sm:$0xff]
    %v1874 = vld [vmem:[#allocation12 + $0x50] sm:$0xff]
    %v1875 = vld [vmem:[#allocation12 + $0x58] sm:$0xff]
    %v1876 = vld [vmem:[#allocation12 + $0x60] sm:$0xff]
    %v1877 = vld [vmem:[#allocation12 + $0x68] sm:$0xff]
    %v1878 = vld [vmem:[#allocation12 + $0x70] sm:$0xff]
    %v1879 = vld [vmem:[#allocation12 + $0x78] sm:$0xff]
    %1880 = vmatprep.subr.mxu0 %v1865
    %1881 = vmatpush1.msra.mxu0 %v1864
    %1882 = vmatprep.subr.mxu0 %v1867
    %1883 = vmatpush1.msra.mxu0 %v1866
    %1884 = vmatprep.subr.mxu0 %v1869
    %1885 = vmatpush1.msra.mxu0 %v1868
    %1886 = vmatprep.subr.mxu0 %v1871
    %1887 = vmatpush1.msra.mxu0 %v1870
    %1888 = vmatprep.subr.mxu0 %v1873
    %1889 = vmatpush1.msra.mxu0 %v1872
    %1890 = vmatprep.subr.mxu0 %v1875
    %1891 = vmatpush1.msra.mxu0 %v1874
    %1892 = vmatprep.subr.mxu0 %v1877
    %1893 = vmatpush1.msra.mxu0 %v1876
    %1894 = vmatprep.subr.mxu0 %v1879
    %1895 = vmatpush1.msra.mxu0 %v1878
    %1896 = vmatprep.subr.mxu0 0.0
    %1897 = vmatpush1.msra.mxu0 0.0
    %1898 = vmatprep.subr.mxu0 0.0
    %1899 = vmatpush1.msra.mxu0 0.0
    %1900 = vmatprep.subr.mxu0 0.0
    %1901 = vmatpush1.msra.mxu0 0.0
    %1902 = vmatprep.subr.mxu0 0.0
    %1903 = vmatpush1.msra.mxu0 0.0
    %1904 = vmatprep.subr.mxu0 0.0
    %1905 = vmatpush1.msra.mxu0 0.0
    %1906 = vmatprep.subr.mxu0 0.0
    %1907 = vmatpush1.msra.mxu0 0.0
    %1908 = vmatprep.subr.mxu0 0.0
    %1909 = vmatpush1.msra.mxu0 0.0
    %1910 = vmatprep.subr.mxu0 0.0
    %1911 = vmatpush1.msra.mxu0 0.0
    %1912 = vmatprep.subr.mxu0 0.0
    %1913 = vmatpush1.msra.mxu0 0.0
    %1914 = vmatprep.subr.mxu0 0.0
    %1915 = vmatpush1.msra.mxu0 0.0
    %1916 = vmatprep.subr.mxu0 0.0
    %1917 = vmatpush1.msra.mxu0 0.0
    %1918 = vmatprep.subr.mxu0 0.0
    %1919 = vmatpush1.msra.mxu0 0.0
    %1920 = vmatprep.subr.mxu0 0.0
    %1921 = vmatpush1.msra.mxu0 0.0
    %1922 = vmatprep.subr.mxu0 0.0
    %1923 = vmatpush1.msra.mxu0 0.0
    %1924 = vmatprep.subr.mxu0 0.0
    %1925 = vmatpush1.msra.mxu0 0.0
    %1926 = vmatprep.subr.mxu0 0.0
    %1927 = vmatpush1.msra.mxu0 0.0
    %1928 = vmatprep.subr.mxu0 0.0
    %1929 = vmatpush1.msra.mxu0 0.0
    %1930 = vmatprep.subr.mxu0 0.0
    %1931 = vmatpush1.msra.mxu0 0.0
    %1932 = vmatprep.subr.mxu0 0.0
    %1933 = vmatpush1.msra.mxu0 0.0
    %1934 = vmatprep.subr.mxu0 0.0
    %1935 = vmatpush1.msra.mxu0 0.0
    %1936 = vmatprep.subr.mxu0 0.0
    %1937 = vmatpush1.msra.mxu0 0.0
    %1938 = vmatprep.subr.mxu0 0.0
    %1939 = vmatpush1.msra.mxu0 0.0
    %1940 = vmatprep.subr.mxu0 0.0
    %1941 = vmatpush1.msra.mxu0 0.0
    %1942 = vmatprep.subr.mxu0 0.0
    %1943 = vmatpush1.msra.mxu0 0.0
    %1944 = vmatprep.mubr.f32.mxu0 0.0
    %1945 = vmatmul.mubr.f32.gmra.mrb[0].mxu0 %v875
    %v1946 = vpop.f32.mrb[0].mxu0
    %v1947 = vadd.f32 0.0, %v1946
    %v1948 = vpop.f32.mrb[0].mxu0
    %v1949 = vadd.f32 0.0, %v1948
    %1950 = vdwg.mxu0
    %v1951 = vadd.f32 %v1818, %v1947
    %v1952 = vadd.f32 %v1820, %v1949
    %v1953 = vxor.u32 %v1951, 2147483648
    %v1954 = vmul.f32 %v1953, 1.442695
    %v1955 = vpow.pop %v1954
    %v1956 = vadd.f32 %v1955, 1.0
    %v1957 = vrcp.pop %v1956
    %v1958 = vmul.f32 1.0, %v1957
    %v1959 = vtanh.pop %v1952
    %v1960 = vxor.u32 %v1952, 2147483648
    %v1961 = vmul.f32 %v1960, 1.442695
    %v1962 = vpow.pop %v1961
    %v1963 = vadd.f32 %v1962, 1.0
    %v1964 = vrcp.pop %v1963
    %v1965 = vmul.f32 1.0, %v1964
    %v1966 = vmul.f32 %v1958, 0.0
    %v1967 = vmul.f32 %v1958, %v1959
    %1969 = vrot.lane.b32.xlu0 %v1967, 64
    %v1970 = vpop.permute.xlu0 %1969
    %v1972 = vadd.f32 %v1966, %v1970
    %v1973 = vtanh.pop %v1972
    %v1974 = vmul.f32 %v1965, %v1973
    %1976 = vrot.lane.b32.xlu0 %v1974, 64
    %v1977 = vpop.permute.xlu0 %1976
    %1979 = vst.msk [vmem:[#allocation3] sm:$0xff] %vm873, %v1977
    %v1980 = vsel %vm873, %v1977, 0
    %1982 = vmatprep.subr.mxu0 %v1865
    %1983 = vmatpush1.msra.mxu0 %v1864
    %1984 = vmatprep.subr.mxu0 %v1867
    %1985 = vmatpush1.msra.mxu0 %v1866
    %1986 = vmatprep.subr.mxu0 %v1869
    %1987 = vmatpush1.msra.mxu0 %v1868
    %1988 = vmatprep.subr.mxu0 %v1871
    %1989 = vmatpush1.msra.mxu0 %v1870
    %1990 = vmatprep.subr.mxu0 %v1873
    %1991 = vmatpush1.msra.mxu0 %v1872
    %1992 = vmatprep.subr.mxu0 %v1875
    %1993 = vmatpush1.msra.mxu0 %v1874
    %1994 = vmatprep.subr.mxu0 %v1877
    %1995 = vmatpush1.msra.mxu0 %v1876
    %1996 = vmatprep.subr.mxu0 %v1879
    %1997 = vmatpush1.msra.mxu0 %v1878
    %1998 = vmatprep.subr.mxu0 0.0
    %1999 = vmatpush1.msra.mxu0 0.0
    %2000 = vmatprep.subr.mxu0 0.0
    %2001 = vmatpush1.msra.mxu0 0.0
    %2002 = vmatprep.subr.mxu0 0.0
    %2003 = vmatpush1.msra.mxu0 0.0
    %2004 = vmatprep.subr.mxu0 0.0
    %2005 = vmatpush1.msra.mxu0 0.0
    %2006 = vmatprep.subr.mxu0 0.0
    %2007 = vmatpush1.msra.mxu0 0.0
    %2008 = vmatprep.subr.mxu0 0.0
    %2009 = vmatpush1.msra.mxu0 0.0
    %2010 = vmatprep.subr.mxu0 0.0
    %2011 = vmatpush1.msra.mxu0 0.0
    %2012 = vmatprep.subr.mxu0 0.0
    %2013 = vmatpush1.msra.mxu0 0.0
    %2014 = vmatprep.subr.mxu0 0.0
    %2015 = vmatpush1.msra.mxu0 0.0
    %2016 = vmatprep.subr.mxu0 0.0
    %2017 = vmatpush1.msra.mxu0 0.0
    %2018 = vmatprep.subr.mxu0 0.0
    %2019 = vmatpush1.msra.mxu0 0.0
    %2020 = vmatprep.subr.mxu0 0.0
    %2021 = vmatpush1.msra.mxu0 0.0
    %2022 = vmatprep.subr.mxu0 0.0
    %2023 = vmatpush1.msra.mxu0 0.0
    %2024 = vmatprep.subr.mxu0 0.0
    %2025 = vmatpush1.msra.mxu0 0.0
    %2026 = vmatprep.subr.mxu0 0.0
    %2027 = vmatpush1.msra.mxu0 0.0
    %2028 = vmatprep.subr.mxu0 0.0
    %2029 = vmatpush1.msra.mxu0 0.0
    %2030 = vmatprep.subr.mxu0 0.0
    %2031 = vmatpush1.msra.mxu0 0.0
    %2032 = vmatprep.subr.mxu0 0.0
    %2033 = vmatpush1.msra.mxu0 0.0
    %2034 = vmatprep.subr.mxu0 0.0
    %2035 = vmatpush1.msra.mxu0 0.0
    %2036 = vmatprep.subr.mxu0 0.0
    %2037 = vmatpush1.msra.mxu0 0.0
    %2038 = vmatprep.subr.mxu0 0.0
    %2039 = vmatpush1.msra.mxu0 0.0
    %2040 = vmatprep.subr.mxu0 0.0
    %2041 = vmatpush1.msra.mxu0 0.0
    %2042 = vmatprep.subr.mxu0 0.0
    %2043 = vmatpush1.msra.mxu0 0.0
    %2044 = vmatprep.subr.mxu0 0.0
    %2045 = vmatpush1.msra.mxu0 0.0
    %2046 = vmatprep.mubr.f32.mxu0 0.0
    %2047 = vmatmul.mubr.f32.gmra.mrb[0].mxu0 %v1980
    %v2048 = vpop.f32.mrb[0].mxu0
    %v2049 = vadd.f32 0.0, %v2048
    %v2050 = vpop.f32.mrb[0].mxu0
    %v2051 = vadd.f32 0.0, %v2050
    %2052 = vdwg.mxu0
    %v2053 = vadd.f32 %v1824, %v2049
    %v2054 = vadd.f32 %v1826, %v2051
    %v2055 = vxor.u32 %v2053, 2147483648
    %v2056 = vmul.f32 %v2055, 1.442695
    %v2057 = vpow.pop %v2056
    %v2058 = vadd.f32 %v2057, 1.0
    %v2059 = vrcp.pop %v2058
    %v2060 = vmul.f32 1.0, %v2059
    %v2061 = vtanh.pop %v2054
    %v2062 = vxor.u32 %v2054, 2147483648
    %v2063 = vmul.f32 %v2062, 1.442695
    %v2064 = vpow.pop %v2063
    %v2065 = vadd.f32 %v2064, 1.0
    %v2066 = vrcp.pop %v2065
    %v2067 = vmul.f32 1.0, %v2066
    %v2068 = vmul.f32 %v2060, %v1972
    %v2069 = vmul.f32 %v2060, %v2061
    %2071 = vrot.lane.b32.xlu0 %v2069, 64
    %v2072 = vpop.permute.xlu0 %2071
    %v2074 = vadd.f32 %v2068, %v2072
    %v2075 = vtanh.pop %v2074
    %v2076 = vmul.f32 %v2067, %v2075
    %2078 = vrot.lane.b32.xlu0 %v2076, 64
    %v2079 = vpop.permute.xlu0 %2078
    %2081 = vst.msk [vmem:[#allocation3 + $0x8] sm:$0xff] %vm873, %v2079
    %v2082 = vsel %vm873, %v2079, 0
    %2084 = vmatprep.subr.mxu0 %v1865
    %2085 = vmatpush1.msra.mxu0 %v1864
    %2086 = vmatprep.subr.mxu0 %v1867
    %2087 = vmatpush1.msra.mxu0 %v1866
    %2088 = vmatprep.subr.mxu0 %v1869
    %2089 = vmatpush1.msra.mxu0 %v1868
    %2090 = vmatprep.subr.mxu0 %v1871
    %2091 = vmatpush1.msra.mxu0 %v1870
    %2092 = vmatprep.subr.mxu0 %v1873
    %2093 = vmatpush1.msra.mxu0 %v1872
    %2094 = vmatprep.subr.mxu0 %v1875
    %2095 = vmatpush1.msra.mxu0 %v1874
    %2096 = vmatprep.subr.mxu0 %v1877
    %2097 = vmatpush1.msra.mxu0 %v1876
    %2098 = vmatprep.subr.mxu0 %v1879
    %2099 = vmatpush1.msra.mxu0 %v1878
    %2100 = vmatprep.subr.mxu0 0.0
    %2101 = vmatpush1.msra.mxu0 0.0
    %2102 = vmatprep.subr.mxu0 0.0
    %2103 = vmatpush1.msra.mxu0 0.0
    %2104 = vmatprep.subr.mxu0 0.0
    %2105 = vmatpush1.msra.mxu0 0.0
    %2106 = vmatprep.subr.mxu0 0.0
    %2107 = vmatpush1.msra.mxu0 0.0
    %2108 = vmatprep.subr.mxu0 0.0
    %2109 = vmatpush1.msra.mxu0 0.0
    %2110 = vmatprep.subr.mxu0 0.0
    %2111 = vmatpush1.msra.mxu0 0.0
    %2112 = vmatprep.subr.mxu0 0.0
    %2113 = vmatpush1.msra.mxu0 0.0
    %2114 = vmatprep.subr.mxu0 0.0
    %2115 = vmatpush1.msra.mxu0 0.0
    %2116 = vmatprep.subr.mxu0 0.0
    %2117 = vmatpush1.msra.mxu0 0.0
    %2118 = vmatprep.subr.mxu0 0.0
    %2119 = vmatpush1.msra.mxu0 0.0
    %2120 = vmatprep.subr.mxu0 0.0
    %2121 = vmatpush1.msra.mxu0 0.0
    %2122 = vmatprep.subr.mxu0 0.0
    %2123 = vmatpush1.msra.mxu0 0.0
    %2124 = vmatprep.subr.mxu0 0.0
    %2125 = vmatpush1.msra.mxu0 0.0
    %2126 = vmatprep.subr.mxu0 0.0
    %2127 = vmatpush1.msra.mxu0 0.0
    %2128 = vmatprep.subr.mxu0 0.0
    %2129 = vmatpush1.msra.mxu0 0.0
    %2130 = vmatprep.subr.mxu0 0.0
    %2131 = vmatpush1.msra.mxu0 0.0
    %2132 = vmatprep.subr.mxu0 0.0
    %2133 = vmatpush1.msra.mxu0 0.0
    %2134 = vmatprep.subr.mxu0 0.0
    %2135 = vmatpush1.msra.mxu0 0.0
    %2136 = vmatprep.subr.mxu0 0.0
    %2137 = vmatpush1.msra.mxu0 0.0
    %2138 = vmatprep.subr.mxu0 0.0
    %2139 = vmatpush1.msra.mxu0 0.0
    %2140 = vmatprep.subr.mxu0 0.0
    %2141 = vmatpush1.msra.mxu0 0.0
    %2142 = vmatprep.subr.mxu0 0.0
    %2143 = vmatpush1.msra.mxu0 0.0
    %2144 = vmatprep.subr.mxu0 0.0
    %2145 = vmatpush1.msra.mxu0 0.0
    %2146 = vmatprep.subr.mxu0 0.0
    %2147 = vmatpush1.msra.mxu0 0.0
    %2148 = vmatprep.mubr.f32.mxu0 0.0
    %2149 = vmatmul.mubr.f32.gmra.mrb[0].mxu0 %v2082
    %v2150 = vpop.f32.mrb[0].mxu0
    %v2151 = vadd.f32 0.0, %v2150
    %v2152 = vpop.f32.mrb[0].mxu0
    %v2153 = vadd.f32 0.0, %v2152
    %2154 = vdwg.mxu0
    %v2155 = vadd.f32 %v1830, %v2151
    %v2156 = vadd.f32 %v1832, %v2153
    %v2157 = vxor.u32 %v2155, 2147483648
    %v2158 = vmul.f32 %v2157, 1.442695
    %v2159 = vpow.pop %v2158
    %v2160 = vadd.f32 %v2159, 1.0
    %v2161 = vrcp.pop %v2160
    %v2162 = vmul.f32 1.0, %v2161
    %v2163 = vtanh.pop %v2156
    %v2164 = vxor.u32 %v2156, 2147483648
    %v2165 = vmul.f32 %v2164, 1.442695
    %v2166 = vpow.pop %v2165
    %v2167 = vadd.f32 %v2166, 1.0
    %v2168 = vrcp.pop %v2167
    %v2169 = vmul.f32 1.0, %v2168
    %v2170 = vmul.f32 %v2162, %v2074
    %v2171 = vmul.f32 %v2162, %v2163
    %2173 = vrot.lane.b32.xlu0 %v2171, 64
    %v2174 = vpop.permute.xlu0 %2173
    %v2176 = vadd.f32 %v2170, %v2174
    %v2177 = vtanh.pop %v2176
    %v2178 = vmul.f32 %v2169, %v2177
    %2180 = vrot.lane.b32.xlu0 %v2178, 64
    %v2181 = vpop.permute.xlu0 %2180
    %2183 = vst.msk [vmem:[#allocation3 + $0x10] sm:$0xff] %vm873, %v2181
    %v2184 = vsel %vm873, %v2181, 0
    %2186 = vmatprep.subr.mxu0 %v1865
    %2187 = vmatpush1.msra.mxu0 %v1864
    %2188 = vmatprep.subr.mxu0 %v1867
    %2189 = vmatpush1.msra.mxu0 %v1866
    %2190 = vmatprep.subr.mxu0 %v1869
    %2191 = vmatpush1.msra.mxu0 %v1868
    %2192 = vmatprep.subr.mxu0 %v1871
    %2193 = vmatpush1.msra.mxu0 %v1870
    %2194 = vmatprep.subr.mxu0 %v1873
    %2195 = vmatpush1.msra.mxu0 %v1872
    %2196 = vmatprep.subr.mxu0 %v1875
    %2197 = vmatpush1.msra.mxu0 %v1874
    %2198 = vmatprep.subr.mxu0 %v1877
    %2199 = vmatpush1.msra.mxu0 %v1876
    %2200 = vmatprep.subr.mxu0 %v1879
    %2201 = vmatpush1.msra.mxu0 %v1878
    %2202 = vmatprep.subr.mxu0 0.0
    %2203 = vmatpush1.msra.mxu0 0.0
    %2204 = vmatprep.subr.mxu0 0.0
    %2205 = vmatpush1.msra.mxu0 0.0
    %2206 = vmatprep.subr.mxu0 0.0
    %2207 = vmatpush1.msra.mxu0 0.0
    %2208 = vmatprep.subr.mxu0 0.0
    %2209 = vmatpush1.msra.mxu0 0.0
    %2210 = vmatprep.subr.mxu0 0.0
    %2211 = vmatpush1.msra.mxu0 0.0
    %2212 = vmatprep.subr.mxu0 0.0
    %2213 = vmatpush1.msra.mxu0 0.0
    %2214 = vmatprep.subr.mxu0 0.0
    %2215 = vmatpush1.msra.mxu0 0.0
    %2216 = vmatprep.subr.mxu0 0.0
    %2217 = vmatpush1.msra.mxu0 0.0
    %2218 = vmatprep.subr.mxu0 0.0
    %2219 = vmatpush1.msra.mxu0 0.0
    %2220 = vmatprep.subr.mxu0 0.0
    %2221 = vmatpush1.msra.mxu0 0.0
    %2222 = vmatprep.subr.mxu0 0.0
    %2223 = vmatpush1.msra.mxu0 0.0
    %2224 = vmatprep.subr.mxu0 0.0
    %2225 = vmatpush1.msra.mxu0 0.0
    %2226 = vmatprep.subr.mxu0 0.0
    %2227 = vmatpush1.msra.mxu0 0.0
    %2228 = vmatprep.subr.mxu0 0.0
    %2229 = vmatpush1.msra.mxu0 0.0
    %2230 = vmatprep.subr.mxu0 0.0
    %2231 = vmatpush1.msra.mxu0 0.0
    %2232 = vmatprep.subr.mxu0 0.0
    %2233 = vmatpush1.msra.mxu0 0.0
    %2234 = vmatprep.subr.mxu0 0.0
    %2235 = vmatpush1.msra.mxu0 0.0
    %2236 = vmatprep.subr.mxu0 0.0
    %2237 = vmatpush1.msra.mxu0 0.0
    %2238 = vmatprep.subr.mxu0 0.0
    %2239 = vmatpush1.msra.mxu0 0.0
    %2240 = vmatprep.subr.mxu0 0.0
    %2241 = vmatpush1.msra.mxu0 0.0
    %2242 = vmatprep.subr.mxu0 0.0
    %2243 = vmatpush1.msra.mxu0 0.0
    %2244 = vmatprep.subr.mxu0 0.0
    %2245 = vmatpush1.msra.mxu0 0.0
    %2246 = vmatprep.subr.mxu0 0.0
    %2247 = vmatpush1.msra.mxu0 0.0
    %2248 = vmatprep.subr.mxu0 0.0
    %2249 = vmatpush1.msra.mxu0 0.0
    %2250 = vmatprep.mubr.f32.mxu0 0.0
    %2251 = vmatmul.mubr.f32.gmra.mrb[0].mxu0 %v2184
    %v2252 = vpop.f32.mrb[0].mxu0
    %v2253 = vadd.f32 0.0, %v2252
    %v2254 = vpop.f32.mrb[0].mxu0
    %v2255 = vadd.f32 0.0, %v2254
    %2256 = vdwg.mxu0
    %v2257 = vadd.f32 %v1836, %v2253
    %v2258 = vadd.f32 %v1838, %v2255
    %v2259 = vxor.u32 %v2257, 2147483648
    %v2260 = vmul.f32 %v2259, 1.442695
    %v2261 = vpow.pop %v2260
    %v2262 = vadd.f32 %v2261, 1.0
    %v2263 = vrcp.pop %v2262
    %v2264 = vmul.f32 1.0, %v2263
    %v2265 = vtanh.pop %v2258
    %v2266 = vxor.u32 %v2258, 2147483648
    %v2267 = vmul.f32 %v2266, 1.442695
    %v2268 = vpow.pop %v2267
    %v2269 = vadd.f32 %v2268, 1.0
    %v2270 = vrcp.pop %v2269
    %v2271 = vmul.f32 1.0, %v2270
    %v2272 = vmul.f32 %v2264, %v2176
    %v2273 = vmul.f32 %v2264, %v2265
    %2275 = vrot.lane.b32.xlu0 %v2273, 64
    %v2276 = vpop.permute.xlu0 %2275
    %v2278 = vadd.f32 %v2272, %v2276
    %v2279 = vtanh.pop %v2278
    %v2280 = vmul.f32 %v2271, %v2279
    %2282 = vrot.lane.b32.xlu0 %v2280, 64
    %v2283 = vpop.permute.xlu0 %2282
    %2285 = vst.msk [vmem:[#allocation3 + $0x18] sm:$0xff] %vm873, %v2283
    %v2286 = vsel %vm873, %v2283, 0
    %2288 = vmatprep.subr.mxu0 %v1865
    %2289 = vmatpush1.msra.mxu0 %v1864
    %2290 = vmatprep.subr.mxu0 %v1867
    %2291 = vmatpush1.msra.mxu0 %v1866
    %2292 = vmatprep.subr.mxu0 %v1869
    %2293 = vmatpush1.msra.mxu0 %v1868
    %2294 = vmatprep.subr.mxu0 %v1871
    %2295 = vmatpush1.msra.mxu0 %v1870
    %2296 = vmatprep.subr.mxu0 %v1873
    %2297 = vmatpush1.msra.mxu0 %v1872
    %2298 = vmatprep.subr.mxu0 %v1875
    %2299 = vmatpush1.msra.mxu0 %v1874
    %2300 = vmatprep.subr.mxu0 %v1877
    %2301 = vmatpush1.msra.mxu0 %v1876
    %2302 = vmatprep.subr.mxu0 %v1879
    %2303 = vmatpush1.msra.mxu0 %v1878
    %2304 = vmatprep.subr.mxu0 0.0
    %2305 = vmatpush1.msra.mxu0 0.0
    %2306 = vmatprep.subr.mxu0 0.0
    %2307 = vmatpush1.msra.mxu0 0.0
    %2308 = vmatprep.subr.mxu0 0.0
    %2309 = vmatpush1.msra.mxu0 0.0
    %2310 = vmatprep.subr.mxu0 0.0
    %2311 = vmatpush1.msra.mxu0 0.0
    %2312 = vmatprep.subr.mxu0 0.0
    %2313 = vmatpush1.msra.mxu0 0.0
    %2314 = vmatprep.subr.mxu0 0.0
    %2315 = vmatpush1.msra.mxu0 0.0
    %2316 = vmatprep.subr.mxu0 0.0
    %2317 = vmatpush1.msra.mxu0 0.0
    %2318 = vmatprep.subr.mxu0 0.0
    %2319 = vmatpush1.msra.mxu0 0.0
    %2320 = vmatprep.subr.mxu0 0.0
    %2321 = vmatpush1.msra.mxu0 0.0
    %2322 = vmatprep.subr.mxu0 0.0
    %2323 = vmatpush1.msra.mxu0 0.0
    %2324 = vmatprep.subr.mxu0 0.0
    %2325 = vmatpush1.msra.mxu0 0.0
    %2326 = vmatprep.subr.mxu0 0.0
    %2327 = vmatpush1.msra.mxu0 0.0
    %2328 = vmatprep.subr.mxu0 0.0
    %2329 = vmatpush1.msra.mxu0 0.0
    %2330 = vmatprep.subr.mxu0 0.0
    %2331 = vmatpush1.msra.mxu0 0.0
    %2332 = vmatprep.subr.mxu0 0.0
    %2333 = vmatpush1.msra.mxu0 0.0
    %2334 = vmatprep.subr.mxu0 0.0
    %2335 = vmatpush1.msra.mxu0 0.0
    %2336 = vmatprep.subr.mxu0 0.0
    %2337 = vmatpush1.msra.mxu0 0.0
    %2338 = vmatprep.subr.mxu0 0.0
    %2339 = vmatpush1.msra.mxu0 0.0
    %2340 = vmatprep.subr.mxu0 0.0
    %2341 = vmatpush1.msra.mxu0 0.0
    %2342 = vmatprep.subr.mxu0 0.0
    %2343 = vmatpush1.msra.mxu0 0.0
    %2344 = vmatprep.subr.mxu0 0.0
    %2345 = vmatpush1.msra.mxu0 0.0
    %2346 = vmatprep.subr.mxu0 0.0
    %2347 = vmatpush1.msra.mxu0 0.0
    %2348 = vmatprep.subr.mxu0 0.0
    %2349 = vmatpush1.msra.mxu0 0.0
    %2350 = vmatprep.subr.mxu0 0.0
    %2351 = vmatpush1.msra.mxu0 0.0
    %2352 = vmatprep.mubr.f32.mxu0 0.0
    %2353 = vmatmul.mubr.f32.gmra.mrb[0].mxu0 %v2286
    %v2354 = vpop.f32.mrb[0].mxu0
    %v2355 = vadd.f32 0.0, %v2354
    %v2356 = vpop.f32.mrb[0].mxu0
    %v2357 = vadd.f32 0.0, %v2356
    %2358 = vdwg.mxu0
    %v2359 = vadd.f32 %v1842, %v2355
    %v2360 = vadd.f32 %v1844, %v2357
    %v2361 = vxor.u32 %v2359, 2147483648
    %v2362 = vmul.f32 %v2361, 1.442695
    %v2363 = vpow.pop %v2362
    %v2364 = vadd.f32 %v2363, 1.0
    %v2365 = vrcp.pop %v2364
    %v2366 = vmul.f32 1.0, %v2365
    %v2367 = vtanh.pop %v2360
    %v2368 = vxor.u32 %v2360, 2147483648
    %v2369 = vmul.f32 %v2368, 1.442695
    %v2370 = vpow.pop %v2369
    %v2371 = vadd.f32 %v2370, 1.0
    %v2372 = vrcp.pop %v2371
    %v2373 = vmul.f32 1.0, %v2372
    %v2374 = vmul.f32 %v2366, %v2278
    %v2375 = vmul.f32 %v2366, %v2367
    %2377 = vrot.lane.b32.xlu0 %v2375, 64
    %v2378 = vpop.permute.xlu0 %2377
    %v2380 = vadd.f32 %v2374, %v2378
    %v2381 = vtanh.pop %v2380
    %v2382 = vmul.f32 %v2373, %v2381
    %2384 = vrot.lane.b32.xlu0 %v2382, 64
    %v2385 = vpop.permute.xlu0 %2384
    %2387 = vst.msk [vmem:[#allocation3 + $0x20] sm:$0xff] %vm873, %v2385
    %v2388 = vsel %vm873, %v2385, 0
    %2390 = vmatprep.subr.mxu0 %v1865
    %2391 = vmatpush1.msra.mxu0 %v1864
    %2392 = vmatprep.subr.mxu0 %v1867
    %2393 = vmatpush1.msra.mxu0 %v1866
    %2394 = vmatprep.subr.mxu0 %v1869
    %2395 = vmatpush1.msra.mxu0 %v1868
    %2396 = vmatprep.subr.mxu0 %v1871
    %2397 = vmatpush1.msra.mxu0 %v1870
    %2398 = vmatprep.subr.mxu0 %v1873
    %2399 = vmatpush1.msra.mxu0 %v1872
    %2400 = vmatprep.subr.mxu0 %v1875
    %2401 = vmatpush1.msra.mxu0 %v1874
    %2402 = vmatprep.subr.mxu0 %v1877
    %2403 = vmatpush1.msra.mxu0 %v1876
    %2404 = vmatprep.subr.mxu0 %v1879
    %2405 = vmatpush1.msra.mxu0 %v1878
    %2406 = vmatprep.subr.mxu0 0.0
    %2407 = vmatpush1.msra.mxu0 0.0
    %2408 = vmatprep.subr.mxu0 0.0
    %2409 = vmatpush1.msra.mxu0 0.0
    %2410 = vmatprep.subr.mxu0 0.0
    %2411 = vmatpush1.msra.mxu0 0.0
    %2412 = vmatprep.subr.mxu0 0.0
    %2413 = vmatpush1.msra.mxu0 0.0
    %2414 = vmatprep.subr.mxu0 0.0
    %2415 = vmatpush1.msra.mxu0 0.0
    %2416 = vmatprep.subr.mxu0 0.0
    %2417 = vmatpush1.msra.mxu0 0.0
    %2418 = vmatprep.subr.mxu0 0.0
    %2419 = vmatpush1.msra.mxu0 0.0
    %2420 = vmatprep.subr.mxu0 0.0
    %2421 = vmatpush1.msra.mxu0 0.0
    %2422 = vmatprep.subr.mxu0 0.0
    %2423 = vmatpush1.msra.mxu0 0.0
    %2424 = vmatprep.subr.mxu0 0.0
    %2425 = vmatpush1.msra.mxu0 0.0
    %2426 = vmatprep.subr.mxu0 0.0
    %2427 = vmatpush1.msra.mxu0 0.0
    %2428 = vmatprep.subr.mxu0 0.0
    %2429 = vmatpush1.msra.mxu0 0.0
    %2430 = vmatprep.subr.mxu0 0.0
    %2431 = vmatpush1.msra.mxu0 0.0
    %2432 = vmatprep.subr.mxu0 0.0
    %2433 = vmatpush1.msra.mxu0 0.0
    %2434 = vmatprep.subr.mxu0 0.0
    %2435 = vmatpush1.msra.mxu0 0.0
    %2436 = vmatprep.subr.mxu0 0.0
    %2437 = vmatpush1.msra.mxu0 0.0
    %2438 = vmatprep.subr.mxu0 0.0
    %2439 = vmatpush1.msra.mxu0 0.0
    %2440 = vmatprep.subr.mxu0 0.0
    %2441 = vmatpush1.msra.mxu0 0.0
    %2442 = vmatprep.subr.mxu0 0.0
    %2443 = vmatpush1.msra.mxu0 0.0
    %2444 = vmatprep.subr.mxu0 0.0
    %2445 = vmatpush1.msra.mxu0 0.0
    %2446 = vmatprep.subr.mxu0 0.0
    %2447 = vmatpush1.msra.mxu0 0.0
    %2448 = vmatprep.subr.mxu0 0.0
    %2449 = vmatpush1.msra.mxu0 0.0
    %2450 = vmatprep.subr.mxu0 0.0
    %2451 = vmatpush1.msra.mxu0 0.0
    %2452 = vmatprep.subr.mxu0 0.0
    %2453 = vmatpush1.msra.mxu0 0.0
    %2454 = vmatprep.mubr.f32.mxu0 0.0
    %2455 = vmatmul.mubr.f32.gmra.mrb[0].mxu0 %v2388
    %v2456 = vpop.f32.mrb[0].mxu0
    %v2457 = vadd.f32 0.0, %v2456
    %v2458 = vpop.f32.mrb[0].mxu0
    %v2459 = vadd.f32 0.0, %v2458
    %2460 = vdwg.mxu0
    %v2461 = vadd.f32 %v1848, %v2457
    %v2462 = vadd.f32 %v1850, %v2459
    %v2463 = vxor.u32 %v2461, 2147483648
    %v2464 = vmul.f32 %v2463, 1.442695
    %v2465 = vpow.pop %v2464
    %v2466 = vadd.f32 %v2465, 1.0
    %v2467 = vrcp.pop %v2466
    %v2468 = vmul.f32 1.0, %v2467
    %v2469 = vtanh.pop %v2462
    %v2470 = vxor.u32 %v2462, 2147483648
    %v2471 = vmul.f32 %v2470, 1.442695
    %v2472 = vpow.pop %v2471
    %v2473 = vadd.f32 %v2472, 1.0
    %v2474 = vrcp.pop %v2473
    %v2475 = vmul.f32 1.0, %v2474
    %v2476 = vmul.f32 %v2468, %v2380
    %v2477 = vmul.f32 %v2468, %v2469
    %2479 = vrot.lane.b32.xlu0 %v2477, 64
    %v2480 = vpop.permute.xlu0 %2479
    %v2482 = vadd.f32 %v2476, %v2480
    %v2483 = vtanh.pop %v2482
    %v2484 = vmul.f32 %v2475, %v2483
    %2486 = vrot.lane.b32.xlu0 %v2484, 64
    %v2487 = vpop.permute.xlu0 %2486
    %2489 = vst.msk [vmem:[#allocation3 + $0x28] sm:$0xff] %vm873, %v2487
    %v2490 = vsel %vm873, %v2487, 0
    %2492 = vmatprep.subr.mxu0 %v1865
    %2493 = vmatpush1.msra.mxu0 %v1864
    %2494 = vmatprep.subr.mxu0 %v1867
    %2495 = vmatpush1.msra.mxu0 %v1866
    %2496 = vmatprep.subr.mxu0 %v1869
    %2497 = vmatpush1.msra.mxu0 %v1868
    %2498 = vmatprep.subr.mxu0 %v1871
    %2499 = vmatpush1.msra.mxu0 %v1870
    %2500 = vmatprep.subr.mxu0 %v1873
    %2501 = vmatpush1.msra.mxu0 %v1872
    %2502 = vmatprep.subr.mxu0 %v1875
    %2503 = vmatpush1.msra.mxu0 %v1874
    %2504 = vmatprep.subr.mxu0 %v1877
    %2505 = vmatpush1.msra.mxu0 %v1876
    %2506 = vmatprep.subr.mxu0 %v1879
    %2507 = vmatpush1.msra.mxu0 %v1878
    %2508 = vmatprep.subr.mxu0 0.0
    %2509 = vmatpush1.msra.mxu0 0.0
    %2510 = vmatprep.subr.mxu0 0.0
    %2511 = vmatpush1.msra.mxu0 0.0
    %2512 = vmatprep.subr.mxu0 0.0
    %2513 = vmatpush1.msra.mxu0 0.0
    %2514 = vmatprep.subr.mxu0 0.0
    %2515 = vmatpush1.msra.mxu0 0.0
    %2516 = vmatprep.subr.mxu0 0.0
    %2517 = vmatpush1.msra.mxu0 0.0
    %2518 = vmatprep.subr.mxu0 0.0
    %2519 = vmatpush1.msra.mxu0 0.0
    %2520 = vmatprep.subr.mxu0 0.0
    %2521 = vmatpush1.msra.mxu0 0.0
    %2522 = vmatprep.subr.mxu0 0.0
    %2523 = vmatpush1.msra.mxu0 0.0
    %2524 = vmatprep.subr.mxu0 0.0
    %2525 = vmatpush1.msra.mxu0 0.0
    %2526 = vmatprep.subr.mxu0 0.0
    %2527 = vmatpush1.msra.mxu0 0.0
    %2528 = vmatprep.subr.mxu0 0.0
    %2529 = vmatpush1.msra.mxu0 0.0
    %2530 = vmatprep.subr.mxu0 0.0
    %2531 = vmatpush1.msra.mxu0 0.0
    %2532 = vmatprep.subr.mxu0 0.0
    %2533 = vmatpush1.msra.mxu0 0.0
    %2534 = vmatprep.subr.mxu0 0.0
    %2535 = vmatpush1.msra.mxu0 0.0
    %2536 = vmatprep.subr.mxu0 0.0
    %2537 = vmatpush1.msra.mxu0 0.0
    %2538 = vmatprep.subr.mxu0 0.0
    %2539 = vmatpush1.msra.mxu0 0.0
    %2540 = vmatprep.subr.mxu0 0.0
    %2541 = vmatpush1.msra.mxu0 0.0
    %2542 = vmatprep.subr.mxu0 0.0
    %2543 = vmatpush1.msra.mxu0 0.0
    %2544 = vmatprep.subr.mxu0 0.0
    %2545 = vmatpush1.msra.mxu0 0.0
    %2546 = vmatprep.subr.mxu0 0.0
    %2547 = vmatpush1.msra.mxu0 0.0
    %2548 = vmatprep.subr.mxu0 0.0
    %2549 = vmatpush1.msra.mxu0 0.0
    %2550 = vmatprep.subr.mxu0 0.0
    %2551 = vmatpush1.msra.mxu0 0.0
    %2552 = vmatprep.subr.mxu0 0.0
    %2553 = vmatpush1.msra.mxu0 0.0
    %2554 = vmatprep.subr.mxu0 0.0
    %2555 = vmatpush1.msra.mxu0 0.0
    %2556 = vmatprep.mubr.f32.mxu0 0.0
    %2557 = vmatmul.mubr.f32.gmra.mrb[0].mxu0 %v2490
    %v2558 = vpop.f32.mrb[0].mxu0
    %v2559 = vadd.f32 0.0, %v2558
    %v2560 = vpop.f32.mrb[0].mxu0
    %v2561 = vadd.f32 0.0, %v2560
    %2562 = vdwg.mxu0
    %v2563 = vadd.f32 %v1854, %v2559
    %v2564 = vadd.f32 %v1856, %v2561
    %v2565 = vxor.u32 %v2563, 2147483648
    %v2566 = vmul.f32 %v2565, 1.442695
    %v2567 = vpow.pop %v2566
    %v2568 = vadd.f32 %v2567, 1.0
    %v2569 = vrcp.pop %v2568
    %v2570 = vmul.f32 1.0, %v2569
    %v2571 = vtanh.pop %v2564
    %v2572 = vxor.u32 %v2564, 2147483648
    %v2573 = vmul.f32 %v2572, 1.442695
    %v2574 = vpow.pop %v2573
    %v2575 = vadd.f32 %v2574, 1.0
    %v2576 = vrcp.pop %v2575
    %v2577 = vmul.f32 1.0, %v2576
    %v2578 = vmul.f32 %v2570, %v2482
    %v2579 = vmul.f32 %v2570, %v2571
    %2581 = vrot.lane.b32.xlu0 %v2579, 64
    %v2582 = vpop.permute.xlu0 %2581
    %v2584 = vadd.f32 %v2578, %v2582
    %v2585 = vtanh.pop %v2584
    %v2586 = vmul.f32 %v2577, %v2585
    %2588 = vrot.lane.b32.xlu0 %v2586, 64
    %v2589 = vpop.permute.xlu0 %2588
    %2591 = vst.msk [vmem:[#allocation3 + $0x30] sm:$0xff] %vm873, %v2589
    %v2592 = vsel %vm873, %v2589, 0
    %2594 = vmatprep.subr.mxu0 %v1865
    %2595 = vmatpush1.msra.mxu0 %v1864
    %2596 = vmatprep.subr.mxu0 %v1867
    %2597 = vmatpush1.msra.mxu0 %v1866
    %2598 = vmatprep.subr.mxu0 %v1869
    %2599 = vmatpush1.msra.mxu0 %v1868
    %2600 = vmatprep.subr.mxu0 %v1871
    %2601 = vmatpush1.msra.mxu0 %v1870
    %2602 = vmatprep.subr.mxu0 %v1873
    %2603 = vmatpush1.msra.mxu0 %v1872
    %2604 = vmatprep.subr.mxu0 %v1875
    %2605 = vmatpush1.msra.mxu0 %v1874
    %2606 = vmatprep.subr.mxu0 %v1877
    %2607 = vmatpush1.msra.mxu0 %v1876
    %2608 = vmatprep.subr.mxu0 %v1879
    %2609 = vmatpush1.msra.mxu0 %v1878
    %2610 = vmatprep.subr.mxu0 0.0
    %2611 = vmatpush1.msra.mxu0 0.0
    %2612 = vmatprep.subr.mxu0 0.0
    %2613 = vmatpush1.msra.mxu0 0.0
    %2614 = vmatprep.subr.mxu0 0.0
    %2615 = vmatpush1.msra.mxu0 0.0
    %2616 = vmatprep.subr.mxu0 0.0
    %2617 = vmatpush1.msra.mxu0 0.0
    %2618 = vmatprep.subr.mxu0 0.0
    %2619 = vmatpush1.msra.mxu0 0.0
    %2620 = vmatprep.subr.mxu0 0.0
    %2621 = vmatpush1.msra.mxu0 0.0
    %2622 = vmatprep.subr.mxu0 0.0
    %2623 = vmatpush1.msra.mxu0 0.0
    %2624 = vmatprep.subr.mxu0 0.0
    %2625 = vmatpush1.msra.mxu0 0.0
    %2626 = vmatprep.subr.mxu0 0.0
    %2627 = vmatpush1.msra.mxu0 0.0
    %2628 = vmatprep.subr.mxu0 0.0
    %2629 = vmatpush1.msra.mxu0 0.0
    %2630 = vmatprep.subr.mxu0 0.0
    %2631 = vmatpush1.msra.mxu0 0.0
    %2632 = vmatprep.subr.mxu0 0.0
    %2633 = vmatpush1.msra.mxu0 0.0
    %2634 = vmatprep.subr.mxu0 0.0
    %2635 = vmatpush1.msra.mxu0 0.0
    %2636 = vmatprep.subr.mxu0 0.0
    %2637 = vmatpush1.msra.mxu0 0.0
    %2638 = vmatprep.subr.mxu0 0.0
    %2639 = vmatpush1.msra.mxu0 0.0
    %2640 = vmatprep.subr.mxu0 0.0
    %2641 = vmatpush1.msra.mxu0 0.0
    %2642 = vmatprep.subr.mxu0 0.0
    %2643 = vmatpush1.msra.mxu0 0.0
    %2644 = vmatprep.subr.mxu0 0.0
    %2645 = vmatpush1.msra.mxu0 0.0
    %2646 = vmatprep.subr.mxu0 0.0
    %2647 = vmatpush1.msra.mxu0 0.0
    %2648 = vmatprep.subr.mxu0 0.0
    %2649 = vmatpush1.msra.mxu0 0.0
    %2650 = vmatprep.subr.mxu0 0.0
    %2651 = vmatpush1.msra.mxu0 0.0
    %2652 = vmatprep.subr.mxu0 0.0
    %2653 = vmatpush1.msra.mxu0 0.0
    %2654 = vmatprep.subr.mxu0 0.0
    %2655 = vmatpush1.msra.mxu0 0.0
    %2656 = vmatprep.subr.mxu0 0.0
    %2657 = vmatpush1.msra.mxu0 0.0
    %2658 = vmatprep.mubr.f32.mxu0 0.0
    %2659 = vmatmul.mubr.f32.gmra.mrb[0].mxu0 %v2592
    %v2660 = vpop.f32.mrb[0].mxu0
    %v2661 = vadd.f32 0.0, %v2660
    %v2662 = vpop.f32.mrb[0].mxu0
    %v2663 = vadd.f32 0.0, %v2662
    %2664 = vdwg.mxu0
    %v2665 = vadd.f32 %v1860, %v2661
    %v2666 = vadd.f32 %v1862, %v2663
    %v2667 = vxor.u32 %v2665, 2147483648
    %v2668 = vmul.f32 %v2667, 1.442695
    %v2669 = vpow.pop %v2668
    %v2670 = vadd.f32 %v2669, 1.0
    %v2671 = vrcp.pop %v2670
    %v2672 = vmul.f32 1.0, %v2671
    %v2673 = vtanh.pop %v2666
    %v2674 = vxor.u32 %v2666, 2147483648
    %v2675 = vmul.f32 %v2674, 1.442695
    %v2676 = vpow.pop %v2675
    %v2677 = vadd.f32 %v2676, 1.0
    %v2678 = vrcp.pop %v2677
    %v2679 = vmul.f32 1.0, %v2678
    %v2680 = vmul.f32 %v2672, %v2584
    %v2681 = vmul.f32 %v2672, %v2673
    %2683 = vrot.lane.b32.xlu0 %v2681, 64
    %v2684 = vpop.permute.xlu0 %2683
    %v2686 = vadd.f32 %v2680, %v2684
    %v2687 = vtanh.pop %v2686
    %v2688 = vmul.f32 %v2679, %v2687
    %2690 = vrot.lane.b32.xlu0 %v2688, 64
    %v2691 = vpop.permute.xlu0 %2690
    %2693 = vst.msk [vmem:[#allocation3 + $0x38] sm:$0xff] %vm873, %v2691
    %v2694 = vld [vmem:[#allocation3] sm:$0xff]
    %v2695 = vld [vmem:[#allocation3 + $0x8] sm:$0xff]
    %v2696 = vld [vmem:[#allocation3 + $0x10] sm:$0xff]
    %v2697 = vld [vmem:[#allocation3 + $0x18] sm:$0xff]
    %v2698 = vld [vmem:[#allocation3 + $0x20] sm:$0xff]
    %v2699 = vld [vmem:[#allocation3 + $0x28] sm:$0xff]
    %v2700 = vld [vmem:[#allocation3 + $0x30] sm:$0xff]
    %v2701 = vld [vmem:[#allocation3 + $0x38] sm:$0xff]
    %v2702 = vld [vmem:[#allocation15] sm:$0xff]
    %v2703 = vld [vmem:[#allocation15 + $0x8] sm:$0xff]
    %v2704 = vld [vmem:[#allocation15 + $0x10] sm:$0xff]
    %v2705 = vld [vmem:[#allocation15 + $0x18] sm:$0xff]
    %v2706 = vld [vmem:[#allocation15 + $0x20] sm:$0xff]
    %v2707 = vld [vmem:[#allocation15 + $0x28] sm:$0xff]
    %v2708 = vld [vmem:[#allocation15 + $0x30] sm:$0xff]
    %v2709 = vld [vmem:[#allocation15 + $0x38] sm:$0xff]
    %v2710 = vld [vmem:[#allocation16] sm:$0x1]
    %v2712 = vlaneseq
    %v2713 = vshrl.u32 %v2712, 7
    %v2714 = vsub.s32 0, %v2713
    %v2715 = vrot.slane %v2710, %v2714
    %v2717 = vsel %vm873, %v2691, 0
    %2719 = vmatprep.subr.mxu0 0.0
    %2720 = vmatpush1.msra.mxu0 %v2702
    %2721 = vmatprep.subr.mxu0 0.0
    %2722 = vmatpush1.msra.mxu0 %v2703
    %2723 = vmatprep.subr.mxu0 0.0
    %2724 = vmatpush1.msra.mxu0 %v2704
    %2725 = vmatprep.subr.mxu0 0.0
    %2726 = vmatpush1.msra.mxu0 %v2705
    %2727 = vmatprep.subr.mxu0 0.0
    %2728 = vmatpush1.msra.mxu0 %v2706
    %2729 = vmatprep.subr.mxu0 0.0
    %2730 = vmatpush1.msra.mxu0 %v2707
    %2731 = vmatprep.subr.mxu0 0.0
    %2732 = vmatpush1.msra.mxu0 %v2708
    %2733 = vmatprep.subr.mxu0 0.0
    %2734 = vmatpush1.msra.mxu0 %v2709
    %2735 = vmatprep.subr.mxu0 0.0
    %2736 = vmatpush1.msra.mxu0 0.0
    %2737 = vmatprep.subr.mxu0 0.0
    %2738 = vmatpush1.msra.mxu0 0.0
    %2739 = vmatprep.subr.mxu0 0.0
    %2740 = vmatpush1.msra.mxu0 0.0
    %2741 = vmatprep.subr.mxu0 0.0
    %2742 = vmatpush1.msra.mxu0 0.0
    %2743 = vmatprep.subr.mxu0 0.0
    %2744 = vmatpush1.msra.mxu0 0.0
    %2745 = vmatprep.subr.mxu0 0.0
    %2746 = vmatpush1.msra.mxu0 0.0
    %2747 = vmatprep.subr.mxu0 0.0
    %2748 = vmatpush1.msra.mxu0 0.0
    %2749 = vmatprep.subr.mxu0 0.0
    %2750 = vmatpush1.msra.mxu0 0.0
    %2751 = vmatprep.subr.mxu0 0.0
    %2752 = vmatpush1.msra.mxu0 0.0
    %2753 = vmatprep.subr.mxu0 0.0
    %2754 = vmatpush1.msra.mxu0 0.0
    %2755 = vmatprep.subr.mxu0 0.0
    %2756 = vmatpush1.msra.mxu0 0.0
    %2757 = vmatprep.subr.mxu0 0.0
    %2758 = vmatpush1.msra.mxu0 0.0
    %2759 = vmatprep.subr.mxu0 0.0
    %2760 = vmatpush1.msra.mxu0 0.0
    %2761 = vmatprep.subr.mxu0 0.0
    %2762 = vmatpush1.msra.mxu0 0.0
    %2763 = vmatprep.subr.mxu0 0.0
    %2764 = vmatpush1.msra.mxu0 0.0
    %2765 = vmatprep.subr.mxu0 0.0
    %2766 = vmatpush1.msra.mxu0 0.0
    %2767 = vmatprep.subr.mxu0 0.0
    %2768 = vmatpush1.msra.mxu0 0.0
    %2769 = vmatprep.subr.mxu0 0.0
    %2770 = vmatpush1.msra.mxu0 0.0
    %2771 = vmatprep.subr.mxu0 0.0
    %2772 = vmatpush1.msra.mxu0 0.0
    %2773 = vmatprep.subr.mxu0 0.0
    %2774 = vmatpush1.msra.mxu0 0.0
    %2775 = vmatprep.subr.mxu0 0.0
    %2776 = vmatpush1.msra.mxu0 0.0
    %2777 = vmatprep.subr.mxu0 0.0
    %2778 = vmatpush1.msra.mxu0 0.0
    %2779 = vmatprep.subr.mxu0 0.0
    %2780 = vmatpush1.msra.mxu0 0.0
    %2781 = vmatprep.subr.mxu0 0.0
    %2782 = vmatpush1.msra.mxu0 0.0
    %2783 = vmatprep.mubr.f32.mxu0 0.0
    %2784 = vmatmul.mubr.f32.gmra.mrb[0].mxu0 %v2717
    %v2785 = vpop.f32.mrb[0].mxu0
    %v2786 = vadd.f32 %v2715, %v2785
    %v2787 = vpop.f32.mrb[0].mxu0
    %2788 = vdwg.mxu0
    %v2789 = vld [vmem:[#allocation18] sm:$0xff]
    %v2790 = vld [vmem:[#allocation18 + $0x8] sm:$0xff]
    %v2791 = vld [vmem:[#allocation18 + $0x10] sm:$0xff]
    %v2792 = vld [vmem:[#allocation18 + $0x18] sm:$0xff]
    %v2793 = vld [vmem:[#allocation18 + $0x20] sm:$0xff]
    %v2794 = vld [vmem:[#allocation18 + $0x28] sm:$0xff]
    %v2795 = vld [vmem:[#allocation18 + $0x30] sm:$0xff]
    %v2796 = vld [vmem:[#allocation18 + $0x38] sm:$0xff]
    %v2797 = vld [vmem:[#allocation19] sm:$0x1]
    %v2799 = vlaneseq
    %v2800 = vshrl.u32 %v2799, 7
    %v2801 = vsub.s32 0, %v2800
    %v2802 = vrot.slane %v2797, %v2801
    %v2805 = vsel %vm873, %v2694, 0
    %v2808 = vsel %vm873, %v2695, 0
    %v2811 = vsel %vm873, %v2696, 0
    %v2814 = vsel %vm873, %v2697, 0
    %v2817 = vsel %vm873, %v2698, 0
    %v2820 = vsel %vm873, %v2699, 0
    %v2823 = vsel %vm873, %v2700, 0
    %v2826 = vsel %vm873, %v2701, 0
    %2828 = vmatprep.subr.mxu0 0.0
    %2829 = vmatpush1.msra.mxu0 %v2789
    %2830 = vmatprep.subr.mxu0 0.0
    %2831 = vmatpush1.msra.mxu0 %v2790
    %2832 = vmatprep.subr.mxu0 0.0
    %2833 = vmatpush1.msra.mxu0 %v2791
    %2834 = vmatprep.subr.mxu0 0.0
    %2835 = vmatpush1.msra.mxu0 %v2792
    %2836 = vmatprep.subr.mxu0 0.0
    %2837 = vmatpush1.msra.mxu0 %v2793
    %2838 = vmatprep.subr.mxu0 0.0
    %2839 = vmatpush1.msra.mxu0 %v2794
    %2840 = vmatprep.subr.mxu0 0.0
    %2841 = vmatpush1.msra.mxu0 %v2795
    %2842 = vmatprep.subr.mxu0 0.0
    %2843 = vmatpush1.msra.mxu0 %v2796
    %2844 = vmatprep.subr.mxu0 0.0
    %2845 = vmatpush1.msra.mxu0 0.0
    %2846 = vmatprep.subr.mxu0 0.0
    %2847 = vmatpush1.msra.mxu0 0.0
    %2848 = vmatprep.subr.mxu0 0.0
    %2849 = vmatpush1.msra.mxu0 0.0
    %2850 = vmatprep.subr.mxu0 0.0
    %2851 = vmatpush1.msra.mxu0 0.0
    %2852 = vmatprep.subr.mxu0 0.0
    %2853 = vmatpush1.msra.mxu0 0.0
    %2854 = vmatprep.subr.mxu0 0.0
    %2855 = vmatpush1.msra.mxu0 0.0
    %2856 = vmatprep.subr.mxu0 0.0
    %2857 = vmatpush1.msra.mxu0 0.0
    %2858 = vmatprep.subr.mxu0 0.0
    %2859 = vmatpush1.msra.mxu0 0.0
    %2860 = vmatprep.subr.mxu0 0.0
    %2861 = vmatpush1.msra.mxu0 0.0
    %2862 = vmatprep.subr.mxu0 0.0
    %2863 = vmatpush1.msra.mxu0 0.0
    %2864 = vmatprep.subr.mxu0 0.0
    %2865 = vmatpush1.msra.mxu0 0.0
    %2866 = vmatprep.subr.mxu0 0.0
    %2867 = vmatpush1.msra.mxu0 0.0
    %2868 = vmatprep.subr.mxu0 0.0
    %2869 = vmatpush1.msra.mxu0 0.0
    %2870 = vmatprep.subr.mxu0 0.0
    %2871 = vmatpush1.msra.mxu0 0.0
    %2872 = vmatprep.subr.mxu0 0.0
    %2873 = vmatpush1.msra.mxu0 0.0
    %2874 = vmatprep.subr.mxu0 0.0
    %2875 = vmatpush1.msra.mxu0 0.0
    %2876 = vmatprep.subr.mxu0 0.0
    %2877 = vmatpush1.msra.mxu0 0.0
    %2878 = vmatprep.subr.mxu0 0.0
    %2879 = vmatpush1.msra.mxu0 0.0
    %2880 = vmatprep.subr.mxu0 0.0
    %2881 = vmatpush1.msra.mxu0 0.0
    %2882 = vmatprep.subr.mxu0 0.0
    %2883 = vmatpush1.msra.mxu0 0.0
    %2884 = vmatprep.subr.mxu0 0.0
    %2885 = vmatpush1.msra.mxu0 0.0
    %2886 = vmatprep.subr.mxu0 0.0
    %2887 = vmatpush1.msra.mxu0 0.0
    %2888 = vmatprep.subr.mxu0 0.0
    %2889 = vmatpush1.msra.mxu0 0.0
    %2890 = vmatprep.subr.mxu0 0.0
    %2891 = vmatpush1.msra.mxu0 0.0
    %2892 = vmatprep.mubr.f32.mxu0 0.0
    %2893 = vmatmul.mubr.f32.gmra.mrb[0].mxu0 %v2805
    %v2894 = vpop.f32.mrb[0].mxu0
    %v2895 = vadd.f32 %v2802, %v2894
    %v2896 = vpop.f32.mrb[0].mxu0
    %2897 = vmatprep.mubr.f32.mxu0 0.0
    %2898 = vmatmul.mubr.f32.gmra.mrb[0].mxu0 %v2808
    %v2899 = vpop.f32.mrb[0].mxu0
    %v2900 = vadd.f32 %v2802, %v2899
    %v2901 = vpop.f32.mrb[0].mxu0
    %2902 = vmatprep.mubr.f32.mxu0 0.0
    %2903 = vmatmul.mubr.f32.gmra.mrb[0].mxu0 %v2811
    %v2904 = vpop.f32.mrb[0].mxu0
    %v2905 = vadd.f32 %v2802, %v2904
    %v2906 = vpop.f32.mrb[0].mxu0
    %2907 = vmatprep.mubr.f32.mxu0 0.0
    %2908 = vmatmul.mubr.f32.gmra.mrb[0].mxu0 %v2814
    %v2909 = vpop.f32.mrb[0].mxu0
    %v2910 = vadd.f32 %v2802, %v2909
    %v2911 = vpop.f32.mrb[0].mxu0
    %2912 = vmatprep.mubr.f32.mxu0 0.0
    %2913 = vmatmul.mubr.f32.gmra.mrb[0].mxu0 %v2817
    %v2914 = vpop.f32.mrb[0].mxu0
    %v2915 = vadd.f32 %v2802, %v2914
    %v2916 = vpop.f32.mrb[0].mxu0
    %2917 = vmatprep.mubr.f32.mxu0 0.0
    %2918 = vmatmul.mubr.f32.gmra.mrb[0].mxu0 %v2820
    %v2919 = vpop.f32.mrb[0].mxu0
    %v2920 = vadd.f32 %v2802, %v2919
    %v2921 = vpop.f32.mrb[0].mxu0
    %2922 = vmatprep.mubr.f32.mxu0 0.0
    %2923 = vmatmul.mubr.f32.gmra.mrb[0].mxu0 %v2823
    %v2924 = vpop.f32.mrb[0].mxu0
    %v2925 = vadd.f32 %v2802, %v2924
    %v2926 = vpop.f32.mrb[0].mxu0
    %2927 = vmatprep.mubr.f32.mxu0 0.0
    %2928 = vmatmul.mubr.f32.gmra.mrb[0].mxu0 %v2826
    %v2929 = vpop.f32.mrb[0].mxu0
    %v2930 = vadd.f32 %v2802, %v2929
    %v2931 = vpop.f32.mrb[0].mxu0
    %2932 = vdwg.mxu0
    %v2933 = vld [vmem:[#allocation21] sm:$0xff]
    %v2934 = vld [vmem:[#allocation21 + $0x8] sm:$0xff]
    %v2935 = vld [vmem:[#allocation21 + $0x10] sm:$0xff]
    %v2936 = vld [vmem:[#allocation21 + $0x18] sm:$0xff]
    %v2937 = vld [vmem:[#allocation21 + $0x20] sm:$0xff]
    %v2938 = vld [vmem:[#allocation21 + $0x28] sm:$0xff]
    %v2939 = vld [vmem:[#allocation21 + $0x30] sm:$0xff]
    %v2940 = vld [vmem:[#allocation21 + $0x38] sm:$0xff]
    %v2941 = vld [vmem:[#allocation22] sm:$0x1]
    %v2943 = vlaneseq
    %v2944 = vshrl.u32 %v2943, 7
    %v2945 = vsub.s32 0, %v2944
    %v2946 = vrot.slane %v2941, %v2945
    %2948 = vmatprep.subr.mxu0 0.0
    %2949 = vmatpush1.msra.mxu0 %v2933
    %2950 = vmatprep.subr.mxu0 0.0
    %2951 = vmatpush1.msra.mxu0 %v2934
    %2952 = vmatprep.subr.mxu0 0.0
    %2953 = vmatpush1.msra.mxu0 %v2935
    %2954 = vmatprep.subr.mxu0 0.0
    %2955 = vmatpush1.msra.mxu0 %v2936
    %2956 = vmatprep.subr.mxu0 0.0
    %2957 = vmatpush1.msra.mxu0 %v2937
    %2958 = vmatprep.subr.mxu0 0.0
    %2959 = vmatpush1.msra.mxu0 %v2938
    %2960 = vmatprep.subr.mxu0 0.0
    %2961 = vmatpush1.msra.mxu0 %v2939
    %2962 = vmatprep.subr.mxu0 0.0
    %2963 = vmatpush1.msra.mxu0 %v2940
    %2964 = vmatprep.subr.mxu0 0.0
    %2965 = vmatpush1.msra.mxu0 0.0
    %2966 = vmatprep.subr.mxu0 0.0
    %2967 = vmatpush1.msra.mxu0 0.0
    %2968 = vmatprep.subr.mxu0 0.0
    %2969 = vmatpush1.msra.mxu0 0.0
    %2970 = vmatprep.subr.mxu0 0.0
    %2971 = vmatpush1.msra.mxu0 0.0
    %2972 = vmatprep.subr.mxu0 0.0
    %2973 = vmatpush1.msra.mxu0 0.0
    %2974 = vmatprep.subr.mxu0 0.0
    %2975 = vmatpush1.msra.mxu0 0.0
    %2976 = vmatprep.subr.mxu0 0.0
    %2977 = vmatpush1.msra.mxu0 0.0
    %2978 = vmatprep.subr.mxu0 0.0
    %2979 = vmatpush1.msra.mxu0 0.0
    %2980 = vmatprep.subr.mxu0 0.0
    %2981 = vmatpush1.msra.mxu0 0.0
    %2982 = vmatprep.subr.mxu0 0.0
    %2983 = vmatpush1.msra.mxu0 0.0
    %2984 = vmatprep.subr.mxu0 0.0
    %2985 = vmatpush1.msra.mxu0 0.0
    %2986 = vmatprep.subr.mxu0 0.0
    %2987 = vmatpush1.msra.mxu0 0.0
    %2988 = vmatprep.subr.mxu0 0.0
    %2989 = vmatpush1.msra.mxu0 0.0
    %2990 = vmatprep.subr.mxu0 0.0
    %2991 = vmatpush1.msra.mxu0 0.0
    %2992 = vmatprep.subr.mxu0 0.0
    %2993 = vmatpush1.msra.mxu0 0.0
    %2994 = vmatprep.subr.mxu0 0.0
    %2995 = vmatpush1.msra.mxu0 0.0
    %2996 = vmatprep.subr.mxu0 0.0
    %2997 = vmatpush1.msra.mxu0 0.0
    %2998 = vmatprep.subr.mxu0 0.0
    %2999 = vmatpush1.msra.mxu0 0.0
    %3000 = vmatprep.subr.mxu0 0.0
    %3001 = vmatpush1.msra.mxu0 0.0
    %3002 = vmatprep.subr.mxu0 0.0
    %3003 = vmatpush1.msra.mxu0 0.0
    %3004 = vmatprep.subr.mxu0 0.0
    %3005 = vmatpush1.msra.mxu0 0.0
    %3006 = vmatprep.subr.mxu0 0.0
    %3007 = vmatpush1.msra.mxu0 0.0
    %3008 = vmatprep.subr.mxu0 0.0
    %3009 = vmatpush1.msra.mxu0 0.0
    %3010 = vmatprep.subr.mxu0 0.0
    %3011 = vmatpush1.msra.mxu0 0.0
    %3012 = vmatprep.mubr.f32.mxu0 0.0
    %3013 = vmatmul.mubr.f32.gmra.mrb[0].mxu0 %v2805
    %v3014 = vpop.f32.mrb[0].mxu0
    %v3015 = vadd.f32 %v2946, %v3014
    %v3016 = vpop.f32.mrb[0].mxu0
    %3017 = vmatprep.mubr.f32.mxu0 0.0
    %3018 = vmatmul.mubr.f32.gmra.mrb[0].mxu0 %v2808
    %v3019 = vpop.f32.mrb[0].mxu0
    %v3020 = vadd.f32 %v2946, %v3019
    %v3021 = vpop.f32.mrb[0].mxu0
    %3022 = vmatprep.mubr.f32.mxu0 0.0
    %3023 = vmatmul.mubr.f32.gmra.mrb[0].mxu0 %v2811
    %v3024 = vpop.f32.mrb[0].mxu0
    %v3025 = vadd.f32 %v2946, %v3024
    %v3026 = vpop.f32.mrb[0].mxu0
    %3027 = vmatprep.mubr.f32.mxu0 0.0
    %3028 = vmatmul.mubr.f32.gmra.mrb[0].mxu0 %v2814
    %v3029 = vpop.f32.mrb[0].mxu0
    %v3030 = vadd.f32 %v2946, %v3029
    %v3031 = vpop.f32.mrb[0].mxu0
    %3032 = vmatprep.mubr.f32.mxu0 0.0
    %3033 = vmatmul.mubr.f32.gmra.mrb[0].mxu0 %v2817
    %v3034 = vpop.f32.mrb[0].mxu0
    %v3035 = vadd.f32 %v2946, %v3034
    %v3036 = vpop.f32.mrb[0].mxu0
    %3037 = vmatprep.mubr.f32.mxu0 0.0
    %3038 = vmatmul.mubr.f32.gmra.mrb[0].mxu0 %v2820
    %v3039 = vpop.f32.mrb[0].mxu0
    %v3040 = vadd.f32 %v2946, %v3039
    %v3041 = vpop.f32.mrb[0].mxu0
    %3042 = vmatprep.mubr.f32.mxu0 0.0
    %3043 = vmatmul.mubr.f32.gmra.mrb[0].mxu0 %v2823
    %v3044 = vpop.f32.mrb[0].mxu0
    %v3045 = vadd.f32 %v2946, %v3044
    %v3046 = vpop.f32.mrb[0].mxu0
    %3047 = vmatprep.mubr.f32.mxu0 0.0
    %3048 = vmatmul.mubr.f32.gmra.mrb[0].mxu0 %v2826
    %v3049 = vpop.f32.mrb[0].mxu0
    %v3050 = vadd.f32 %v2946, %v3049
    %v3051 = vpop.f32.mrb[0].mxu0
    %3052 = vdwg.mxu0
    %v3053 = vmul.f32 %v2895, %v2786
    %v3054 = vmul.f32 %v2900, %v2786
    %v3055 = vmul.f32 %v2905, %v2786
    %v3056 = vmul.f32 %v2910, %v2786
    %v3057 = vmul.f32 %v2915, %v2786
    %v3058 = vmul.f32 %v2920, %v2786
    %v3059 = vmul.f32 %v2925, %v2786
    %v3060 = vmul.f32 %v2930, %v2786
    %v3061 = vld [vmem:[#allocation27] sm:$0xff]
    %v3062 = vld [vmem:[#allocation27 + $0x8] sm:$0xff]
    %v3063 = vld [vmem:[#allocation27 + $0x10] sm:$0xff]
    %v3064 = vld [vmem:[#allocation27 + $0x18] sm:$0xff]
    %v3065 = vld [vmem:[#allocation27 + $0x20] sm:$0xff]
    %v3066 = vld [vmem:[#allocation27 + $0x28] sm:$0xff]
    %v3067 = vld [vmem:[#allocation27 + $0x30] sm:$0xff]
    %v3068 = vld [vmem:[#allocation27 + $0x38] sm:$0xff]
    %v3070 = vsel %vm873, %v3053, 0
    %v3073 = vsel %vm873, %v3054, 0
    %v3076 = vsel %vm873, %v3055, 0
    %v3079 = vsel %vm873, %v3056, 0
    %v3082 = vsel %vm873, %v3057, 0
    %v3085 = vsel %vm873, %v3058, 0
    %v3088 = vsel %vm873, %v3059, 0
    %v3091 = vsel %vm873, %v3060, 0
    %3093 = vmatprep.subr.mxu0 0.0
    %3094 = vmatpush1.msra.mxu0 %v3061
    %3095 = vmatprep.subr.mxu0 0.0
    %3096 = vmatpush1.msra.mxu0 %v3062
    %3097 = vmatprep.subr.mxu0 0.0
    %3098 = vmatpush1.msra.mxu0 %v3063
    %3099 = vmatprep.subr.mxu0 0.0
    %3100 = vmatpush1.msra.mxu0 %v3064
    %3101 = vmatprep.subr.mxu0 0.0
    %3102 = vmatpush1.msra.mxu0 %v3065
    %3103 = vmatprep.subr.mxu0 0.0
    %3104 = vmatpush1.msra.mxu0 %v3066
    %3105 = vmatprep.subr.mxu0 0.0
    %3106 = vmatpush1.msra.mxu0 %v3067
    %3107 = vmatprep.subr.mxu0 0.0
    %3108 = vmatpush1.msra.mxu0 %v3068
    %3109 = vmatprep.subr.mxu0 0.0
    %3110 = vmatpush1.msra.mxu0 0.0
    %3111 = vmatprep.subr.mxu0 0.0
    %3112 = vmatpush1.msra.mxu0 0.0
    %3113 = vmatprep.subr.mxu0 0.0
    %3114 = vmatpush1.msra.mxu0 0.0
    %3115 = vmatprep.subr.mxu0 0.0
    %3116 = vmatpush1.msra.mxu0 0.0
    %3117 = vmatprep.subr.mxu0 0.0
    %3118 = vmatpush1.msra.mxu0 0.0
    %3119 = vmatprep.subr.mxu0 0.0
    %3120 = vmatpush1.msra.mxu0 0.0
    %3121 = vmatprep.subr.mxu0 0.0
    %3122 = vmatpush1.msra.mxu0 0.0
    %3123 = vmatprep.subr.mxu0 0.0
    %3124 = vmatpush1.msra.mxu0 0.0
    %3125 = vmatprep.subr.mxu0 0.0
    %3126 = vmatpush1.msra.mxu0 0.0
    %3127 = vmatprep.subr.mxu0 0.0
    %3128 = vmatpush1.msra.mxu0 0.0
    %3129 = vmatprep.subr.mxu0 0.0
    %3130 = vmatpush1.msra.mxu0 0.0
    %3131 = vmatprep.subr.mxu0 0.0
    %3132 = vmatpush1.msra.mxu0 0.0
    %3133 = vmatprep.subr.mxu0 0.0
    %3134 = vmatpush1.msra.mxu0 0.0
    %3135 = vmatprep.subr.mxu0 0.0
    %3136 = vmatpush1.msra.mxu0 0.0
    %3137 = vmatprep.subr.mxu0 0.0
    %3138 = vmatpush1.msra.mxu0 0.0
    %3139 = vmatprep.subr.mxu0 0.0
    %3140 = vmatpush1.msra.mxu0 0.0
    %3141 = vmatprep.subr.mxu0 0.0
    %3142 = vmatpush1.msra.mxu0 0.0
    %3143 = vmatprep.subr.mxu0 0.0
    %3144 = vmatpush1.msra.mxu0 0.0
    %3145 = vmatprep.subr.mxu0 0.0
    %3146 = vmatpush1.msra.mxu0 0.0
    %3147 = vmatprep.subr.mxu0 0.0
    %3148 = vmatpush1.msra.mxu0 0.0
    %3149 = vmatprep.subr.mxu0 0.0
    %3150 = vmatpush1.msra.mxu0 0.0
    %3151 = vmatprep.subr.mxu0 0.0
    %3152 = vmatpush1.msra.mxu0 0.0
    %3153 = vmatprep.subr.mxu0 0.0
    %3154 = vmatpush1.msra.mxu0 0.0
    %3155 = vmatprep.subr.mxu0 0.0
    %3156 = vmatpush1.msra.mxu0 0.0
    %3157 = vmatprep.mubr.f32.mxu0 0.0
    %3158 = vmatmul.mubr.f32.gmra.mrb[0].mxu0 %v3070
    %v3159 = vpop.f32.mrb[0].mxu0
    %v3160 = vadd.f32 0.0, %v3159
    %v3161 = vpop.f32.mrb[0].mxu0
    %3162 = vmatprep.mubr.f32.mxu0 0.0
    %3163 = vmatmul.mubr.f32.gmra.mrb[0].mxu0 %v3073
    %v3164 = vpop.f32.mrb[0].mxu0
    %v3165 = vadd.f32 0.0, %v3164
    %v3166 = vpop.f32.mrb[0].mxu0
    %3167 = vmatprep.mubr.f32.mxu0 0.0
    %3168 = vmatmul.mubr.f32.gmra.mrb[0].mxu0 %v3076
    %v3169 = vpop.f32.mrb[0].mxu0
    %v3170 = vadd.f32 0.0, %v3169
    %v3171 = vpop.f32.mrb[0].mxu0
    %3172 = vmatprep.mubr.f32.mxu0 0.0
    %3173 = vmatmul.mubr.f32.gmra.mrb[0].mxu0 %v3079
    %v3174 = vpop.f32.mrb[0].mxu0
    %v3175 = vadd.f32 0.0, %v3174
    %v3176 = vpop.f32.mrb[0].mxu0
    %3177 = vmatprep.mubr.f32.mxu0 0.0
    %3178 = vmatmul.mubr.f32.gmra.mrb[0].mxu0 %v3082
    %v3179 = vpop.f32.mrb[0].mxu0
    %v3180 = vadd.f32 0.0, %v3179
    %v3181 = vpop.f32.mrb[0].mxu0
    %3182 = vmatprep.mubr.f32.mxu0 0.0
    %3183 = vmatmul.mubr.f32.gmra.mrb[0].mxu0 %v3085
    %v3184 = vpop.f32.mrb[0].mxu0
    %v3185 = vadd.f32 0.0, %v3184
    %v3186 = vpop.f32.mrb[0].mxu0
    %3187 = vmatprep.mubr.f32.mxu0 0.0
    %3188 = vmatmul.mubr.f32.gmra.mrb[0].mxu0 %v3088
    %v3189 = vpop.f32.mrb[0].mxu0
    %v3190 = vadd.f32 0.0, %v3189
    %v3191 = vpop.f32.mrb[0].mxu0
    %3192 = vmatprep.mubr.f32.mxu0 0.0
    %3193 = vmatmul.mubr.f32.gmra.mrb[0].mxu0 %v3091
    %v3194 = vpop.f32.mrb[0].mxu0
    %v3195 = vadd.f32 0.0, %v3194
    %v3196 = vpop.f32.mrb[0].mxu0
    %3197 = vdwg.mxu0
    %v3198 = vmul.f32 %v3160, 0.25
    %v3199 = vmul.f32 %v3165, 0.25
    %v3200 = vmul.f32 %v3170, 0.25
    %v3201 = vmul.f32 %v3175, 0.25
    %v3202 = vmul.f32 %v3180, 0.25
    %v3203 = vmul.f32 %v3185, 0.25
    %v3204 = vmul.f32 %v3190, 0.25
    %v3205 = vmul.f32 %v3195, 0.25
    %v3206 = vmax.f32 %v3198, %v3202
    %v3207 = vmax.f32 %v3199, %v3203
    %v3208 = vmax.f32 %v3200, %v3204
    %v3209 = vmax.f32 %v3201, %v3205
    %v3210 = vmax.f32 %v3206, %v3207
    %v3211 = vmax.f32 %v3208, %v3209
    %v3212 = vmax.f32 %v3210, %v3211
    %v3213 = vsub.f32 %v3198, %v3212
    %v3214 = vsub.f32 %v3199, %v3212
    %v3215 = vsub.f32 %v3200, %v3212
    %v3216 = vsub.f32 %v3201, %v3212
    %v3217 = vsub.f32 %v3202, %v3212
    %v3218 = vsub.f32 %v3203, %v3212
    %v3219 = vsub.f32 %v3204, %v3212
    %v3220 = vsub.f32 %v3205, %v3212
    %v3221 = vmul.f32 %v3213, 1.442695
    %v3222 = vpow.pop %v3221
    %v3223 = vmul.f32 %v3214, 1.442695
    %v3224 = vpow.pop %v3223
    %v3225 = vmul.f32 %v3215, 1.442695
    %v3226 = vpow.pop %v3225
    %v3227 = vmul.f32 %v3216, 1.442695
    %v3228 = vpow.pop %v3227
    %v3229 = vmul.f32 %v3217, 1.442695
    %v3230 = vpow.pop %v3229
    %v3231 = vmul.f32 %v3218, 1.442695
    %v3232 = vpow.pop %v3231
    %v3233 = vmul.f32 %v3219, 1.442695
    %v3234 = vpow.pop %v3233
    %v3235 = vmul.f32 %v3220, 1.442695
    %v3236 = vpow.pop %v3235
    %v3237 = vadd.f32 %v3222, %v3224
    %v3238 = vadd.f32 %v3237, %v3226
    %v3239 = vadd.f32 %v3238, %v3228
    %v3240 = vadd.f32 %v3239, %v3230
    %v3241 = vadd.f32 %v3240, %v3232
    %v3242 = vadd.f32 %v3241, %v3234
    %v3243 = vadd.f32 %v3242, %v3236
    %v3244 = vrcp.pop %v3243
    %v3245 = vmul.f32 %v3222, %v3244
    %v3246 = vmul.f32 %v3224, %v3244
    %v3247 = vmul.f32 %v3226, %v3244
    %v3248 = vmul.f32 %v3228, %v3244
    %v3249 = vmul.f32 %v3230, %v3244
    %v3250 = vmul.f32 %v3232, %v3244
    %v3251 = vmul.f32 %v3234, %v3244
    %v3252 = vmul.f32 %v3236, %v3244
    %v3253 = vld [vmem:[%s18] sm:$0xff]
    %v3254 = vld [vmem:[%s18 + $0x8] sm:$0xff]
    %v3255 = vld [vmem:[%s18 + $0x10] sm:$0xff]
    %v3256 = vld [vmem:[%s18 + $0x18] sm:$0xff]
    %v3257 = vld [vmem:[%s18 + $0x20] sm:$0xff]
    %v3258 = vld [vmem:[%s18 + $0x28] sm:$0xff]
    %v3259 = vld [vmem:[%s18 + $0x30] sm:$0xff]
    %v3260 = vld [vmem:[%s18 + $0x38] sm:$0xff]
    %v3261 = vld [vmem:[%s18 + $0x40] sm:$0xff]
    %v3262 = vld [vmem:[%s18 + $0x48] sm:$0xff]
    %v3263 = vld [vmem:[%s18 + $0x50] sm:$0xff]
    %v3264 = vld [vmem:[%s18 + $0x58] sm:$0xff]
    %v3265 = vld [vmem:[%s18 + $0x60] sm:$0xff]
    %v3266 = vld [vmem:[%s18 + $0x68] sm:$0xff]
    %v3267 = vld [vmem:[%s18 + $0x70] sm:$0xff]
    %v3268 = vld [vmem:[%s18 + $0x78] sm:$0xff]
    %3269 = vmatprep.subr.mxu0 0.0
    %3270 = vmatpush1.msra.mxu0 %v3253
    %3271 = vmatprep.subr.mxu0 0.0
    %3272 = vmatpush1.msra.mxu0 %v3254
    %3273 = vmatprep.subr.mxu0 0.0
    %3274 = vmatpush1.msra.mxu0 %v3255
    %3275 = vmatprep.subr.mxu0 0.0
    %3276 = vmatpush1.msra.mxu0 %v3256
    %3277 = vmatprep.subr.mxu0 0.0
    %3278 = vmatpush1.msra.mxu0 %v3257
    %3279 = vmatprep.subr.mxu0 0.0
    %3280 = vmatpush1.msra.mxu0 %v3258
    %3281 = vmatprep.subr.mxu0 0.0
    %3282 = vmatpush1.msra.mxu0 %v3259
    %3283 = vmatprep.subr.mxu0 0.0
    %3284 = vmatpush1.msra.mxu0 %v3260
    %3285 = vmatprep.subr.mxu0 0.0
    %3286 = vmatpush1.msra.mxu0 %v3261
    %3287 = vmatprep.subr.mxu0 0.0
    %3288 = vmatpush1.msra.mxu0 %v3262
    %3289 = vmatprep.subr.mxu0 0.0
    %3290 = vmatpush1.msra.mxu0 %v3263
    %3291 = vmatprep.subr.mxu0 0.0
    %3292 = vmatpush1.msra.mxu0 %v3264
    %3293 = vmatprep.subr.mxu0 0.0
    %3294 = vmatpush1.msra.mxu0 %v3265
    %3295 = vmatprep.subr.mxu0 0.0
    %3296 = vmatpush1.msra.mxu0 %v3266
    %3297 = vmatprep.subr.mxu0 0.0
    %3298 = vmatpush1.msra.mxu0 %v3267
    %3299 = vmatprep.subr.mxu0 0.0
    %3300 = vmatpush1.msra.mxu0 %v3268
    %3301 = vmatprep.subr.mxu0 0.0
    %3302 = vmatpush1.msra.mxu0 0.0
    %3303 = vmatprep.subr.mxu0 0.0
    %3304 = vmatpush1.msra.mxu0 0.0
    %3305 = vmatprep.subr.mxu0 0.0
    %3306 = vmatpush1.msra.mxu0 0.0
    %3307 = vmatprep.subr.mxu0 0.0
    %3308 = vmatpush1.msra.mxu0 0.0
    %3309 = vmatprep.subr.mxu0 0.0
    %3310 = vmatpush1.msra.mxu0 0.0
    %3311 = vmatprep.subr.mxu0 0.0
    %3312 = vmatpush1.msra.mxu0 0.0
    %3313 = vmatprep.subr.mxu0 0.0
    %3314 = vmatpush1.msra.mxu0 0.0
    %3315 = vmatprep.subr.mxu0 0.0
    %3316 = vmatpush1.msra.mxu0 0.0
    %3317 = vmatprep.subr.mxu0 0.0
    %3318 = vmatpush1.msra.mxu0 0.0
    %3319 = vmatprep.subr.mxu0 0.0
    %3320 = vmatpush1.msra.mxu0 0.0
    %3321 = vmatprep.subr.mxu0 0.0
    %3322 = vmatpush1.msra.mxu0 0.0
    %3323 = vmatprep.subr.mxu0 0.0
    %3324 = vmatpush1.msra.mxu0 0.0
    %3325 = vmatprep.subr.mxu0 0.0
    %3326 = vmatpush1.msra.mxu0 0.0
    %3327 = vmatprep.subr.mxu0 0.0
    %3328 = vmatpush1.msra.mxu0 0.0
    %3329 = vmatprep.subr.mxu0 0.0
    %3330 = vmatpush1.msra.mxu0 0.0
    %3331 = vmatprep.subr.mxu0 0.0
    %3332 = vmatpush1.msra.mxu0 0.0
    %3333 = vmatprep.mubr.f32.mxu0 0.0
    %3334 = vmatmul.mubr.f32.gmra.mrb[0].mxu0 %v3245
    %v3335 = vpop.f32.mrb[0].mxu0
    %v3336 = vadd.f32 0.0, %v3335
    %v3337 = vpop.f32.mrb[0].mxu0
    %3338 = vmatprep.mubr.f32.mxu0 0.0
    %3339 = vmatmul.mubr.f32.gmra.mrb[0].mxu0 %v3246
    %v3340 = vpop.f32.mrb[0].mxu0
    %v3341 = vadd.f32 0.0, %v3340
    %v3342 = vpop.f32.mrb[0].mxu0
    %3343 = vmatprep.mubr.f32.mxu0 0.0
    %3344 = vmatmul.mubr.f32.gmra.mrb[0].mxu0 %v3247
    %v3345 = vpop.f32.mrb[0].mxu0
    %v3346 = vadd.f32 0.0, %v3345
    %v3347 = vpop.f32.mrb[0].mxu0
    %3348 = vmatprep.mubr.f32.mxu0 0.0
    %3349 = vmatmul.mubr.f32.gmra.mrb[0].mxu0 %v3248
    %v3350 = vpop.f32.mrb[0].mxu0
    %v3351 = vadd.f32 0.0, %v3350
    %v3352 = vpop.f32.mrb[0].mxu0
    %3353 = vmatprep.mubr.f32.mxu0 0.0
    %3354 = vmatmul.mubr.f32.gmra.mrb[0].mxu0 %v3249
    %v3355 = vpop.f32.mrb[0].mxu0
    %v3356 = vadd.f32 0.0, %v3355
    %v3357 = vpop.f32.mrb[0].mxu0
    %3358 = vmatprep.mubr.f32.mxu0 0.0
    %3359 = vmatmul.mubr.f32.gmra.mrb[0].mxu0 %v3250
    %v3360 = vpop.f32.mrb[0].mxu0
    %v3361 = vadd.f32 0.0, %v3360
    %v3362 = vpop.f32.mrb[0].mxu0
    %3363 = vmatprep.mubr.f32.mxu0 0.0
    %3364 = vmatmul.mubr.f32.gmra.mrb[0].mxu0 %v3251
    %v3365 = vpop.f32.mrb[0].mxu0
    %v3366 = vadd.f32 0.0, %v3365
    %v3367 = vpop.f32.mrb[0].mxu0
    %3368 = vmatprep.mubr.f32.mxu0 0.0
    %3369 = vmatmul.mubr.f32.gmra.mrb[0].mxu0 %v3252
    %v3370 = vpop.f32.mrb[0].mxu0
    %v3371 = vadd.f32 0.0, %v3370
    %v3372 = vpop.f32.mrb[0].mxu0
    %3373 = vdwg.mxu0
    %v3374 = vmul.f32 %v3336, %v3015
    %v3375 = vmul.f32 %v3341, %v3020
    %v3376 = vmul.f32 %v3346, %v3025
    %v3377 = vmul.f32 %v3351, %v3030
    %v3378 = vmul.f32 %v3356, %v3035
    %v3379 = vmul.f32 %v3361, %v3040
    %v3380 = vmul.f32 %v3366, %v3045
    %v3381 = vmul.f32 %v3371, %v3050
    %v3382 = vsel %vm873, %v3374, 0.0
    %v3383 = vsel %vm873, %v3375, 0.0
    %v3384 = vadd.f32 %v3382, %v3383
    %v3385 = vsel %vm873, %v3376, 0.0
    %v3386 = vadd.f32 %v3384, %v3385
    %v3387 = vsel %vm873, %v3377, 0.0
    %v3388 = vadd.f32 %v3386, %v3387
    %v3389 = vsel %vm873, %v3378, 0.0
    %v3390 = vadd.f32 %v3388, %v3389
    %v3391 = vsel %vm873, %v3379, 0.0
    %v3392 = vadd.f32 %v3390, %v3391
    %v3393 = vsel %vm873, %v3380, 0.0
    %v3394 = vadd.f32 %v3392, %v3393
    %v3395 = vsel %vm873, %v3381, 0.0
    %v3396 = vadd.f32 %v3394, %v3395
    %v3397 = vld [vmem:[#allocation24] sm:$0xff]
    %v3398 = vld [vmem:[#allocation24 + $0x8] sm:$0xff]
    %v3399 = vld [vmem:[#allocation24 + $0x10] sm:$0xff]
    %v3400 = vld [vmem:[#allocation24 + $0x18] sm:$0xff]
    %v3401 = vld [vmem:[#allocation24 + $0x20] sm:$0xff]
    %v3402 = vld [vmem:[#allocation24 + $0x28] sm:$0xff]
    %v3403 = vld [vmem:[#allocation24 + $0x30] sm:$0xff]
    %v3404 = vld [vmem:[#allocation24 + $0x38] sm:$0xff]
    %v3405 = vld [vmem:[#allocation25] sm:$0x1]
    %v3407 = vlaneseq
    %v3408 = vshrl.u32 %v3407, 7
    %v3409 = vsub.s32 0, %v3408
    %v3410 = vrot.slane %v3405, %v3409
    %v3413 = vsel %vm873, %v3396, 0
    %3415 = vmatprep.subr.mxu0 0.0
    %3416 = vmatpush1.msra.mxu0 %v3397
    %3417 = vmatprep.subr.mxu0 0.0
    %3418 = vmatpush1.msra.mxu0 %v3398
    %3419 = vmatprep.subr.mxu0 0.0
    %3420 = vmatpush1.msra.mxu0 %v3399
    %3421 = vmatprep.subr.mxu0 0.0
    %3422 = vmatpush1.msra.mxu0 %v3400
    %3423 = vmatprep.subr.mxu0 0.0
    %3424 = vmatpush1.msra.mxu0 %v3401
    %3425 = vmatprep.subr.mxu0 0.0
    %3426 = vmatpush1.msra.mxu0 %v3402
    %3427 = vmatprep.subr.mxu0 0.0
    %3428 = vmatpush1.msra.mxu0 %v3403
    %3429 = vmatprep.subr.mxu0 0.0
    %3430 = vmatpush1.msra.mxu0 %v3404
    %3431 = vmatprep.subr.mxu0 0.0
    %3432 = vmatpush1.msra.mxu0 0.0
    %3433 = vmatprep.subr.mxu0 0.0
    %3434 = vmatpush1.msra.mxu0 0.0
    %3435 = vmatprep.subr.mxu0 0.0
    %3436 = vmatpush1.msra.mxu0 0.0
    %3437 = vmatprep.subr.mxu0 0.0
    %3438 = vmatpush1.msra.mxu0 0.0
    %3439 = vmatprep.subr.mxu0 0.0
    %3440 = vmatpush1.msra.mxu0 0.0
    %3441 = vmatprep.subr.mxu0 0.0
    %3442 = vmatpush1.msra.mxu0 0.0
    %3443 = vmatprep.subr.mxu0 0.0
    %3444 = vmatpush1.msra.mxu0 0.0
    %3445 = vmatprep.subr.mxu0 0.0
    %3446 = vmatpush1.msra.mxu0 0.0
    %3447 = vmatprep.subr.mxu0 0.0
    %3448 = vmatpush1.msra.mxu0 0.0
    %3449 = vmatprep.subr.mxu0 0.0
    %3450 = vmatpush1.msra.mxu0 0.0
    %3451 = vmatprep.subr.mxu0 0.0
    %3452 = vmatpush1.msra.mxu0 0.0
    %3453 = vmatprep.subr.mxu0 0.0
    %3454 = vmatpush1.msra.mxu0 0.0
    %3455 = vmatprep.subr.mxu0 0.0
    %3456 = vmatpush1.msra.mxu0 0.0
    %3457 = vmatprep.subr.mxu0 0.0
    %3458 = vmatpush1.msra.mxu0 0.0
    %3459 = vmatprep.subr.mxu0 0.0
    %3460 = vmatpush1.msra.mxu0 0.0
    %3461 = vmatprep.subr.mxu0 0.0
    %3462 = vmatpush1.msra.mxu0 0.0
    %3463 = vmatprep.subr.mxu0 0.0
    %3464 = vmatpush1.msra.mxu0 0.0
    %3465 = vmatprep.subr.mxu0 0.0
    %3466 = vmatpush1.msra.mxu0 0.0
    %3467 = vmatprep.subr.mxu0 0.0
    %3468 = vmatpush1.msra.mxu0 0.0
    %3469 = vmatprep.subr.mxu0 0.0
    %3470 = vmatpush1.msra.mxu0 0.0
    %3471 = vmatprep.subr.mxu0 0.0
    %3472 = vmatpush1.msra.mxu0 0.0
    %3473 = vmatprep.subr.mxu0 0.0
    %3474 = vmatpush1.msra.mxu0 0.0
    %3475 = vmatprep.subr.mxu0 0.0
    %3476 = vmatpush1.msra.mxu0 0.0
    %3477 = vmatprep.subr.mxu0 0.0
    %3478 = vmatpush1.msra.mxu0 0.0
    %3479 = vmatprep.mubr.f32.mxu0 0.0
    %3480 = vmatmul.mubr.f32.gmra.mrb[0].mxu0 %v3413
    %v3481 = vpop.f32.mrb[0].mxu0
    %v3482 = vadd.f32 %v3410, %v3481
    %v3483 = vpop.f32.mrb[0].mxu0
    %3484 = vdwg.mxu0
    %v3485 = vld [vmem:[%s19] sm:$0xff]
    %v3486 = vld [vmem:[%s19 + $0x8] sm:$0xff]
    %v3487 = vld [vmem:[%s19 + $0x10] sm:$0xff]
    %v3488 = vld [vmem:[%s19 + $0x18] sm:$0xff]
    %v3489 = vld [vmem:[%s19 + $0x20] sm:$0xff]
    %v3490 = vld [vmem:[%s19 + $0x28] sm:$0xff]
    %v3491 = vld [vmem:[%s19 + $0x30] sm:$0xff]
    %v3492 = vld [vmem:[%s19 + $0x38] sm:$0xff]
    %v3493 = vld [vmem:[%s19 + $0x40] sm:$0xff]
    %v3494 = vld [vmem:[%s19 + $0x48] sm:$0xff]
    %v3495 = vld [vmem:[%s19 + $0x50] sm:$0xff]
    %v3496 = vld [vmem:[%s19 + $0x58] sm:$0xff]
    %v3497 = vld [vmem:[%s19 + $0x60] sm:$0xff]
    %v3498 = vld [vmem:[%s19 + $0x68] sm:$0xff]
    %v3499 = vld [vmem:[%s19 + $0x70] sm:$0xff]
    %v3500 = vld [vmem:[%s19 + $0x78] sm:$0xff]
    %v3501 = vld [vmem:[%s19 + $0x80] sm:$0xff]
    %v3502 = vld [vmem:[%s19 + $0x88] sm:$0xff]
    %v3503 = vld [vmem:[%s19 + $0x90] sm:$0xff]
    %v3504 = vld [vmem:[%s19 + $0x98] sm:$0xff]
    %v3505 = vld [vmem:[%s19 + $0xa0] sm:$0xff]
    %v3506 = vld [vmem:[%s19 + $0xa8] sm:$0xff]
    %v3507 = vld [vmem:[%s19 + $0xb0] sm:$0xff]
    %v3508 = vld [vmem:[%s19 + $0xb8] sm:$0xff]
    %v3509 = vld [vmem:[%s19 + $0xc0] sm:$0xff]
    %v3510 = vld [vmem:[%s19 + $0xc8] sm:$0xff]
    %v3511 = vld [vmem:[%s19 + $0xd0] sm:$0xff]
    %v3512 = vld [vmem:[%s19 + $0xd8] sm:$0xff]
    %v3513 = vld [vmem:[%s19 + $0xe0] sm:$0xff]
    %v3514 = vld [vmem:[%s19 + $0xe8] sm:$0xff]
    %v3515 = vld [vmem:[%s19 + $0xf0] sm:$0xff]
    %v3516 = vld [vmem:[%s19 + $0xf8] sm:$0xff]
    %v3517 = vld [vmem:[#allocation28] sm:$0xf]
    %v3519 = vlaneseq
    %v3520 = vshrl.u32 %v3519, 7
    %v3521 = vsub.s32 0, %v3520
    %v3522 = vrot.slane %v3517, %v3521
    %v3523 = vlaneseq
    %v3524 = vshrl.u32 %v3523, 7
    %v3525 = vsub.s32 1, %v3524
    %v3526 = vrot.slane %v3517, %v3525
    %v3527 = vlaneseq
    %v3528 = vshrl.u32 %v3527, 7
    %v3529 = vsub.s32 2, %v3528
    %v3530 = vrot.slane %v3517, %v3529
    %v3531 = vlaneseq
    %v3532 = vshrl.u32 %v3531, 7
    %v3533 = vsub.s32 3, %v3532
    %v3534 = vrot.slane %v3517, %v3533
    %v3540 = vsel %vm873, %v3482, 0
    %3542 = vmatprep.subr.mxu0 %v3486
    %3543 = vmatpush1.msra.mxu0 %v3485
    %3544 = vmatprep.subr.mxu0 %v3490
    %3545 = vmatpush1.msra.mxu0 %v3489
    %3546 = vmatprep.subr.mxu0 %v3494
    %3547 = vmatpush1.msra.mxu0 %v3493
    %3548 = vmatprep.subr.mxu0 %v3498
    %3549 = vmatpush1.msra.mxu0 %v3497
    %3550 = vmatprep.subr.mxu0 %v3502
    %3551 = vmatpush1.msra.mxu0 %v3501
    %3552 = vmatprep.subr.mxu0 %v3506
    %3553 = vmatpush1.msra.mxu0 %v3505
    %3554 = vmatprep.subr.mxu0 %v3510
    %3555 = vmatpush1.msra.mxu0 %v3509
    %3556 = vmatprep.subr.mxu0 %v3514
    %3557 = vmatpush1.msra.mxu0 %v3513
    %3558 = vmatprep.subr.mxu0 0.0
    %3559 = vmatpush1.msra.mxu0 0.0
    %3560 = vmatprep.subr.mxu0 0.0
    %3561 = vmatpush1.msra.mxu0 0.0
    %3562 = vmatprep.subr.mxu0 0.0
    %3563 = vmatpush1.msra.mxu0 0.0
    %3564 = vmatprep.subr.mxu0 0.0
    %3565 = vmatpush1.msra.mxu0 0.0
    %3566 = vmatprep.subr.mxu0 0.0
    %3567 = vmatpush1.msra.mxu0 0.0
    %3568 = vmatprep.subr.mxu0 0.0
    %3569 = vmatpush1.msra.mxu0 0.0
    %3570 = vmatprep.subr.mxu0 0.0
    %3571 = vmatpush1.msra.mxu0 0.0
    %3572 = vmatprep.subr.mxu0 0.0
    %3573 = vmatpush1.msra.mxu0 0.0
    %3574 = vmatprep.subr.mxu0 0.0
    %3575 = vmatpush1.msra.mxu0 0.0
    %3576 = vmatprep.subr.mxu0 0.0
    %3577 = vmatpush1.msra.mxu0 0.0
    %3578 = vmatprep.subr.mxu0 0.0
    %3579 = vmatpush1.msra.mxu0 0.0
    %3580 = vmatprep.subr.mxu0 0.0
    %3581 = vmatpush1.msra.mxu0 0.0
    %3582 = vmatprep.subr.mxu0 0.0
    %3583 = vmatpush1.msra.mxu0 0.0
    %3584 = vmatprep.subr.mxu0 0.0
    %3585 = vmatpush1.msra.mxu0 0.0
    %3586 = vmatprep.subr.mxu0 0.0
    %3587 = vmatpush1.msra.mxu0 0.0
    %3588 = vmatprep.subr.mxu0 0.0
    %3589 = vmatpush1.msra.mxu0 0.0
    %3590 = vmatprep.subr.mxu0 0.0
    %3591 = vmatpush1.msra.mxu0 0.0
    %3592 = vmatprep.subr.mxu0 0.0
    %3593 = vmatpush1.msra.mxu0 0.0
    %3594 = vmatprep.subr.mxu0 0.0
    %3595 = vmatpush1.msra.mxu0 0.0
    %3596 = vmatprep.subr.mxu0 0.0
    %3597 = vmatpush1.msra.mxu0 0.0
    %3598 = vmatprep.subr.mxu0 0.0
    %3599 = vmatpush1.msra.mxu0 0.0
    %3600 = vmatprep.subr.mxu0 0.0
    %3601 = vmatpush1.msra.mxu0 0.0
    %3602 = vmatprep.subr.mxu0 0.0
    %3603 = vmatpush1.msra.mxu0 0.0
    %3604 = vmatprep.subr.mxu0 0.0
    %3605 = vmatpush1.msra.mxu0 0.0
    %3606 = vmatprep.mubr.f32.mxu0 0.0
    %3607 = vmatmul.mubr.f32.gmra.mrb[0].mxu0 %v3540
    %v3608 = vpop.f32.mrb[0].mxu0
    %v3609 = vadd.f32 %v3522, %v3608
    %v3610 = vpop.f32.mrb[0].mxu0
    %v3611 = vadd.f32 %v3526, %v3610
    %3612 = vdwg.mxu0
    %3613 = vmatprep.subr.mxu0 %v3488
    %3614 = vmatpush1.msra.mxu0 %v3487
    %3615 = vmatprep.subr.mxu0 %v3492
    %3616 = vmatpush1.msra.mxu0 %v3491
    %3617 = vmatprep.subr.mxu0 %v3496
    %3618 = vmatpush1.msra.mxu0 %v3495
    %3619 = vmatprep.subr.mxu0 %v3500
    %3620 = vmatpush1.msra.mxu0 %v3499
    %3621 = vmatprep.subr.mxu0 %v3504
    %3622 = vmatpush1.msra.mxu0 %v3503
    %3623 = vmatprep.subr.mxu0 %v3508
    %3624 = vmatpush1.msra.mxu0 %v3507
    %3625 = vmatprep.subr.mxu0 %v3512
    %3626 = vmatpush1.msra.mxu0 %v3511
    %3627 = vmatprep.subr.mxu0 %v3516
    %3628 = vmatpush1.msra.mxu0 %v3515
    %3629 = vmatprep.subr.mxu0 0.0
    %3630 = vmatpush1.msra.mxu0 0.0
    %3631 = vmatprep.subr.mxu0 0.0
    %3632 = vmatpush1.msra.mxu0 0.0
    %3633 = vmatprep.subr.mxu0 0.0
    %3634 = vmatpush1.msra.mxu0 0.0
    %3635 = vmatprep.subr.mxu0 0.0
    %3636 = vmatpush1.msra.mxu0 0.0
    %3637 = vmatprep.subr.mxu0 0.0
    %3638 = vmatpush1.msra.mxu0 0.0
    %3639 = vmatprep.subr.mxu0 0.0
    %3640 = vmatpush1.msra.mxu0 0.0
    %3641 = vmatprep.subr.mxu0 0.0
    %3642 = vmatpush1.msra.mxu0 0.0
    %3643 = vmatprep.subr.mxu0 0.0
    %3644 = vmatpush1.msra.mxu0 0.0
    %3645 = vmatprep.subr.mxu0 0.0
    %3646 = vmatpush1.msra.mxu0 0.0
    %3647 = vmatprep.subr.mxu0 0.0
    %3648 = vmatpush1.msra.mxu0 0.0
    %3649 = vmatprep.subr.mxu0 0.0
    %3650 = vmatpush1.msra.mxu0 0.0
    %3651 = vmatprep.subr.mxu0 0.0
    %3652 = vmatpush1.msra.mxu0 0.0
    %3653 = vmatprep.subr.mxu0 0.0
    %3654 = vmatpush1.msra.mxu0 0.0
    %3655 = vmatprep.subr.mxu0 0.0
    %3656 = vmatpush1.msra.mxu0 0.0
    %3657 = vmatprep.subr.mxu0 0.0
    %3658 = vmatpush1.msra.mxu0 0.0
    %3659 = vmatprep.subr.mxu0 0.0
    %3660 = vmatpush1.msra.mxu0 0.0
    %3661 = vmatprep.subr.mxu0 0.0
    %3662 = vmatpush1.msra.mxu0 0.0
    %3663 = vmatprep.subr.mxu0 0.0
    %3664 = vmatpush1.msra.mxu0 0.0
    %3665 = vmatprep.subr.mxu0 0.0
    %3666 = vmatpush1.msra.mxu0 0.0
    %3667 = vmatprep.subr.mxu0 0.0
    %3668 = vmatpush1.msra.mxu0 0.0
    %3669 = vmatprep.subr.mxu0 0.0
    %3670 = vmatpush1.msra.mxu0 0.0
    %3671 = vmatprep.subr.mxu0 0.0
    %3672 = vmatpush1.msra.mxu0 0.0
    %3673 = vmatprep.subr.mxu0 0.0
    %3674 = vmatpush1.msra.mxu0 0.0
    %3675 = vmatprep.subr.mxu0 0.0
    %3676 = vmatpush1.msra.mxu0 0.0
    %3677 = vmatprep.mubr.f32.mxu0 0.0
    %3678 = vmatmul.mubr.f32.gmra.mrb[0].mxu0 %v3540
    %v3679 = vpop.f32.mrb[0].mxu0
    %v3680 = vadd.f32 %v3530, %v3679
    %v3681 = vpop.f32.mrb[0].mxu0
    %v3682 = vadd.f32 %v3534, %v3681
    %3683 = vdwg.mxu0
    %v3684 = vmax.f32 %v3609, 0.0
    %v3685 = vmax.f32 %v3611, 0.0
    %v3686 = vmax.f32 %v3680, 0.0
    %v3687 = vmax.f32 %v3682, 0.0
    %v3688 = vld [vmem:[#allocation30] sm:$0xff]
    %v3689 = vld [vmem:[#allocation30 + $0x8] sm:$0xff]
    %v3690 = vld [vmem:[#allocation30 + $0x10] sm:$0xff]
    %v3691 = vld [vmem:[#allocation30 + $0x18] sm:$0xff]
    %v3692 = vld [vmem:[#allocation30 + $0x20] sm:$0xff]
    %v3693 = vld [vmem:[#allocation30 + $0x28] sm:$0xff]
    %v3694 = vld [vmem:[#allocation30 + $0x30] sm:$0xff]
    %v3695 = vld [vmem:[#allocation30 + $0x38] sm:$0xff]
    %v3696 = vld [vmem:[#allocation30 + $0x40] sm:$0xff]
    %v3697 = vld [vmem:[#allocation30 + $0x48] sm:$0xff]
    %v3698 = vld [vmem:[#allocation30 + $0x50] sm:$0xff]
    %v3699 = vld [vmem:[#allocation30 + $0x58] sm:$0xff]
    %v3700 = vld [vmem:[#allocation30 + $0x60] sm:$0xff]
    %v3701 = vld [vmem:[#allocation30 + $0x68] sm:$0xff]
    %v3702 = vld [vmem:[#allocation30 + $0x70] sm:$0xff]
    %v3703 = vld [vmem:[#allocation30 + $0x78] sm:$0xff]
    %v3704 = vld [vmem:[#allocation30 + $0x80] sm:$0xff]
    %v3705 = vld [vmem:[#allocation30 + $0x88] sm:$0xff]
    %v3706 = vld [vmem:[#allocation30 + $0x90] sm:$0xff]
    %v3707 = vld [vmem:[#allocation30 + $0x98] sm:$0xff]
    %v3708 = vld [vmem:[#allocation30 + $0xa0] sm:$0xff]
    %v3709 = vld [vmem:[#allocation30 + $0xa8] sm:$0xff]
    %v3710 = vld [vmem:[#allocation30 + $0xb0] sm:$0xff]
    %v3711 = vld [vmem:[#allocation30 + $0xb8] sm:$0xff]
    %v3712 = vld [vmem:[#allocation30 + $0xc0] sm:$0xff]
    %v3713 = vld [vmem:[#allocation30 + $0xc8] sm:$0xff]
    %v3714 = vld [vmem:[#allocation30 + $0xd0] sm:$0xff]
    %v3715 = vld [vmem:[#allocation30 + $0xd8] sm:$0xff]
    %v3716 = vld [vmem:[#allocation30 + $0xe0] sm:$0xff]
    %v3717 = vld [vmem:[#allocation30 + $0xe8] sm:$0xff]
    %v3718 = vld [vmem:[#allocation30 + $0xf0] sm:$0xff]
    %v3719 = vld [vmem:[#allocation30 + $0xf8] sm:$0xff]
    %v3720 = vld [vmem:[#allocation30 + $0x100] sm:$0xff]
    %v3721 = vld [vmem:[#allocation30 + $0x108] sm:$0xff]
    %v3722 = vld [vmem:[#allocation30 + $0x110] sm:$0xff]
    %v3723 = vld [vmem:[#allocation30 + $0x118] sm:$0xff]
    %v3724 = vld [vmem:[#allocation30 + $0x120] sm:$0xff]
    %v3725 = vld [vmem:[#allocation30 + $0x128] sm:$0xff]
    %v3726 = vld [vmem:[#allocation30 + $0x130] sm:$0xff]
    %v3727 = vld [vmem:[#allocation30 + $0x138] sm:$0xff]
    %v3728 = vld [vmem:[#allocation30 + $0x140] sm:$0xff]
    %v3729 = vld [vmem:[#allocation30 + $0x148] sm:$0xff]
    %v3730 = vld [vmem:[#allocation30 + $0x150] sm:$0xff]
    %v3731 = vld [vmem:[#allocation30 + $0x158] sm:$0xff]
    %v3732 = vld [vmem:[#allocation30 + $0x160] sm:$0xff]
    %v3733 = vld [vmem:[#allocation30 + $0x168] sm:$0xff]
    %v3734 = vld [vmem:[#allocation30 + $0x170] sm:$0xff]
    %v3735 = vld [vmem:[#allocation30 + $0x178] sm:$0xff]
    %v3736 = vld [vmem:[#allocation30 + $0x180] sm:$0xff]
    %v3737 = vld [vmem:[#allocation30 + $0x188] sm:$0xff]
    %v3738 = vld [vmem:[%s22] sm:$0x1]
    %v3740 = vlaneseq
    %v3741 = vshrl.u32 %v3740, 7
    %v3742 = vsub.s32 0, %v3741
    %v3743 = vrot.slane %v3738, %v3742
    %vm3745 = vcmask 130048
    %v3747 = vsel %vm3745, %v3687, 0
    %3749 = vmatprep.subr.mxu0 0.0
    %3750 = vmatpush1.msra.mxu0 %v3688
    %3751 = vmatprep.subr.mxu0 0.0
    %3752 = vmatpush1.msra.mxu0 %v3689
    %3753 = vmatprep.subr.mxu0 0.0
    %3754 = vmatpush1.msra.mxu0 %v3690
    %3755 = vmatprep.subr.mxu0 0.0
    %3756 = vmatpush1.msra.mxu0 %v3691
    %3757 = vmatprep.subr.mxu0 0.0
    %3758 = vmatpush1.msra.mxu0 %v3692
    %3759 = vmatprep.subr.mxu0 0.0
    %3760 = vmatpush1.msra.mxu0 %v3693
    %3761 = vmatprep.subr.mxu0 0.0
    %3762 = vmatpush1.msra.mxu0 %v3694
    %3763 = vmatprep.subr.mxu0 0.0
    %3764 = vmatpush1.msra.mxu0 %v3695
    %3765 = vmatprep.subr.mxu0 0.0
    %3766 = vmatpush1.msra.mxu0 %v3696
    %3767 = vmatprep.subr.mxu0 0.0
    %3768 = vmatpush1.msra.mxu0 %v3697
    %3769 = vmatprep.subr.mxu0 0.0
    %3770 = vmatpush1.msra.mxu0 %v3698
    %3771 = vmatprep.subr.mxu0 0.0
    %3772 = vmatpush1.msra.mxu0 %v3699
    %3773 = vmatprep.subr.mxu0 0.0
    %3774 = vmatpush1.msra.mxu0 %v3700
    %3775 = vmatprep.subr.mxu0 0.0
    %3776 = vmatpush1.msra.mxu0 %v3701
    %3777 = vmatprep.subr.mxu0 0.0
    %3778 = vmatpush1.msra.mxu0 %v3702
    %3779 = vmatprep.subr.mxu0 0.0
    %3780 = vmatpush1.msra.mxu0 %v3703
    %3781 = vmatprep.subr.mxu0 0.0
    %3782 = vmatpush1.msra.mxu0 %v3704
    %3783 = vmatprep.subr.mxu0 0.0
    %3784 = vmatpush1.msra.mxu0 %v3705
    %3785 = vmatprep.subr.mxu0 0.0
    %3786 = vmatpush1.msra.mxu0 %v3706
    %3787 = vmatprep.subr.mxu0 0.0
    %3788 = vmatpush1.msra.mxu0 %v3707
    %3789 = vmatprep.subr.mxu0 0.0
    %3790 = vmatpush1.msra.mxu0 %v3708
    %3791 = vmatprep.subr.mxu0 0.0
    %3792 = vmatpush1.msra.mxu0 %v3709
    %3793 = vmatprep.subr.mxu0 0.0
    %3794 = vmatpush1.msra.mxu0 %v3710
    %3795 = vmatprep.subr.mxu0 0.0
    %3796 = vmatpush1.msra.mxu0 %v3711
    %3797 = vmatprep.subr.mxu0 0.0
    %3798 = vmatpush1.msra.mxu0 %v3712
    %3799 = vmatprep.subr.mxu0 0.0
    %3800 = vmatpush1.msra.mxu0 %v3713
    %3801 = vmatprep.subr.mxu0 0.0
    %3802 = vmatpush1.msra.mxu0 %v3714
    %3803 = vmatprep.subr.mxu0 0.0
    %3804 = vmatpush1.msra.mxu0 %v3715
    %3805 = vmatprep.subr.mxu0 0.0
    %3806 = vmatpush1.msra.mxu0 %v3716
    %3807 = vmatprep.subr.mxu0 0.0
    %3808 = vmatpush1.msra.mxu0 %v3717
    %3809 = vmatprep.subr.mxu0 0.0
    %3810 = vmatpush1.msra.mxu0 %v3718
    %3811 = vmatprep.subr.mxu0 0.0
    %3812 = vmatpush1.msra.mxu0 %v3719
    %3813 = vmatprep.mubr.f32.mxu0 %v3685
    %3814 = vmatmul.mubr.f32.gmra.mrb[0].mxu0 %v3684
    %v3815 = vpop.f32.mrb[0].mxu0
    %v3816 = vadd.f32 %v3743, %v3815
    %v3817 = vpop.f32.mrb[0].mxu0
    %3818 = vdwg.mxu0
    %3819 = vmatprep.subr.mxu0 0.0
    %3820 = vmatpush1.msra.mxu0 %v3720
    %3821 = vmatprep.subr.mxu0 0.0
    %3822 = vmatpush1.msra.mxu0 %v3721
    %3823 = vmatprep.subr.mxu0 0.0
    %3824 = vmatpush1.msra.mxu0 %v3722
    %3825 = vmatprep.subr.mxu0 0.0
    %3826 = vmatpush1.msra.mxu0 %v3723
    %3827 = vmatprep.subr.mxu0 0.0
    %3828 = vmatpush1.msra.mxu0 %v3724
    %3829 = vmatprep.subr.mxu0 0.0
    %3830 = vmatpush1.msra.mxu0 %v3725
    %3831 = vmatprep.subr.mxu0 0.0
    %3832 = vmatpush1.msra.mxu0 %v3726
    %3833 = vmatprep.subr.mxu0 0.0
    %3834 = vmatpush1.msra.mxu0 %v3727
    %3835 = vmatprep.subr.mxu0 0.0
    %3836 = vmatpush1.msra.mxu0 %v3728
    %3837 = vmatprep.subr.mxu0 0.0
    %3838 = vmatpush1.msra.mxu0 %v3729
    %3839 = vmatprep.subr.mxu0 0.0
    %3840 = vmatpush1.msra.mxu0 %v3730
    %3841 = vmatprep.subr.mxu0 0.0
    %3842 = vmatpush1.msra.mxu0 %v3731
    %3843 = vmatprep.subr.mxu0 0.0
    %3844 = vmatpush1.msra.mxu0 %v3732
    %3845 = vmatprep.subr.mxu0 0.0
    %3846 = vmatpush1.msra.mxu0 %v3733
    %3847 = vmatprep.subr.mxu0 0.0
    %3848 = vmatpush1.msra.mxu0 %v3734
    %3849 = vmatprep.subr.mxu0 0.0
    %3850 = vmatpush1.msra.mxu0 %v3735
    %3851 = vmatprep.subr.mxu0 0.0
    %3852 = vmatpush1.msra.mxu0 %v3736
    %3853 = vmatprep.subr.mxu0 0.0
    %3854 = vmatpush1.msra.mxu0 %v3737
    %3855 = vmatprep.subr.mxu0 0.0
    %3856 = vmatpush1.msra.mxu0 0.0
    %3857 = vmatprep.subr.mxu0 0.0
    %3858 = vmatpush1.msra.mxu0 0.0
    %3859 = vmatprep.subr.mxu0 0.0
    %3860 = vmatpush1.msra.mxu0 0.0
    %3861 = vmatprep.subr.mxu0 0.0
    %3862 = vmatpush1.msra.mxu0 0.0
    %3863 = vmatprep.subr.mxu0 0.0
    %3864 = vmatpush1.msra.mxu0 0.0
    %3865 = vmatprep.subr.mxu0 0.0
    %3866 = vmatpush1.msra.mxu0 0.0
    %3867 = vmatprep.subr.mxu0 0.0
    %3868 = vmatpush1.msra.mxu0 0.0
    %3869 = vmatprep.subr.mxu0 0.0
    %3870 = vmatpush1.msra.mxu0 0.0
    %3871 = vmatprep.subr.mxu0 0.0
    %3872 = vmatpush1.msra.mxu0 0.0
    %3873 = vmatprep.subr.mxu0 0.0
    %3874 = vmatpush1.msra.mxu0 0.0
    %3875 = vmatprep.subr.mxu0 0.0
    %3876 = vmatpush1.msra.mxu0 0.0
    %3877 = vmatprep.subr.mxu0 0.0
    %3878 = vmatpush1.msra.mxu0 0.0
    %3879 = vmatprep.subr.mxu0 0.0
    %3880 = vmatpush1.msra.mxu0 0.0
    %3881 = vmatprep.subr.mxu0 0.0
    %3882 = vmatpush1.msra.mxu0 0.0
    %3883 = vmatprep.mubr.f32.mxu0 %v3747
    %3884 = vmatmul.mubr.f32.gmra.mrb[0].mxu0 %v3686
    %v3885 = vpop.f32.mrb[0].mxu0
    %v3886 = vadd.f32 %v3816, %v3885
    %v3887 = vpop.f32.mrb[0].mxu0
    %3888 = vdwg.mxu0
    %v3889 = vmax.f32 %v3886, 0.0
    %v3890 = vld [vmem:[%s23] sm:$0xff]
    %v3891 = vld [vmem:[%s23 + $0x8] sm:$0xff]
    %v3892 = vld [vmem:[%s23 + $0x10] sm:$0xff]
    %v3893 = vld [vmem:[%s23 + $0x18] sm:$0xff]
    %v3894 = vld [vmem:[%s23 + $0x20] sm:$0xff]
    %v3895 = vld [vmem:[%s23 + $0x28] sm:$0xff]
    %v3896 = vld [vmem:[%s23 + $0x30] sm:$0xff]
    %v3897 = vld [vmem:[%s23 + $0x38] sm:$0xff]
    %v3898 = vld [vmem:[%s23 + $0x40] sm:$0xff]
    %v3899 = vld [vmem:[%s23 + $0x48] sm:$0xff]
    %v3900 = vld [vmem:[%s23 + $0x50] sm:$0xff]
    %v3901 = vld [vmem:[%s23 + $0x58] sm:$0xff]
    %v3902 = vld [vmem:[%s23 + $0x60] sm:$0xf]
    %v3903 = vld [vmem:[%s24] sm:$0x1]
    %v3905 = vlaneseq
    %v3906 = vshrl.u32 %v3905, 7
    %v3907 = vsub.s32 0, %v3906
    %v3908 = vrot.slane %v3903, %v3907
    %vm3910 = vcmask 818176
    %v3912 = vsel %vm3910, %v3889, 0
    %v3915 = vsel %vm333, %v3902, 0
    %3917 = vmatprep.subr.mxu0 0.0
    %3918 = vmatpush1.msra.mxu0 %v3890
    %3919 = vmatprep.subr.mxu0 0.0
    %3920 = vmatpush1.msra.mxu0 %v3891
    %3921 = vmatprep.subr.mxu0 0.0
    %3922 = vmatpush1.msra.mxu0 %v3892
    %3923 = vmatprep.subr.mxu0 0.0
    %3924 = vmatpush1.msra.mxu0 %v3893
    %3925 = vmatprep.subr.mxu0 0.0
    %3926 = vmatpush1.msra.mxu0 %v3894
    %3927 = vmatprep.subr.mxu0 0.0
    %3928 = vmatpush1.msra.mxu0 %v3895
    %3929 = vmatprep.subr.mxu0 0.0
    %3930 = vmatpush1.msra.mxu0 %v3896
    %3931 = vmatprep.subr.mxu0 0.0
    %3932 = vmatpush1.msra.mxu0 %v3897
    %3933 = vmatprep.subr.mxu0 0.0
    %3934 = vmatpush1.msra.mxu0 %v3898
    %3935 = vmatprep.subr.mxu0 0.0
    %3936 = vmatpush1.msra.mxu0 %v3899
    %3937 = vmatprep.subr.mxu0 0.0
    %3938 = vmatpush1.msra.mxu0 %v3900
    %3939 = vmatprep.subr.mxu0 0.0
    %3940 = vmatpush1.msra.mxu0 %v3901
    %3941 = vmatprep.subr.mxu0 0.0
    %3942 = vmatpush1.msra.mxu0 %v3915
    %3943 = vmatprep.subr.mxu0 0.0
    %3944 = vmatpush1.msra.mxu0 0.0
    %3945 = vmatprep.subr.mxu0 0.0
    %3946 = vmatpush1.msra.mxu0 0.0
    %3947 = vmatprep.subr.mxu0 0.0
    %3948 = vmatpush1.msra.mxu0 0.0
    %3949 = vmatprep.subr.mxu0 0.0
    %3950 = vmatpush1.msra.mxu0 0.0
    %3951 = vmatprep.subr.mxu0 0.0
    %3952 = vmatpush1.msra.mxu0 0.0
    %3953 = vmatprep.subr.mxu0 0.0
    %3954 = vmatpush1.msra.mxu0 0.0
    %3955 = vmatprep.subr.mxu0 0.0
    %3956 = vmatpush1.msra.mxu0 0.0
    %3957 = vmatprep.subr.mxu0 0.0
    %3958 = vmatpush1.msra.mxu0 0.0
    %3959 = vmatprep.subr.mxu0 0.0
    %3960 = vmatpush1.msra.mxu0 0.0
    %3961 = vmatprep.subr.mxu0 0.0
    %3962 = vmatpush1.msra.mxu0 0.0
    %3963 = vmatprep.subr.mxu0 0.0
    %3964 = vmatpush1.msra.mxu0 0.0
    %3965 = vmatprep.subr.mxu0 0.0
    %3966 = vmatpush1.msra.mxu0 0.0
    %3967 = vmatprep.subr.mxu0 0.0
    %3968 = vmatpush1.msra.mxu0 0.0
    %3969 = vmatprep.subr.mxu0 0.0
    %3970 = vmatpush1.msra.mxu0 0.0
    %3971 = vmatprep.subr.mxu0 0.0
    %3972 = vmatpush1.msra.mxu0 0.0
    %3973 = vmatprep.subr.mxu0 0.0
    %3974 = vmatpush1.msra.mxu0 0.0
    %3975 = vmatprep.subr.mxu0 0.0
    %3976 = vmatpush1.msra.mxu0 0.0
    %3977 = vmatprep.subr.mxu0 0.0
    %3978 = vmatpush1.msra.mxu0 0.0
    %3979 = vmatprep.subr.mxu0 0.0
    %3980 = vmatpush1.msra.mxu0 0.0
    %3981 = vmatprep.mubr.f32.mxu0 0.0
    %3982 = vmatmul.mubr.f32.gmra.mrb[0].mxu0 %v3912
    %v3983 = vpop.f32.mrb[0].mxu0
    %v3984 = vadd.f32 %v3908, %v3983
    %v3985 = vpop.f32.mrb[0].mxu0
    %3986 = vdwg.mxu0
    %3987 = vst [vmem:[#allocation31] sm:$0xff] %v3984
    // Predicated region
    $region170: #{tpu_custom_call.1} parent=1 // pred_check
      _
    $region171: #{tpu_custom_call.1} parent=1 // pred_check_branch
      %3989 = sbr.rel (0) target = $region173
    $region172: #{tpu_custom_call.1} parent=1 // pred_region
      %s3991 = ssub.s32 128, 128
      %3992 = vsyncadd [#allocation6], %s3991
      %s3994 = sshll.u32 [#allocation31], 4
      %s3995 = int_to_ptr.vmem [resolvable:$true] %s3994
      %3997 = dma.vmem_to_hbm [thread:$0]  %s3995, 128, %s25, [#allocation6]
    $region173: #{tpu_custom_call.1} parent=1 // pred_fallthru
      _
    // Predicated region
    $region174: #{tpu_custom_call.1} parent=1 // pred_check
      _
    $region175: #{tpu_custom_call.1} parent=1 // pred_check_branch
      %3999 = sbr.rel (0) target = $region177
    $region176: #{tpu_custom_call.1} parent=1 // pred_region
      %4000 = dma.done [#allocation6], 128
    $region177: #{tpu_custom_call.1} parent=1 // pred_fallthru
      _
    %4001 = vsyncpa [#allocation5], 1
    %4002 = vsyncpa [#allocation8], 1
    %4003 = vsyncpa [#allocation11], 1
    %4004 = vsyncpa [#allocation14], 1
    %4005 = vsyncpa [#allocation17], 1
    %4006 = vsyncpa [#allocation20], 1
    %4007 = vsyncpa [#allocation23], 1
    %4008 = vsyncpa [#allocation26], 1
    %4009 = vsyncpa [#allocation29], 1
    %4010 = vsyncpa [#allocation6], 1

</llo_original>
